<compile_context>
chip_gen: v7x
topology: tpu7x:2x2x1
jax: 0.10.0
libtpu: 0.0.40
codegen_flags: <defaults>
</compile_context>

<pallas_src>
import functools

import numpy as np
import jax
import jax.numpy as jnp
from jax import lax
from jax.experimental import pallas as pl
from jax.experimental.pallas import tpu as pltpu

N_SIGMA = 1
N_CLASSES = 8
BG_W = 1.6316
LANE = 128


# ------------------------------ Pallas kernel ------------------------------ #

def _fused_kernel(pred_ref, sig_ref, xym_ref, inst_ref, lab_ref, fgw_ref,
                  dist_ref, stats_ref,
                  seed_scr, isum_ref, icls_ref, bacc_ref,
                  *, num_instances):
    """grid = (batch, phase, spatial_tile).

    pred_ref : (C, TR, L)  full prediction channels (frozen on tile 0 in phase 0)
    sig_ref  : (1, TR, L)  sigma channel only (frozen in phase 1)
    xym_ref  : (2, TR, L)  coordinate maps (x, y)
    inst_ref : (TR, L)     int32 instance ids (0 = background)
    lab_ref  : (TR, L)     int32 semantic labels (0 = background)
    fgw_ref  : (8,)        SMEM foreground class weights
    dist_ref : (K, TR, L)  gaussian dist map per candidate instance (phase 1)
    stats_ref: (1, 128)    lanes 0..3 = [obj_count, var_sum, seed_sum, bg_total]
    seed_scr : (8, TR, L)  VMEM cache of the sigmoid seed maps (phase 1)
    isum_ref : (K, 8)      SMEM per-instance {cnt, Sx, Sy, Ss, Ss2}
    icls_ref : (K,)        SMEM per-instance class id (max over mask)
    bacc_ref : (8,)        SMEM per-batch accumulators [bg_total, seed_sum]
    """
    p = pl.program_id(1)
    s = pl.program_id(2)
    n_tiles = pl.num_programs(2)

    x = xym_ref[0]
    y = xym_ref[1]
    inst = inst_ref[...]
    lab = lab_ref[...]

    # ---------------- phase 0 : per-instance statistics sweep --------------- #
    @pl.when(p == 0)
    def _stats_sweep():
        @pl.when(s == 0)
        def _init():
            for k in range(num_instances):
                for j in range(5):
                    isum_ref[k, j] = jnp.float32(0.0)
                icls_ref[k] = jnp.int32(0)
            bacc_ref[0] = jnp.float32(0.0)   # background seed loss
            bacc_ref[1] = jnp.float32(0.0)   # foreground (per-instance) seed loss

        sigma = sig_ref[0]
        # NOTE: candidate ids are assumed to be exactly 1..K (reference iterates
        # np.unique); sparse / larger ids would be dropped.
        for k in range(num_instances):
            mk = inst == (k + 1)
            mkf = mk.astype(jnp.float32)
            isum_ref[k, 0] = isum_ref[k, 0] + jnp.sum(mkf)
            isum_ref[k, 1] = isum_ref[k, 1] + jnp.sum(x * mkf)
            isum_ref[k, 2] = isum_ref[k, 2] + jnp.sum(y * mkf)
            isum_ref[k, 3] = isum_ref[k, 3] + jnp.sum(sigma * mkf)
            isum_ref[k, 4] = isum_ref[k, 4] + jnp.sum(sigma * sigma * mkf)
            icls_ref[k] = jnp.maximum(icls_ref[k],
                                      jnp.max(jnp.where(mk, lab, 0)))

    # ---------------- phase 1 : dist / seed sweep --------------------------- #
    @pl.when(p == 1)
    def _dist_seed_sweep():
        # 8 sigmoid seed maps computed once per tile into VMEM scratch; the
        # background term is BG_W * (sum_all s_c^2 - sum_{lab==c+1} s_c^2).
        bg_tile = jnp.float32(0.0)
        for c in range(N_CLASSES):
            sm = jax.nn.sigmoid(pred_ref[2 + N_SIGMA + c])
            seed_scr[c] = sm
            sq = sm * sm
            bg_tile = bg_tile + (jnp.sum(sq)
                                 - jnp.sum(jnp.where(lab == c + 1, sq, 0.0)))
        bacc_ref[0] = bacc_ref[0] + BG_W * bg_tile

        emb_x = jnp.tanh(pred_ref[0]) + x
        emb_y = jnp.tanh(pred_ref[1]) + y

        for k in range(num_instances):
            cnt = isum_ref[k, 0]

            @pl.when(cnt > 0.0)
            def _valid(k=k, cnt=cnt):
                inv = 1.0 / cnt
                cx = isum_ref[k, 1] * inv
                cy = isum_ref[k, 2] * inv
                s_exp = jnp.exp(isum_ref[k, 3] * inv * 10.0)
                # two lane-wide FMAs instead of a sublane-axis reduction
                d2 = (emb_x - cx) ** 2 + (emb_y - cy) ** 2
                dist = jnp.exp(-d2 * s_exp)
                dist_ref[k] = dist
                cls_idx = jnp.clip(icls_ref[k] - 1, 0, N_CLASSES - 1)
                seed_sel = seed_scr[cls_idx]           # cached sigmoid map
                fw = fgw_ref[cls_idx]                  # scalar SMEM read
                mk = inst == (k + 1)
                bacc_ref[1] = bacc_ref[1] + fw * jnp.sum(
                    jnp.where(mk, (seed_sel - dist) ** 2, 0.0))

            @pl.when(cnt == 0.0)
            def _invalid(k=k):
                # empty candidate slot -> all-zero dist so its lovasz term is 0
                dist_ref[k] = jnp.zeros(dist_ref.shape[1:], dist_ref.dtype)

        # final reduction to 4 per-batch scalars at the last tile
        @pl.when(s == n_tiles - 1)
        def _finalize():
            obj_count = jnp.float32(0.0)
            var_sum = jnp.float32(0.0)
            for k in range(num_instances):
                cnt = isum_ref[k, 0]
                valid = (cnt > 0.0).astype(jnp.float32)
                inv = 1.0 / jnp.maximum(cnt, 1.0)
                s_mean = isum_ref[k, 3] * inv
                var_k = jnp.maximum(isum_ref[k, 4] * inv - s_mean * s_mean, 0.0)
                obj_count = obj_count + valid
                var_sum = var_sum + valid * var_k
            lane = lax.broadcasted_iota(jnp.int32, (1, LANE), 1)
            stats_ref[...] = (jnp.where(lane == 0, obj_count, 0.0)
                              + jnp.where(lane == 1, var_sum, 0.0)
                              + jnp.where(lane == 2, bacc_ref[1], 0.0)
                              + jnp.where(lane == 3, bacc_ref[0], 0.0))


# -------------------------------- JAX glue ---------------------------------- #

def _pick_tile_rows(R, target):
    """Largest spatial tile (sublane rows) that divides R and is either == R or
    a multiple of 8 (TPU sublane tiling), capped at `target`."""
    if R <= target:
        return R
    cand = target - (target % 8)
    while cand >= 8:
        if R % cand == 0:
            return cand
        cand -= 8
    # TODO(synk): pathological R (not a multiple of 8) falls back to full residency.
    return R


def _lovasz_hinge_flat(logits, labels):
    # TODO(synk): lovasz hinge needs a global descending sort; there is no clean
    # Pallas TPU sort primitive, so this piece stays in plain JAX (XLA sort).
    signs = 2.0 * labels - 1.0
    errors = 1.0 - logits * signs
    perm = jnp.argsort(-errors)
    errors_sorted = jnp.take(errors, perm)
    gt_sorted = jnp.take(labels, perm)
    gts = jnp.sum(gt_sorted)
    inter = gts - jnp.cumsum(gt_sorted)
    union = gts + jnp.cumsum(1.0 - gt_sorted)
    jac = 1.0 - inter / union
    jac = jnp.concatenate([jac[:1], jac[1:] - jac[:-1]])
    return jnp.dot(jax.nn.relu(errors_sorted), jac)


def spatial_emb_loss(prediction, instances, labels, fg_weight,
                     max_instances=3, w_inst=1.0, w_var=10.0, w_seed=1.0):
    B, C, H, W = prediction.shape
    N = H * W
    if N % LANE != 0:
        raise ValueError("H*W must be a multiple of 128 for this kernel")
    R = N // LANE
    K = max_instances

    # --- generation-aware tiling / VMEM budget (v7x: 64 MiB, v5e/v6e: 128 MiB)
    try:
        vmem_cap = int(pltpu.get_tpu_info().vmem_capacity_bytes)
    except Exception:
        vmem_cap = 64 * 1024 * 1024
    target_rows = 512 if vmem_cap <= 64 * 1024 * 1024 else 1024
    TR = _pick_tile_rows(R, target_rows)
    S = R // TR
    vmem_limit = int(min(max(vmem_cap * 0.85, 32 * 1024 * 1024),
                         112 * 1024 * 1024))

    # xym buffer: x = linspace(0, 2, 2048)[:W], y = linspace(0, 1, 1024)[:H]
    xm = (jnp.arange(2048, dtype=jnp.float32) * (2.0 / 2047.0))[:W]
    ym = (jnp.arange(1024, dtype=jnp.float32) * (1.0 / 1023.0))[:H]
    xmap = jnp.broadcast_to(xm[None, :], (H, W))
    ymap = jnp.broadcast_to(ym[:, None], (H, W))
    xym = jnp.stack([xmap, ymap], axis=0).reshape(2, R, LANE)

    pred = prediction.reshape(B, C, R, LANE).astype(jnp.float32)
    inst = instances.reshape(B, R, LANE).astype(jnp.int32)
    lab = labels.reshape(B, R, LANE).astype(jnp.int32)
    fgw = jnp.asarray(fg_weight, jnp.float32).reshape(N_CLASSES)

    kernel = functools.partial(_fused_kernel, num_instances=K)

    grid_spec = pltpu.PrefetchScalarGridSpec(
        num_scalar_prefetch=0,
        grid=(B, 2, S),        # (batch, phase: 0=stats sweep 1=dist sweep, tile)
        in_specs=[
            # full prediction block: parked on tile 0 during phase 0
            pl.BlockSpec((None, C, TR, LANE), lambda b, p, s: (b, 0, s * p, 0)),
            # sigma-only channel: streamed in phase 0, parked during phase 1
            pl.BlockSpec((None, 1, TR, LANE),
                         lambda b, p, s: (b, 2, s * (1 - p), 0)),
            pl.BlockSpec((2, TR, LANE), lambda b, p, s: (0, s, 0)),       # xym
            pl.BlockSpec((None, TR, LANE), lambda b, p, s: (b, s, 0)),    # instances
            pl.BlockSpec((None, TR, LANE), lambda b, p, s: (b, s, 0)),    # labels
            pl.BlockSpec(memory_space=pltpu.MemorySpace.SMEM),            # fg weights
        ],
        out_specs=[
            # dist: parked on tile 0 during phase 0 (never written there),
            # streamed + written exactly once during phase 1
            pl.BlockSpec((None, K, TR, LANE), lambda b, p, s: (b, 0, s * p, 0)),
            pl.BlockSpec((None, 1, LANE), lambda b, p, s: (b, 0, 0)),     # stats
        ],
        scratch_shapes=[
            pltpu.VMEM((N_CLASSES, TR, LANE), jnp.float32),  # cached seed maps
            pltpu.SMEM((K, 8), jnp.float32),   # per-instance {cnt,Sx,Sy,Ss,Ss2}
            pltpu.SMEM((K,), jnp.int32),       # per-instance class id
            pltpu.SMEM((8,), jnp.float32),     # [bg_total, seed_sum]
        ],
    )

    dist, stats = pl.pallas_call(
        kernel,
        grid_spec=grid_spec,
        out_shape=[
            jax.ShapeDtypeStruct((B, K, R, LANE), jnp.float32),
            jax.ShapeDtypeStruct((B, 1, LANE), jnp.float32),
        ],
        compiler_params=pltpu.CompilerParams(
            dimension_semantics=("parallel", "arbitrary", "arbitrary"),
            vmem_limit_bytes=vmem_limit),
    )(pred, pred, xym, inst, lab, fgw)

    obj_count = stats[:, 0, 0]
    var_sum = stats[:, 0, 1]
    seed_sum = stats[:, 0, 2]
    bg_total = stats[:, 0, 3]

    # Lovasz hinge (global sort) stays in XLA; invalid candidates have dist==0
    # and an all-zero mask, which makes their lovasz term exactly 0.
    ids = jnp.arange(1, K + 1, dtype=jnp.int32)
    masks_f = (instances.reshape(B, 1, N).astype(jnp.int32)
               == ids.reshape(1, K, 1)).astype(jnp.float32)              # (B,K,N)
    logits = dist.reshape(B, K, N) * 2.0 - 1.0
    lov = jax.vmap(_lovasz_hinge_flat)(
        logits.reshape(B * K, N), masks_f.reshape(B * K, N)).reshape(B, K)

    denom = jnp.maximum(obj_count, 1.0)
    inst_loss = jnp.sum(lov, axis=1) / denom
    var_loss = var_sum / denom
    seed_loss = (bg_total + seed_sum) / (H * W)

    loss = jnp.mean(w_inst * inst_loss + w_var * var_loss + w_seed * seed_loss)
    return loss + jnp.sum(prediction) * 0.0


# ------------------------ numpy reference (PyTorch-like) -------------------- #

def _lovasz_hinge_np(logits, labels):
    signs = 2.0 * labels - 1.0
    errors = 1.0 - logits * signs
    perm = np.argsort(-errors, kind="stable")
    errors_sorted = errors[perm]
    gt_sorted = labels[perm]
    gts = gt_sorted.sum()
    inter = gts - np.cumsum(gt_sorted)
    union = gts + np.cumsum(1.0 - gt_sorted)
    jac = 1.0 - inter / union
    jac[1:] = jac[1:] - jac[:-1]
    return float(np.dot(np.maximum(errors_sorted, 0.0), jac))


def reference_loss(pred, instances, labels, fg_weight,
                   w_inst=1.0, w_var=10.0, w_seed=1.0):
    pred = np.asarray(pred, np.float64)
    B, C, H, W = pred.shape
    xm = np.linspace(0, 2, 2048)[:W]
    ym = np.linspace(0, 1, 1024)[:H]
    xym = np.stack([np.broadcast_to(xm[None, :], (H, W)),
                    np.broadcast_to(ym[:, None], (H, W))], 0)
    total = 0.0
    for b in range(B):
        spatial_emb = np.tanh(pred[b, 0:2]) + xym
        sigma = pred[b, 2:2 + N_SIGMA]
        seed_map = 1.0 / (1.0 + np.exp(-pred[b, 2 + N_SIGMA:2 + N_SIGMA + 8]))
        var_loss = instance_loss = seed_loss = 0.0
        obj_count = 0
        instance = np.asarray(instances)[b]
        label = np.asarray(labels)[b]
        ids = np.unique(instance)
        ids = ids[ids != 0]
        for i in range(8):
            bg_mask = (label != i + 1)
            if bg_mask.sum() > 0:
                seed_loss += BG_W * np.sum(seed_map[i][bg_mask] ** 2)
        for id_ in ids:
            in_mask = (instance == id_)
            class_id = int(np.unique(label[in_mask])[0])
            center = xym[:, in_mask].mean(1).reshape(2, 1, 1)
            sigma_in = sigma[:, in_mask]
            s = sigma_in.mean()
            var_loss += np.mean((sigma_in - s) ** 2)
            s_exp = np.exp(s * 10.0)
            dist = np.exp(-np.sum((spatial_emb - center) ** 2 * s_exp, axis=0))
            instance_loss += _lovasz_hinge_np(
                dist.reshape(-1) * 2.0 - 1.0,
                in_mask.reshape(-1).astype(np.float64))
            seed_loss += fg_weight[class_id - 1] * np.sum(
                (seed_map[class_id - 1][in_mask] - dist[in_mask]) ** 2)
            obj_count += 1
        if obj_count > 0:
            instance_loss /= obj_count
            var_loss /= obj_count
        seed_loss /= (H * W)
        total += w_inst * instance_loss + w_var * var_loss + w_seed * seed_loss
    return total / B


if __name__ == "__main__":
    B, H, W = 2, 16, 16
    C = 2 + N_SIGMA + N_CLASSES          # 11 channels
    K = 3                                # max instance id in synthetic data

    key = jax.random.PRNGKey(0)
    prediction = jax.random.normal(key, (B, C, H, W), dtype=jnp.float32) * 0.5

    inst_np = np.zeros((B, H, W), np.int32)
    lab_np = np.zeros((B, H, W), np.int32)
    # batch 0: three instances
    inst_np[0, :8, :8] = 1; lab_np[0, :8, :8] = 2
    inst_np[0, :8, 8:] = 2; lab_np[0, :8, 8:] = 5
    inst_np[0, 8:, :8] = 3; lab_np[0, 8:, :8] = 7
    # batch 1: two instances
    inst_np[1, 4:12, 2:10] = 1; lab_np[1, 4:12, 2:10] = 3
    inst_np[1, 12:, 10:] = 2;  lab_np[1, 12:, 10:] = 8

    # deterministic replacement for the pickle-loaded class weights (8 classes)
    fg_weight = np.linspace(1.0, 2.4, N_CLASSES).astype(np.float32)

    instances = jnp.asarray(inst_np)
    labels = jnp.asarray(lab_np)

    loss = spatial_emb_loss(prediction, instances, labels, fg_weight,
                            max_instances=K)
    loss = jax.block_until_ready(loss)

    ref = reference_loss(np.asarray(prediction), inst_np, lab_np,
                         np.asarray(fg_weight, np.float64))

    assert np.isfinite(float(loss))
    assert abs(float(loss) - ref) < 1e-3 * max(1.0, abs(ref)), (float(loss), ref)
    print("KERNEL_OK")
</pallas_src>

<mosaic_0001>
module attributes {stable_mosaic.version = 11 : i64} {
  func.func @_fused_kernel(%arg0: i32, %arg1: i32, %arg2: i32, %arg3: memref<1x11x2x128xf32, #tpu.memory_space<vmem>>, %arg4: memref<1x1x2x128xf32, #tpu.memory_space<vmem>>, %arg5: memref<2x2x128xf32, #tpu.memory_space<vmem>>, %arg6: memref<1x2x128xi32, #tpu.memory_space<vmem>>, %arg7: memref<1x2x128xi32, #tpu.memory_space<vmem>>, %arg8: memref<8xf32, #tpu.memory_space<smem>>, %arg9: memref<1x3x2x128xf32, #tpu.memory_space<vmem>>, %arg10: memref<1x1x128xf32, #tpu.memory_space<vmem>>, %arg11: memref<8x2x128xf32, #tpu.memory_space<vmem>>, %arg12: memref<3x8xf32, #tpu.memory_space<smem>>, %arg13: memref<3xi32, #tpu.memory_space<smem>>, %arg14: memref<8xf32, #tpu.memory_space<smem>>) attributes {dimension_semantics = [#tpu.dimension_semantics<parallel>, #tpu.dimension_semantics<arbitrary>, #tpu.dimension_semantics<arbitrary>], iteration_bounds = array<i64: 2, 2, 1>, scalar_prefetch = 0 : i64, scratch_operands = 4 : i64, tpu.core_type = #tpu.core_type<tc>, window_params = [{transform_indices = @transform_0, window_bounds = array<i64: 1, 11, 2, 128>}, {transform_indices = @transform_1, window_bounds = array<i64: 1, 1, 2, 128>}, {transform_indices = @transform_2, window_bounds = array<i64: 2, 2, 128>}, {transform_indices = @transform_3, window_bounds = array<i64: 1, 2, 128>}, {transform_indices = @transform_4, window_bounds = array<i64: 1, 2, 128>}, {transform_indices = @transform_5, window_bounds = array<i64: 8>}, {transform_indices = @transform_6, window_bounds = array<i64: 1, 3, 2, 128>}, {transform_indices = @transform_7, window_bounds = array<i64: 1, 1, 128>}]} {
    %c0 = arith.constant 0 : index
    %c0_0 = arith.constant 0 : index
    %c0_1 = arith.constant 0 : index
    %0 = vector.load %arg5[%c0, %c0_0, %c0_1] : memref<2x2x128xf32, #tpu.memory_space<vmem>>, vector<1x2x128xf32>
    %1 = vector.shape_cast %0 : vector<1x2x128xf32> to vector<2x128xf32>
    %c1 = arith.constant 1 : index
    %c0_2 = arith.constant 0 : index
    %c0_3 = arith.constant 0 : index
    %2 = vector.load %arg5[%c1, %c0_2, %c0_3] : memref<2x2x128xf32, #tpu.memory_space<vmem>>, vector<1x2x128xf32>
    %3 = vector.shape_cast %2 : vector<1x2x128xf32> to vector<2x128xf32>
    %c0_4 = arith.constant 0 : index
    %c0_5 = arith.constant 0 : index
    %c0_6 = arith.constant 0 : index
    %4 = vector.load %arg6[%c0_4, %c0_5, %c0_6] : memref<1x2x128xi32, #tpu.memory_space<vmem>>, vector<1x2x128xi32>
    %5 = vector.shape_cast %4 : vector<1x2x128xi32> to vector<2x128xi32>
    %c0_7 = arith.constant 0 : index
    %c0_8 = arith.constant 0 : index
    %c0_9 = arith.constant 0 : index
    %6 = vector.load %arg7[%c0_7, %c0_8, %c0_9] : memref<1x2x128xi32, #tpu.memory_space<vmem>>, vector<1x2x128xi32>
    %7 = vector.shape_cast %6 : vector<1x2x128xi32> to vector<2x128xi32>
    %c0_i32 = arith.constant 0 : i32
    %8 = arith.cmpi eq, %arg1, %c0_i32 : i32
    %9 = arith.extui %8 : i1 to i32
    %c0_i32_10 = arith.constant 0 : i32
    %10 = arith.cmpi ne, %9, %c0_i32_10 : i32
    scf.if %10 {
      %c0_i32_12 = arith.constant 0 : i32
      %14 = arith.cmpi eq, %arg2, %c0_i32_12 : i32
      %15 = arith.extui %14 : i1 to i32
      %c0_i32_13 = arith.constant 0 : i32
      %16 = arith.cmpi ne, %15, %c0_i32_13 : i32
      scf.if %16 {
        %cst_102 = arith.constant 0.000000e+00 : f32
        %c0_103 = arith.constant 0 : index
        %c0_104 = arith.constant 0 : index
        %178 = memref.load %arg12[%c0_103, %c0_104] : memref<3x8xf32, #tpu.memory_space<smem>>
        memref.store %cst_102, %arg12[%c0_103, %c0_104] : memref<3x8xf32, #tpu.memory_space<smem>>
        %cst_105 = arith.constant 0.000000e+00 : f32
        %c0_106 = arith.constant 0 : index
        %c1_107 = arith.constant 1 : index
        %179 = memref.load %arg12[%c0_106, %c1_107] : memref<3x8xf32, #tpu.memory_space<smem>>
        memref.store %cst_105, %arg12[%c0_106, %c1_107] : memref<3x8xf32, #tpu.memory_space<smem>>
        %cst_108 = arith.constant 0.000000e+00 : f32
        %c0_109 = arith.constant 0 : index
        %c2_110 = arith.constant 2 : index
        %180 = memref.load %arg12[%c0_109, %c2_110] : memref<3x8xf32, #tpu.memory_space<smem>>
        memref.store %cst_108, %arg12[%c0_109, %c2_110] : memref<3x8xf32, #tpu.memory_space<smem>>
        %cst_111 = arith.constant 0.000000e+00 : f32
        %c0_112 = arith.constant 0 : index
        %c3_113 = arith.constant 3 : index
        %181 = memref.load %arg12[%c0_112, %c3_113] : memref<3x8xf32, #tpu.memory_space<smem>>
        memref.store %cst_111, %arg12[%c0_112, %c3_113] : memref<3x8xf32, #tpu.memory_space<smem>>
        %cst_114 = arith.constant 0.000000e+00 : f32
        %c0_115 = arith.constant 0 : index
        %c4_116 = arith.constant 4 : index
        %182 = memref.load %arg12[%c0_115, %c4_116] : memref<3x8xf32, #tpu.memory_space<smem>>
        memref.store %cst_114, %arg12[%c0_115, %c4_116] : memref<3x8xf32, #tpu.memory_space<smem>>
        %c0_i32_117 = arith.constant 0 : i32
        %c0_118 = arith.constant 0 : index
        %183 = memref.load %arg13[%c0_118] : memref<3xi32, #tpu.memory_space<smem>>
        memref.store %c0_i32_117, %arg13[%c0_118] : memref<3xi32, #tpu.memory_space<smem>>
        %cst_119 = arith.constant 0.000000e+00 : f32
        %c1_120 = arith.constant 1 : index
        %c0_121 = arith.constant 0 : index
        %184 = memref.load %arg12[%c1_120, %c0_121] : memref<3x8xf32, #tpu.memory_space<smem>>
        memref.store %cst_119, %arg12[%c1_120, %c0_121] : memref<3x8xf32, #tpu.memory_space<smem>>
        %cst_122 = arith.constant 0.000000e+00 : f32
        %c1_123 = arith.constant 1 : index
        %c1_124 = arith.constant 1 : index
        %185 = memref.load %arg12[%c1_123, %c1_124] : memref<3x8xf32, #tpu.memory_space<smem>>
        memref.store %cst_122, %arg12[%c1_123, %c1_124] : memref<3x8xf32, #tpu.memory_space<smem>>
        %cst_125 = arith.constant 0.000000e+00 : f32
        %c1_126 = arith.constant 1 : index
        %c2_127 = arith.constant 2 : index
        %186 = memref.load %arg12[%c1_126, %c2_127] : memref<3x8xf32, #tpu.memory_space<smem>>
        memref.store %cst_125, %arg12[%c1_126, %c2_127] : memref<3x8xf32, #tpu.memory_space<smem>>
        %cst_128 = arith.constant 0.000000e+00 : f32
        %c1_129 = arith.constant 1 : index
        %c3_130 = arith.constant 3 : index
        %187 = memref.load %arg12[%c1_129, %c3_130] : memref<3x8xf32, #tpu.memory_space<smem>>
        memref.store %cst_128, %arg12[%c1_129, %c3_130] : memref<3x8xf32, #tpu.memory_space<smem>>
        %cst_131 = arith.constant 0.000000e+00 : f32
        %c1_132 = arith.constant 1 : index
        %c4_133 = arith.constant 4 : index
        %188 = memref.load %arg12[%c1_132, %c4_133] : memref<3x8xf32, #tpu.memory_space<smem>>
        memref.store %cst_131, %arg12[%c1_132, %c4_133] : memref<3x8xf32, #tpu.memory_space<smem>>
        %c0_i32_134 = arith.constant 0 : i32
        %c1_135 = arith.constant 1 : index
        %189 = memref.load %arg13[%c1_135] : memref<3xi32, #tpu.memory_space<smem>>
        memref.store %c0_i32_134, %arg13[%c1_135] : memref<3xi32, #tpu.memory_space<smem>>
        %cst_136 = arith.constant 0.000000e+00 : f32
        %c2_137 = arith.constant 2 : index
        %c0_138 = arith.constant 0 : index
        %190 = memref.load %arg12[%c2_137, %c0_138] : memref<3x8xf32, #tpu.memory_space<smem>>
        memref.store %cst_136, %arg12[%c2_137, %c0_138] : memref<3x8xf32, #tpu.memory_space<smem>>
        %cst_139 = arith.constant 0.000000e+00 : f32
        %c2_140 = arith.constant 2 : index
        %c1_141 = arith.constant 1 : index
        %191 = memref.load %arg12[%c2_140, %c1_141] : memref<3x8xf32, #tpu.memory_space<smem>>
        memref.store %cst_139, %arg12[%c2_140, %c1_141] : memref<3x8xf32, #tpu.memory_space<smem>>
        %cst_142 = arith.constant 0.000000e+00 : f32
        %c2_143 = arith.constant 2 : index
        %c2_144 = arith.constant 2 : index
        %192 = memref.load %arg12[%c2_143, %c2_144] : memref<3x8xf32, #tpu.memory_space<smem>>
        memref.store %cst_142, %arg12[%c2_143, %c2_144] : memref<3x8xf32, #tpu.memory_space<smem>>
        %cst_145 = arith.constant 0.000000e+00 : f32
        %c2_146 = arith.constant 2 : index
        %c3_147 = arith.constant 3 : index
        %193 = memref.load %arg12[%c2_146, %c3_147] : memref<3x8xf32, #tpu.memory_space<smem>>
        memref.store %cst_145, %arg12[%c2_146, %c3_147] : memref<3x8xf32, #tpu.memory_space<smem>>
        %cst_148 = arith.constant 0.000000e+00 : f32
        %c2_149 = arith.constant 2 : index
        %c4_150 = arith.constant 4 : index
        %194 = memref.load %arg12[%c2_149, %c4_150] : memref<3x8xf32, #tpu.memory_space<smem>>
        memref.store %cst_148, %arg12[%c2_149, %c4_150] : memref<3x8xf32, #tpu.memory_space<smem>>
        %c0_i32_151 = arith.constant 0 : i32
        %c2_152 = arith.constant 2 : index
        %195 = memref.load %arg13[%c2_152] : memref<3xi32, #tpu.memory_space<smem>>
        memref.store %c0_i32_151, %arg13[%c2_152] : memref<3xi32, #tpu.memory_space<smem>>
        %cst_153 = arith.constant 0.000000e+00 : f32
        %c0_154 = arith.constant 0 : index
        %196 = memref.load %arg14[%c0_154] : memref<8xf32, #tpu.memory_space<smem>>
        memref.store %cst_153, %arg14[%c0_154] : memref<8xf32, #tpu.memory_space<smem>>
        %cst_155 = arith.constant 0.000000e+00 : f32
        %c1_156 = arith.constant 1 : index
        %197 = memref.load %arg14[%c1_156] : memref<8xf32, #tpu.memory_space<smem>>
        memref.store %cst_155, %arg14[%c1_156] : memref<8xf32, #tpu.memory_space<smem>>
      } else {
      }
      %c0_14 = arith.constant 0 : index
      %c0_15 = arith.constant 0 : index
      %c0_16 = arith.constant 0 : index
      %c0_17 = arith.constant 0 : index
      %17 = vector.load %arg4[%c0_14, %c0_15, %c0_16, %c0_17] : memref<1x1x2x128xf32, #tpu.memory_space<vmem>>, vector<1x1x2x128xf32>
      %18 = vector.shape_cast %17 : vector<1x1x2x128xf32> to vector<2x128xf32>
      %c1_i32_18 = arith.constant 1 : i32
      %19 = vector.broadcast %c1_i32_18 : i32 to vector<2x128xi32>
      %20 = arith.cmpi eq, %5, %19 : vector<2x128xi32>
      %21 = arith.extui %20 : vector<2x128xi1> to vector<2x128xi32>
      %22 = arith.sitofp %21 : vector<2x128xi32> to vector<2x128xf32>
      %c0_19 = arith.constant 0 : index
      %c0_20 = arith.constant 0 : index
      %23 = memref.load %arg12[%c0_19, %c0_20] : memref<3x8xf32, #tpu.memory_space<smem>>
      %24 = vector.shape_cast %22 : vector<2x128xf32> to vector<1x2x128xf32>
      %cst = arith.constant dense<0.000000e+00> : vector<1xf32>
      %25 = vector.multi_reduction <add>, %24, %cst [1, 2] : vector<1x2x128xf32> to vector<1xf32>
      %26 = vector.shape_cast %25 : vector<1xf32> to vector<1x1x1xf32>
      %27 = vector.extract %26[0, 0, 0] : f32 from vector<1x1x1xf32>
      %28 = arith.addf %23, %27 : f32
      %c0_21 = arith.constant 0 : index
      %c0_22 = arith.constant 0 : index
      %29 = memref.load %arg12[%c0_21, %c0_22] : memref<3x8xf32, #tpu.memory_space<smem>>
      memref.store %28, %arg12[%c0_21, %c0_22] : memref<3x8xf32, #tpu.memory_space<smem>>
      %c0_23 = arith.constant 0 : index
      %c1_24 = arith.constant 1 : index
      %30 = memref.load %arg12[%c0_23, %c1_24] : memref<3x8xf32, #tpu.memory_space<smem>>
      %31 = arith.mulf %1, %22 : vector<2x128xf32>
      %32 = vector.shape_cast %31 : vector<2x128xf32> to vector<1x2x128xf32>
      %cst_25 = arith.constant dense<0.000000e+00> : vector<1xf32>
      %33 = vector.multi_reduction <add>, %32, %cst_25 [1, 2] : vector<1x2x128xf32> to vector<1xf32>
      %34 = vector.shape_cast %33 : vector<1xf32> to vector<1x1x1xf32>
      %35 = vector.extract %34[0, 0, 0] : f32 from vector<1x1x1xf32>
      %36 = arith.addf %30, %35 : f32
      %c0_26 = arith.constant 0 : index
      %c1_27 = arith.constant 1 : index
      %37 = memref.load %arg12[%c0_26, %c1_27] : memref<3x8xf32, #tpu.memory_space<smem>>
      memref.store %36, %arg12[%c0_26, %c1_27] : memref<3x8xf32, #tpu.memory_space<smem>>
      %c0_28 = arith.constant 0 : index
      %c2 = arith.constant 2 : index
      %38 = memref.load %arg12[%c0_28, %c2] : memref<3x8xf32, #tpu.memory_space<smem>>
      %39 = arith.mulf %3, %22 : vector<2x128xf32>
      %40 = vector.shape_cast %39 : vector<2x128xf32> to vector<1x2x128xf32>
      %cst_29 = arith.constant dense<0.000000e+00> : vector<1xf32>
      %41 = vector.multi_reduction <add>, %40, %cst_29 [1, 2] : vector<1x2x128xf32> to vector<1xf32>
      %42 = vector.shape_cast %41 : vector<1xf32> to vector<1x1x1xf32>
      %43 = vector.extract %42[0, 0, 0] : f32 from vector<1x1x1xf32>
      %44 = arith.addf %38, %43 : f32
      %c0_30 = arith.constant 0 : index
      %c2_31 = arith.constant 2 : index
      %45 = memref.load %arg12[%c0_30, %c2_31] : memref<3x8xf32, #tpu.memory_space<smem>>
      memref.store %44, %arg12[%c0_30, %c2_31] : memref<3x8xf32, #tpu.memory_space<smem>>
      %c0_32 = arith.constant 0 : index
      %c3 = arith.constant 3 : index
      %46 = memref.load %arg12[%c0_32, %c3] : memref<3x8xf32, #tpu.memory_space<smem>>
      %47 = arith.mulf %18, %22 : vector<2x128xf32>
      %48 = vector.shape_cast %47 : vector<2x128xf32> to vector<1x2x128xf32>
      %cst_33 = arith.constant dense<0.000000e+00> : vector<1xf32>
      %49 = vector.multi_reduction <add>, %48, %cst_33 [1, 2] : vector<1x2x128xf32> to vector<1xf32>
      %50 = vector.shape_cast %49 : vector<1xf32> to vector<1x1x1xf32>
      %51 = vector.extract %50[0, 0, 0] : f32 from vector<1x1x1xf32>
      %52 = arith.addf %46, %51 : f32
      %c0_34 = arith.constant 0 : index
      %c3_35 = arith.constant 3 : index
      %53 = memref.load %arg12[%c0_34, %c3_35] : memref<3x8xf32, #tpu.memory_space<smem>>
      memref.store %52, %arg12[%c0_34, %c3_35] : memref<3x8xf32, #tpu.memory_space<smem>>
      %c0_36 = arith.constant 0 : index
      %c4 = arith.constant 4 : index
      %54 = memref.load %arg12[%c0_36, %c4] : memref<3x8xf32, #tpu.memory_space<smem>>
      %55 = arith.mulf %18, %18 : vector<2x128xf32>
      %56 = arith.mulf %55, %22 : vector<2x128xf32>
      %57 = vector.shape_cast %56 : vector<2x128xf32> to vector<1x2x128xf32>
      %cst_37 = arith.constant dense<0.000000e+00> : vector<1xf32>
      %58 = vector.multi_reduction <add>, %57, %cst_37 [1, 2] : vector<1x2x128xf32> to vector<1xf32>
      %59 = vector.shape_cast %58 : vector<1xf32> to vector<1x1x1xf32>
      %60 = vector.extract %59[0, 0, 0] : f32 from vector<1x1x1xf32>
      %61 = arith.addf %54, %60 : f32
      %c0_38 = arith.constant 0 : index
      %c4_39 = arith.constant 4 : index
      %62 = memref.load %arg12[%c0_38, %c4_39] : memref<3x8xf32, #tpu.memory_space<smem>>
      memref.store %61, %arg12[%c0_38, %c4_39] : memref<3x8xf32, #tpu.memory_space<smem>>
      %c0_40 = arith.constant 0 : index
      %63 = memref.load %arg13[%c0_40] : memref<3xi32, #tpu.memory_space<smem>>
      %c0_i32_41 = arith.constant 0 : i32
      %64 = vector.broadcast %c0_i32_41 : i32 to vector<2x128xi32>
      %65 = arith.select %20, %7, %64 : vector<2x128xi1>, vector<2x128xi32>
      %66 = vector.shape_cast %65 : vector<2x128xi32> to vector<1x2x128xi32>
      %cst_42 = arith.constant dense<-2147483648> : vector<1xi32>
      %67 = vector.multi_reduction <maxsi>, %66, %cst_42 [1, 2] : vector<1x2x128xi32> to vector<1xi32>
      %68 = vector.shape_cast %67 : vector<1xi32> to vector<1x1x1xi32>
      %69 = vector.extract %68[0, 0, 0] : i32 from vector<1x1x1xi32>
      %70 = arith.maxsi %63, %69 : i32
      %c0_43 = arith.constant 0 : index
      %71 = memref.load %arg13[%c0_43] : memref<3xi32, #tpu.memory_space<smem>>
      memref.store %70, %arg13[%c0_43] : memref<3xi32, #tpu.memory_space<smem>>
      %c2_i32 = arith.constant 2 : i32
      %72 = vector.broadcast %c2_i32 : i32 to vector<2x128xi32>
      %73 = arith.cmpi eq, %5, %72 : vector<2x128xi32>
      %74 = arith.extui %73 : vector<2x128xi1> to vector<2x128xi32>
      %75 = arith.sitofp %74 : vector<2x128xi32> to vector<2x128xf32>
      %c1_44 = arith.constant 1 : index
      %c0_45 = arith.constant 0 : index
      %76 = memref.load %arg12[%c1_44, %c0_45] : memref<3x8xf32, #tpu.memory_space<smem>>
      %77 = vector.shape_cast %75 : vector<2x128xf32> to vector<1x2x128xf32>
      %cst_46 = arith.constant dense<0.000000e+00> : vector<1xf32>
      %78 = vector.multi_reduction <add>, %77, %cst_46 [1, 2] : vector<1x2x128xf32> to vector<1xf32>
      %79 = vector.shape_cast %78 : vector<1xf32> to vector<1x1x1xf32>
      %80 = vector.extract %79[0, 0, 0] : f32 from vector<1x1x1xf32>
      %81 = arith.addf %76, %80 : f32
      %c1_47 = arith.constant 1 : index
      %c0_48 = arith.constant 0 : index
      %82 = memref.load %arg12[%c1_47, %c0_48] : memref<3x8xf32, #tpu.memory_space<smem>>
      memref.store %81, %arg12[%c1_47, %c0_48] : memref<3x8xf32, #tpu.memory_space<smem>>
      %c1_49 = arith.constant 1 : index
      %c1_50 = arith.constant 1 : index
      %83 = memref.load %arg12[%c1_49, %c1_50] : memref<3x8xf32, #tpu.memory_space<smem>>
      %84 = arith.mulf %1, %75 : vector<2x128xf32>
      %85 = vector.shape_cast %84 : vector<2x128xf32> to vector<1x2x128xf32>
      %cst_51 = arith.constant dense<0.000000e+00> : vector<1xf32>
      %86 = vector.multi_reduction <add>, %85, %cst_51 [1, 2] : vector<1x2x128xf32> to vector<1xf32>
      %87 = vector.shape_cast %86 : vector<1xf32> to vector<1x1x1xf32>
      %88 = vector.extract %87[0, 0, 0] : f32 from vector<1x1x1xf32>
      %89 = arith.addf %83, %88 : f32
      %c1_52 = arith.constant 1 : index
      %c1_53 = arith.constant 1 : index
      %90 = memref.load %arg12[%c1_52, %c1_53] : memref<3x8xf32, #tpu.memory_space<smem>>
      memref.store %89, %arg12[%c1_52, %c1_53] : memref<3x8xf32, #tpu.memory_space<smem>>
      %c1_54 = arith.constant 1 : index
      %c2_55 = arith.constant 2 : index
      %91 = memref.load %arg12[%c1_54, %c2_55] : memref<3x8xf32, #tpu.memory_space<smem>>
      %92 = arith.mulf %3, %75 : vector<2x128xf32>
      %93 = vector.shape_cast %92 : vector<2x128xf32> to vector<1x2x128xf32>
      %cst_56 = arith.constant dense<0.000000e+00> : vector<1xf32>
      %94 = vector.multi_reduction <add>, %93, %cst_56 [1, 2] : vector<1x2x128xf32> to vector<1xf32>
      %95 = vector.shape_cast %94 : vector<1xf32> to vector<1x1x1xf32>
      %96 = vector.extract %95[0, 0, 0] : f32 from vector<1x1x1xf32>
      %97 = arith.addf %91, %96 : f32
      %c1_57 = arith.constant 1 : index
      %c2_58 = arith.constant 2 : index
      %98 = memref.load %arg12[%c1_57, %c2_58] : memref<3x8xf32, #tpu.memory_space<smem>>
      memref.store %97, %arg12[%c1_57, %c2_58] : memref<3x8xf32, #tpu.memory_space<smem>>
      %c1_59 = arith.constant 1 : index
      %c3_60 = arith.constant 3 : index
      %99 = memref.load %arg12[%c1_59, %c3_60] : memref<3x8xf32, #tpu.memory_space<smem>>
      %100 = arith.mulf %18, %75 : vector<2x128xf32>
      %101 = vector.shape_cast %100 : vector<2x128xf32> to vector<1x2x128xf32>
      %cst_61 = arith.constant dense<0.000000e+00> : vector<1xf32>
      %102 = vector.multi_reduction <add>, %101, %cst_61 [1, 2] : vector<1x2x128xf32> to vector<1xf32>
      %103 = vector.shape_cast %102 : vector<1xf32> to vector<1x1x1xf32>
      %104 = vector.extract %103[0, 0, 0] : f32 from vector<1x1x1xf32>
      %105 = arith.addf %99, %104 : f32
      %c1_62 = arith.constant 1 : index
      %c3_63 = arith.constant 3 : index
      %106 = memref.load %arg12[%c1_62, %c3_63] : memref<3x8xf32, #tpu.memory_space<smem>>
      memref.store %105, %arg12[%c1_62, %c3_63] : memref<3x8xf32, #tpu.memory_space<smem>>
      %c1_64 = arith.constant 1 : index
      %c4_65 = arith.constant 4 : index
      %107 = memref.load %arg12[%c1_64, %c4_65] : memref<3x8xf32, #tpu.memory_space<smem>>
      %108 = arith.mulf %18, %18 : vector<2x128xf32>
      %109 = arith.mulf %108, %75 : vector<2x128xf32>
      %110 = vector.shape_cast %109 : vector<2x128xf32> to vector<1x2x128xf32>
      %cst_66 = arith.constant dense<0.000000e+00> : vector<1xf32>
      %111 = vector.multi_reduction <add>, %110, %cst_66 [1, 2] : vector<1x2x128xf32> to vector<1xf32>
      %112 = vector.shape_cast %111 : vector<1xf32> to vector<1x1x1xf32>
      %113 = vector.extract %112[0, 0, 0] : f32 from vector<1x1x1xf32>
      %114 = arith.addf %107, %113 : f32
      %c1_67 = arith.constant 1 : index
      %c4_68 = arith.constant 4 : index
      %115 = memref.load %arg12[%c1_67, %c4_68] : memref<3x8xf32, #tpu.memory_space<smem>>
      memref.store %114, %arg12[%c1_67, %c4_68] : memref<3x8xf32, #tpu.memory_space<smem>>
      %c1_69 = arith.constant 1 : index
      %116 = memref.load %arg13[%c1_69] : memref<3xi32, #tpu.memory_space<smem>>
      %c0_i32_70 = arith.constant 0 : i32
      %117 = vector.broadcast %c0_i32_70 : i32 to vector<2x128xi32>
      %118 = arith.select %73, %7, %117 : vector<2x128xi1>, vector<2x128xi32>
      %119 = vector.shape_cast %118 : vector<2x128xi32> to vector<1x2x128xi32>
      %cst_71 = arith.constant dense<-2147483648> : vector<1xi32>
      %120 = vector.multi_reduction <maxsi>, %119, %cst_71 [1, 2] : vector<1x2x128xi32> to vector<1xi32>
      %121 = vector.shape_cast %120 : vector<1xi32> to vector<1x1x1xi32>
      %122 = vector.extract %121[0, 0, 0] : i32 from vector<1x1x1xi32>
      %123 = arith.maxsi %116, %122 : i32
      %c1_72 = arith.constant 1 : index
      %124 = memref.load %arg13[%c1_72] : memref<3xi32, #tpu.memory_space<smem>>
      memref.store %123, %arg13[%c1_72] : memref<3xi32, #tpu.memory_space<smem>>
      %c3_i32 = arith.constant 3 : i32
      %125 = vector.broadcast %c3_i32 : i32 to vector<2x128xi32>
      %126 = arith.cmpi eq, %5, %125 : vector<2x128xi32>
      %127 = arith.extui %126 : vector<2x128xi1> to vector<2x128xi32>
      %128 = arith.sitofp %127 : vector<2x128xi32> to vector<2x128xf32>
      %c2_73 = arith.constant 2 : index
      %c0_74 = arith.constant 0 : index
      %129 = memref.load %arg12[%c2_73, %c0_74] : memref<3x8xf32, #tpu.memory_space<smem>>
      %130 = vector.shape_cast %128 : vector<2x128xf32> to vector<1x2x128xf32>
      %cst_75 = arith.constant dense<0.000000e+00> : vector<1xf32>
      %131 = vector.multi_reduction <add>, %130, %cst_75 [1, 2] : vector<1x2x128xf32> to vector<1xf32>
      %132 = vector.shape_cast %131 : vector<1xf32> to vector<1x1x1xf32>
      %133 = vector.extract %132[0, 0, 0] : f32 from vector<1x1x1xf32>
      %134 = arith.addf %129, %133 : f32
      %c2_76 = arith.constant 2 : index
      %c0_77 = arith.constant 0 : index
      %135 = memref.load %arg12[%c2_76, %c0_77] : memref<3x8xf32, #tpu.memory_space<smem>>
      memref.store %134, %arg12[%c2_76, %c0_77] : memref<3x8xf32, #tpu.memory_space<smem>>
      %c2_78 = arith.constant 2 : index
      %c1_79 = arith.constant 1 : index
      %136 = memref.load %arg12[%c2_78, %c1_79] : memref<3x8xf32, #tpu.memory_space<smem>>
      %137 = arith.mulf %1, %128 : vector<2x128xf32>
      %138 = vector.shape_cast %137 : vector<2x128xf32> to vector<1x2x128xf32>
      %cst_80 = arith.constant dense<0.000000e+00> : vector<1xf32>
      %139 = vector.multi_reduction <add>, %138, %cst_80 [1, 2] : vector<1x2x128xf32> to vector<1xf32>
      %140 = vector.shape_cast %139 : vector<1xf32> to vector<1x1x1xf32>
      %141 = vector.extract %140[0, 0, 0] : f32 from vector<1x1x1xf32>
      %142 = arith.addf %136, %141 : f32
      %c2_81 = arith.constant 2 : index
      %c1_82 = arith.constant 1 : index
      %143 = memref.load %arg12[%c2_81, %c1_82] : memref<3x8xf32, #tpu.memory_space<smem>>
      memref.store %142, %arg12[%c2_81, %c1_82] : memref<3x8xf32, #tpu.memory_space<smem>>
      %c2_83 = arith.constant 2 : index
      %c2_84 = arith.constant 2 : index
      %144 = memref.load %arg12[%c2_83, %c2_84] : memref<3x8xf32, #tpu.memory_space<smem>>
      %145 = arith.mulf %3, %128 : vector<2x128xf32>
      %146 = vector.shape_cast %145 : vector<2x128xf32> to vector<1x2x128xf32>
      %cst_85 = arith.constant dense<0.000000e+00> : vector<1xf32>
      %147 = vector.multi_reduction <add>, %146, %cst_85 [1, 2] : vector<1x2x128xf32> to vector<1xf32>
      %148 = vector.shape_cast %147 : vector<1xf32> to vector<1x1x1xf32>
      %149 = vector.extract %148[0, 0, 0] : f32 from vector<1x1x1xf32>
      %150 = arith.addf %144, %149 : f32
      %c2_86 = arith.constant 2 : index
      %c2_87 = arith.constant 2 : index
      %151 = memref.load %arg12[%c2_86, %c2_87] : memref<3x8xf32, #tpu.memory_space<smem>>
      memref.store %150, %arg12[%c2_86, %c2_87] : memref<3x8xf32, #tpu.memory_space<smem>>
      %c2_88 = arith.constant 2 : index
      %c3_89 = arith.constant 3 : index
      %152 = memref.load %arg12[%c2_88, %c3_89] : memref<3x8xf32, #tpu.memory_space<smem>>
      %153 = arith.mulf %18, %128 : vector<2x128xf32>
      %154 = vector.shape_cast %153 : vector<2x128xf32> to vector<1x2x128xf32>
      %cst_90 = arith.constant dense<0.000000e+00> : vector<1xf32>
      %155 = vector.multi_reduction <add>, %154, %cst_90 [1, 2] : vector<1x2x128xf32> to vector<1xf32>
      %156 = vector.shape_cast %155 : vector<1xf32> to vector<1x1x1xf32>
      %157 = vector.extract %156[0, 0, 0] : f32 from vector<1x1x1xf32>
      %158 = arith.addf %152, %157 : f32
      %c2_91 = arith.constant 2 : index
      %c3_92 = arith.constant 3 : index
      %159 = memref.load %arg12[%c2_91, %c3_92] : memref<3x8xf32, #tpu.memory_space<smem>>
      memref.store %158, %arg12[%c2_91, %c3_92] : memref<3x8xf32, #tpu.memory_space<smem>>
      %c2_93 = arith.constant 2 : index
      %c4_94 = arith.constant 4 : index
      %160 = memref.load %arg12[%c2_93, %c4_94] : memref<3x8xf32, #tpu.memory_space<smem>>
      %161 = arith.mulf %18, %18 : vector<2x128xf32>
      %162 = arith.mulf %161, %128 : vector<2x128xf32>
      %163 = vector.shape_cast %162 : vector<2x128xf32> to vector<1x2x128xf32>
      %cst_95 = arith.constant dense<0.000000e+00> : vector<1xf32>
      %164 = vector.multi_reduction <add>, %163, %cst_95 [1, 2] : vector<1x2x128xf32> to vector<1xf32>
      %165 = vector.shape_cast %164 : vector<1xf32> to vector<1x1x1xf32>
      %166 = vector.extract %165[0, 0, 0] : f32 from vector<1x1x1xf32>
      %167 = arith.addf %160, %166 : f32
      %c2_96 = arith.constant 2 : index
      %c4_97 = arith.constant 4 : index
      %168 = memref.load %arg12[%c2_96, %c4_97] : memref<3x8xf32, #tpu.memory_space<smem>>
      memref.store %167, %arg12[%c2_96, %c4_97] : memref<3x8xf32, #tpu.memory_space<smem>>
      %c2_98 = arith.constant 2 : index
      %169 = memref.load %arg13[%c2_98] : memref<3xi32, #tpu.memory_space<smem>>
      %c0_i32_99 = arith.constant 0 : i32
      %170 = vector.broadcast %c0_i32_99 : i32 to vector<2x128xi32>
      %171 = arith.select %126, %7, %170 : vector<2x128xi1>, vector<2x128xi32>
      %172 = vector.shape_cast %171 : vector<2x128xi32> to vector<1x2x128xi32>
      %cst_100 = arith.constant dense<-2147483648> : vector<1xi32>
      %173 = vector.multi_reduction <maxsi>, %172, %cst_100 [1, 2] : vector<1x2x128xi32> to vector<1xi32>
      %174 = vector.shape_cast %173 : vector<1xi32> to vector<1x1x1xi32>
      %175 = vector.extract %174[0, 0, 0] : i32 from vector<1x1x1xi32>
      %176 = arith.maxsi %169, %175 : i32
      %c2_101 = arith.constant 2 : index
      %177 = memref.load %arg13[%c2_101] : memref<3xi32, #tpu.memory_space<smem>>
      memref.store %176, %arg13[%c2_101] : memref<3xi32, #tpu.memory_space<smem>>
    } else {
    }
    %c1_i32 = arith.constant 1 : i32
    %11 = arith.cmpi eq, %arg1, %c1_i32 : i32
    %12 = arith.extui %11 : i1 to i32
    %c0_i32_11 = arith.constant 0 : i32
    %13 = arith.cmpi ne, %12, %c0_i32_11 : i32
    scf.if %13 {
      %c0_12 = arith.constant 0 : index
      %c3 = arith.constant 3 : index
      %c0_13 = arith.constant 0 : index
      %c0_14 = arith.constant 0 : index
      %14 = vector.load %arg3[%c0_12, %c3, %c0_13, %c0_14] : memref<1x11x2x128xf32, #tpu.memory_space<vmem>>, vector<1x1x2x128xf32>
      %15 = vector.shape_cast %14 : vector<1x1x2x128xf32> to vector<2x128xf32>
      %16 = arith.negf %15 : vector<2x128xf32>
      %17 = math.exp %16 : vector<2x128xf32>
      %cst = arith.constant 1.000000e+00 : f32
      %18 = vector.broadcast %cst : f32 to vector<2x128xf32>
      %19 = arith.addf %18, %17 : vector<2x128xf32>
      %20 = arith.divf %18, %19 : vector<2x128xf32>
      %c0_15 = arith.constant 0 : index
      %c0_16 = arith.constant 0 : index
      %c0_17 = arith.constant 0 : index
      %21 = vector.load %arg11[%c0_15, %c0_16, %c0_17] : memref<8x2x128xf32, #tpu.memory_space<vmem>>, vector<1x2x128xf32>
      %22 = vector.shape_cast %21 : vector<1x2x128xf32> to vector<2x128xf32>
      %23 = vector.shape_cast %20 : vector<2x128xf32> to vector<1x2x128xf32>
      tpu.vector_store %arg11[%c0_15, %c0_16, %c0_17], %23 {strides = array<i32>} : memref<8x2x128xf32, #tpu.memory_space<vmem>>, vector<1x2x128xf32>,
      %24 = arith.mulf %20, %20 : vector<2x128xf32>
      %25 = vector.shape_cast %24 : vector<2x128xf32> to vector<1x2x128xf32>
      %cst_18 = arith.constant dense<0.000000e+00> : vector<1xf32>
      %26 = vector.multi_reduction <add>, %25, %cst_18 [1, 2] : vector<1x2x128xf32> to vector<1xf32>
      %27 = vector.shape_cast %26 : vector<1xf32> to vector<1x1x1xf32>
      %28 = vector.extract %27[0, 0, 0] : f32 from vector<1x1x1xf32>
      %c1_i32_19 = arith.constant 1 : i32
      %29 = vector.broadcast %c1_i32_19 : i32 to vector<2x128xi32>
      %30 = arith.cmpi eq, %7, %29 : vector<2x128xi32>
      %cst_20 = arith.constant 0.000000e+00 : f32
      %31 = vector.broadcast %cst_20 : f32 to vector<2x128xf32>
      %32 = arith.select %30, %24, %31 : vector<2x128xi1>, vector<2x128xf32>
      %33 = vector.shape_cast %32 : vector<2x128xf32> to vector<1x2x128xf32>
      %cst_21 = arith.constant dense<0.000000e+00> : vector<1xf32>
      %34 = vector.multi_reduction <add>, %33, %cst_21 [1, 2] : vector<1x2x128xf32> to vector<1xf32>
      %35 = vector.shape_cast %34 : vector<1xf32> to vector<1x1x1xf32>
      %36 = vector.extract %35[0, 0, 0] : f32 from vector<1x1x1xf32>
      %37 = arith.subf %28, %36 : f32
      %cst_22 = arith.constant 0.000000e+00 : f32
      %38 = arith.addf %cst_22, %37 : f32
      %c0_23 = arith.constant 0 : index
      %c4 = arith.constant 4 : index
      %c0_24 = arith.constant 0 : index
      %c0_25 = arith.constant 0 : index
      %39 = vector.load %arg3[%c0_23, %c4, %c0_24, %c0_25] : memref<1x11x2x128xf32, #tpu.memory_space<vmem>>, vector<1x1x2x128xf32>
      %40 = vector.shape_cast %39 : vector<1x1x2x128xf32> to vector<2x128xf32>
      %41 = arith.negf %40 : vector<2x128xf32>
      %42 = math.exp %41 : vector<2x128xf32>
      %cst_26 = arith.constant 1.000000e+00 : f32
      %43 = vector.broadcast %cst_26 : f32 to vector<2x128xf32>
      %44 = arith.addf %43, %42 : vector<2x128xf32>
      %45 = arith.divf %43, %44 : vector<2x128xf32>
      %c1_27 = arith.constant 1 : index
      %c0_28 = arith.constant 0 : index
      %c0_29 = arith.constant 0 : index
      %46 = vector.load %arg11[%c1_27, %c0_28, %c0_29] : memref<8x2x128xf32, #tpu.memory_space<vmem>>, vector<1x2x128xf32>
      %47 = vector.shape_cast %46 : vector<1x2x128xf32> to vector<2x128xf32>
      %48 = vector.shape_cast %45 : vector<2x128xf32> to vector<1x2x128xf32>
      tpu.vector_store %arg11[%c1_27, %c0_28, %c0_29], %48 {strides = array<i32>} : memref<8x2x128xf32, #tpu.memory_space<vmem>>, vector<1x2x128xf32>,
      %49 = arith.mulf %45, %45 : vector<2x128xf32>
      %50 = vector.shape_cast %49 : vector<2x128xf32> to vector<1x2x128xf32>
      %cst_30 = arith.constant dense<0.000000e+00> : vector<1xf32>
      %51 = vector.multi_reduction <add>, %50, %cst_30 [1, 2] : vector<1x2x128xf32> to vector<1xf32>
      %52 = vector.shape_cast %51 : vector<1xf32> to vector<1x1x1xf32>
      %53 = vector.extract %52[0, 0, 0] : f32 from vector<1x1x1xf32>
      %c2_i32 = arith.constant 2 : i32
      %54 = vector.broadcast %c2_i32 : i32 to vector<2x128xi32>
      %55 = arith.cmpi eq, %7, %54 : vector<2x128xi32>
      %cst_31 = arith.constant 0.000000e+00 : f32
      %56 = vector.broadcast %cst_31 : f32 to vector<2x128xf32>
      %57 = arith.select %55, %49, %56 : vector<2x128xi1>, vector<2x128xf32>
      %58 = vector.shape_cast %57 : vector<2x128xf32> to vector<1x2x128xf32>
      %cst_32 = arith.constant dense<0.000000e+00> : vector<1xf32>
      %59 = vector.multi_reduction <add>, %58, %cst_32 [1, 2] : vector<1x2x128xf32> to vector<1xf32>
      %60 = vector.shape_cast %59 : vector<1xf32> to vector<1x1x1xf32>
      %61 = vector.extract %60[0, 0, 0] : f32 from vector<1x1x1xf32>
      %62 = arith.subf %53, %61 : f32
      %63 = arith.addf %38, %62 : f32
      %c0_33 = arith.constant 0 : index
      %c5 = arith.constant 5 : index
      %c0_34 = arith.constant 0 : index
      %c0_35 = arith.constant 0 : index
      %64 = vector.load %arg3[%c0_33, %c5, %c0_34, %c0_35] : memref<1x11x2x128xf32, #tpu.memory_space<vmem>>, vector<1x1x2x128xf32>
      %65 = vector.shape_cast %64 : vector<1x1x2x128xf32> to vector<2x128xf32>
      %66 = arith.negf %65 : vector<2x128xf32>
      %67 = math.exp %66 : vector<2x128xf32>
      %cst_36 = arith.constant 1.000000e+00 : f32
      %68 = vector.broadcast %cst_36 : f32 to vector<2x128xf32>
      %69 = arith.addf %68, %67 : vector<2x128xf32>
      %70 = arith.divf %68, %69 : vector<2x128xf32>
      %c2 = arith.constant 2 : index
      %c0_37 = arith.constant 0 : index
      %c0_38 = arith.constant 0 : index
      %71 = vector.load %arg11[%c2, %c0_37, %c0_38] : memref<8x2x128xf32, #tpu.memory_space<vmem>>, vector<1x2x128xf32>
      %72 = vector.shape_cast %71 : vector<1x2x128xf32> to vector<2x128xf32>
      %73 = vector.shape_cast %70 : vector<2x128xf32> to vector<1x2x128xf32>
      tpu.vector_store %arg11[%c2, %c0_37, %c0_38], %73 {strides = array<i32>} : memref<8x2x128xf32, #tpu.memory_space<vmem>>, vector<1x2x128xf32>,
      %74 = arith.mulf %70, %70 : vector<2x128xf32>
      %75 = vector.shape_cast %74 : vector<2x128xf32> to vector<1x2x128xf32>
      %cst_39 = arith.constant dense<0.000000e+00> : vector<1xf32>
      %76 = vector.multi_reduction <add>, %75, %cst_39 [1, 2] : vector<1x2x128xf32> to vector<1xf32>
      %77 = vector.shape_cast %76 : vector<1xf32> to vector<1x1x1xf32>
      %78 = vector.extract %77[0, 0, 0] : f32 from vector<1x1x1xf32>
      %c3_i32 = arith.constant 3 : i32
      %79 = vector.broadcast %c3_i32 : i32 to vector<2x128xi32>
      %80 = arith.cmpi eq, %7, %79 : vector<2x128xi32>
      %cst_40 = arith.constant 0.000000e+00 : f32
      %81 = vector.broadcast %cst_40 : f32 to vector<2x128xf32>
      %82 = arith.select %80, %74, %81 : vector<2x128xi1>, vector<2x128xf32>
      %83 = vector.shape_cast %82 : vector<2x128xf32> to vector<1x2x128xf32>
      %cst_41 = arith.constant dense<0.000000e+00> : vector<1xf32>
      %84 = vector.multi_reduction <add>, %83, %cst_41 [1, 2] : vector<1x2x128xf32> to vector<1xf32>
      %85 = vector.shape_cast %84 : vector<1xf32> to vector<1x1x1xf32>
      %86 = vector.extract %85[0, 0, 0] : f32 from vector<1x1x1xf32>
      %87 = arith.subf %78, %86 : f32
      %88 = arith.addf %63, %87 : f32
      %c0_42 = arith.constant 0 : index
      %c6 = arith.constant 6 : index
      %c0_43 = arith.constant 0 : index
      %c0_44 = arith.constant 0 : index
      %89 = vector.load %arg3[%c0_42, %c6, %c0_43, %c0_44] : memref<1x11x2x128xf32, #tpu.memory_space<vmem>>, vector<1x1x2x128xf32>
      %90 = vector.shape_cast %89 : vector<1x1x2x128xf32> to vector<2x128xf32>
      %91 = arith.negf %90 : vector<2x128xf32>
      %92 = math.exp %91 : vector<2x128xf32>
      %cst_45 = arith.constant 1.000000e+00 : f32
      %93 = vector.broadcast %cst_45 : f32 to vector<2x128xf32>
      %94 = arith.addf %93, %92 : vector<2x128xf32>
      %95 = arith.divf %93, %94 : vector<2x128xf32>
      %c3_46 = arith.constant 3 : index
      %c0_47 = arith.constant 0 : index
      %c0_48 = arith.constant 0 : index
      %96 = vector.load %arg11[%c3_46, %c0_47, %c0_48] : memref<8x2x128xf32, #tpu.memory_space<vmem>>, vector<1x2x128xf32>
      %97 = vector.shape_cast %96 : vector<1x2x128xf32> to vector<2x128xf32>
      %98 = vector.shape_cast %95 : vector<2x128xf32> to vector<1x2x128xf32>
      tpu.vector_store %arg11[%c3_46, %c0_47, %c0_48], %98 {strides = array<i32>} : memref<8x2x128xf32, #tpu.memory_space<vmem>>, vector<1x2x128xf32>,
      %99 = arith.mulf %95, %95 : vector<2x128xf32>
      %100 = vector.shape_cast %99 : vector<2x128xf32> to vector<1x2x128xf32>
      %cst_49 = arith.constant dense<0.000000e+00> : vector<1xf32>
      %101 = vector.multi_reduction <add>, %100, %cst_49 [1, 2] : vector<1x2x128xf32> to vector<1xf32>
      %102 = vector.shape_cast %101 : vector<1xf32> to vector<1x1x1xf32>
      %103 = vector.extract %102[0, 0, 0] : f32 from vector<1x1x1xf32>
      %c4_i32 = arith.constant 4 : i32
      %104 = vector.broadcast %c4_i32 : i32 to vector<2x128xi32>
      %105 = arith.cmpi eq, %7, %104 : vector<2x128xi32>
      %cst_50 = arith.constant 0.000000e+00 : f32
      %106 = vector.broadcast %cst_50 : f32 to vector<2x128xf32>
      %107 = arith.select %105, %99, %106 : vector<2x128xi1>, vector<2x128xf32>
      %108 = vector.shape_cast %107 : vector<2x128xf32> to vector<1x2x128xf32>
      %cst_51 = arith.constant dense<0.000000e+00> : vector<1xf32>
      %109 = vector.multi_reduction <add>, %108, %cst_51 [1, 2] : vector<1x2x128xf32> to vector<1xf32>
      %110 = vector.shape_cast %109 : vector<1xf32> to vector<1x1x1xf32>
      %111 = vector.extract %110[0, 0, 0] : f32 from vector<1x1x1xf32>
      %112 = arith.subf %103, %111 : f32
      %113 = arith.addf %88, %112 : f32
      %c0_52 = arith.constant 0 : index
      %c7 = arith.constant 7 : index
      %c0_53 = arith.constant 0 : index
      %c0_54 = arith.constant 0 : index
      %114 = vector.load %arg3[%c0_52, %c7, %c0_53, %c0_54] : memref<1x11x2x128xf32, #tpu.memory_space<vmem>>, vector<1x1x2x128xf32>
      %115 = vector.shape_cast %114 : vector<1x1x2x128xf32> to vector<2x128xf32>
      %116 = arith.negf %115 : vector<2x128xf32>
      %117 = math.exp %116 : vector<2x128xf32>
      %cst_55 = arith.constant 1.000000e+00 : f32
      %118 = vector.broadcast %cst_55 : f32 to vector<2x128xf32>
      %119 = arith.addf %118, %117 : vector<2x128xf32>
      %120 = arith.divf %118, %119 : vector<2x128xf32>
      %c4_56 = arith.constant 4 : index
      %c0_57 = arith.constant 0 : index
      %c0_58 = arith.constant 0 : index
      %121 = vector.load %arg11[%c4_56, %c0_57, %c0_58] : memref<8x2x128xf32, #tpu.memory_space<vmem>>, vector<1x2x128xf32>
      %122 = vector.shape_cast %121 : vector<1x2x128xf32> to vector<2x128xf32>
      %123 = vector.shape_cast %120 : vector<2x128xf32> to vector<1x2x128xf32>
      tpu.vector_store %arg11[%c4_56, %c0_57, %c0_58], %123 {strides = array<i32>} : memref<8x2x128xf32, #tpu.memory_space<vmem>>, vector<1x2x128xf32>,
      %124 = arith.mulf %120, %120 : vector<2x128xf32>
      %125 = vector.shape_cast %124 : vector<2x128xf32> to vector<1x2x128xf32>
      %cst_59 = arith.constant dense<0.000000e+00> : vector<1xf32>
      %126 = vector.multi_reduction <add>, %125, %cst_59 [1, 2] : vector<1x2x128xf32> to vector<1xf32>
      %127 = vector.shape_cast %126 : vector<1xf32> to vector<1x1x1xf32>
      %128 = vector.extract %127[0, 0, 0] : f32 from vector<1x1x1xf32>
      %c5_i32 = arith.constant 5 : i32
      %129 = vector.broadcast %c5_i32 : i32 to vector<2x128xi32>
      %130 = arith.cmpi eq, %7, %129 : vector<2x128xi32>
      %cst_60 = arith.constant 0.000000e+00 : f32
      %131 = vector.broadcast %cst_60 : f32 to vector<2x128xf32>
      %132 = arith.select %130, %124, %131 : vector<2x128xi1>, vector<2x128xf32>
      %133 = vector.shape_cast %132 : vector<2x128xf32> to vector<1x2x128xf32>
      %cst_61 = arith.constant dense<0.000000e+00> : vector<1xf32>
      %134 = vector.multi_reduction <add>, %133, %cst_61 [1, 2] : vector<1x2x128xf32> to vector<1xf32>
      %135 = vector.shape_cast %134 : vector<1xf32> to vector<1x1x1xf32>
      %136 = vector.extract %135[0, 0, 0] : f32 from vector<1x1x1xf32>
      %137 = arith.subf %128, %136 : f32
      %138 = arith.addf %113, %137 : f32
      %c0_62 = arith.constant 0 : index
      %c8 = arith.constant 8 : index
      %c0_63 = arith.constant 0 : index
      %c0_64 = arith.constant 0 : index
      %139 = vector.load %arg3[%c0_62, %c8, %c0_63, %c0_64] : memref<1x11x2x128xf32, #tpu.memory_space<vmem>>, vector<1x1x2x128xf32>
      %140 = vector.shape_cast %139 : vector<1x1x2x128xf32> to vector<2x128xf32>
      %141 = arith.negf %140 : vector<2x128xf32>
      %142 = math.exp %141 : vector<2x128xf32>
      %cst_65 = arith.constant 1.000000e+00 : f32
      %143 = vector.broadcast %cst_65 : f32 to vector<2x128xf32>
      %144 = arith.addf %143, %142 : vector<2x128xf32>
      %145 = arith.divf %143, %144 : vector<2x128xf32>
      %c5_66 = arith.constant 5 : index
      %c0_67 = arith.constant 0 : index
      %c0_68 = arith.constant 0 : index
      %146 = vector.load %arg11[%c5_66, %c0_67, %c0_68] : memref<8x2x128xf32, #tpu.memory_space<vmem>>, vector<1x2x128xf32>
      %147 = vector.shape_cast %146 : vector<1x2x128xf32> to vector<2x128xf32>
      %148 = vector.shape_cast %145 : vector<2x128xf32> to vector<1x2x128xf32>
      tpu.vector_store %arg11[%c5_66, %c0_67, %c0_68], %148 {strides = array<i32>} : memref<8x2x128xf32, #tpu.memory_space<vmem>>, vector<1x2x128xf32>,
      %149 = arith.mulf %145, %145 : vector<2x128xf32>
      %150 = vector.shape_cast %149 : vector<2x128xf32> to vector<1x2x128xf32>
      %cst_69 = arith.constant dense<0.000000e+00> : vector<1xf32>
      %151 = vector.multi_reduction <add>, %150, %cst_69 [1, 2] : vector<1x2x128xf32> to vector<1xf32>
      %152 = vector.shape_cast %151 : vector<1xf32> to vector<1x1x1xf32>
      %153 = vector.extract %152[0, 0, 0] : f32 from vector<1x1x1xf32>
      %c6_i32 = arith.constant 6 : i32
      %154 = vector.broadcast %c6_i32 : i32 to vector<2x128xi32>
      %155 = arith.cmpi eq, %7, %154 : vector<2x128xi32>
      %cst_70 = arith.constant 0.000000e+00 : f32
      %156 = vector.broadcast %cst_70 : f32 to vector<2x128xf32>
      %157 = arith.select %155, %149, %156 : vector<2x128xi1>, vector<2x128xf32>
      %158 = vector.shape_cast %157 : vector<2x128xf32> to vector<1x2x128xf32>
      %cst_71 = arith.constant dense<0.000000e+00> : vector<1xf32>
      %159 = vector.multi_reduction <add>, %158, %cst_71 [1, 2] : vector<1x2x128xf32> to vector<1xf32>
      %160 = vector.shape_cast %159 : vector<1xf32> to vector<1x1x1xf32>
      %161 = vector.extract %160[0, 0, 0] : f32 from vector<1x1x1xf32>
      %162 = arith.subf %153, %161 : f32
      %163 = arith.addf %138, %162 : f32
      %c0_72 = arith.constant 0 : index
      %c9 = arith.constant 9 : index
      %c0_73 = arith.constant 0 : index
      %c0_74 = arith.constant 0 : index
      %164 = vector.load %arg3[%c0_72, %c9, %c0_73, %c0_74] : memref<1x11x2x128xf32, #tpu.memory_space<vmem>>, vector<1x1x2x128xf32>
      %165 = vector.shape_cast %164 : vector<1x1x2x128xf32> to vector<2x128xf32>
      %166 = arith.negf %165 : vector<2x128xf32>
      %167 = math.exp %166 : vector<2x128xf32>
      %cst_75 = arith.constant 1.000000e+00 : f32
      %168 = vector.broadcast %cst_75 : f32 to vector<2x128xf32>
      %169 = arith.addf %168, %167 : vector<2x128xf32>
      %170 = arith.divf %168, %169 : vector<2x128xf32>
      %c6_76 = arith.constant 6 : index
      %c0_77 = arith.constant 0 : index
      %c0_78 = arith.constant 0 : index
      %171 = vector.load %arg11[%c6_76, %c0_77, %c0_78] : memref<8x2x128xf32, #tpu.memory_space<vmem>>, vector<1x2x128xf32>
      %172 = vector.shape_cast %171 : vector<1x2x128xf32> to vector<2x128xf32>
      %173 = vector.shape_cast %170 : vector<2x128xf32> to vector<1x2x128xf32>
      tpu.vector_store %arg11[%c6_76, %c0_77, %c0_78], %173 {strides = array<i32>} : memref<8x2x128xf32, #tpu.memory_space<vmem>>, vector<1x2x128xf32>,
      %174 = arith.mulf %170, %170 : vector<2x128xf32>
      %175 = vector.shape_cast %174 : vector<2x128xf32> to vector<1x2x128xf32>
      %cst_79 = arith.constant dense<0.000000e+00> : vector<1xf32>
      %176 = vector.multi_reduction <add>, %175, %cst_79 [1, 2] : vector<1x2x128xf32> to vector<1xf32>
      %177 = vector.shape_cast %176 : vector<1xf32> to vector<1x1x1xf32>
      %178 = vector.extract %177[0, 0, 0] : f32 from vector<1x1x1xf32>
      %c7_i32 = arith.constant 7 : i32
      %179 = vector.broadcast %c7_i32 : i32 to vector<2x128xi32>
      %180 = arith.cmpi eq, %7, %179 : vector<2x128xi32>
      %cst_80 = arith.constant 0.000000e+00 : f32
      %181 = vector.broadcast %cst_80 : f32 to vector<2x128xf32>
      %182 = arith.select %180, %174, %181 : vector<2x128xi1>, vector<2x128xf32>
      %183 = vector.shape_cast %182 : vector<2x128xf32> to vector<1x2x128xf32>
      %cst_81 = arith.constant dense<0.000000e+00> : vector<1xf32>
      %184 = vector.multi_reduction <add>, %183, %cst_81 [1, 2] : vector<1x2x128xf32> to vector<1xf32>
      %185 = vector.shape_cast %184 : vector<1xf32> to vector<1x1x1xf32>
      %186 = vector.extract %185[0, 0, 0] : f32 from vector<1x1x1xf32>
      %187 = arith.subf %178, %186 : f32
      %188 = arith.addf %163, %187 : f32
      %c0_82 = arith.constant 0 : index
      %c10 = arith.constant 10 : index
      %c0_83 = arith.constant 0 : index
      %c0_84 = arith.constant 0 : index
      %189 = vector.load %arg3[%c0_82, %c10, %c0_83, %c0_84] : memref<1x11x2x128xf32, #tpu.memory_space<vmem>>, vector<1x1x2x128xf32>
      %190 = vector.shape_cast %189 : vector<1x1x2x128xf32> to vector<2x128xf32>
      %191 = arith.negf %190 : vector<2x128xf32>
      %192 = math.exp %191 : vector<2x128xf32>
      %cst_85 = arith.constant 1.000000e+00 : f32
      %193 = vector.broadcast %cst_85 : f32 to vector<2x128xf32>
      %194 = arith.addf %193, %192 : vector<2x128xf32>
      %195 = arith.divf %193, %194 : vector<2x128xf32>
      %c7_86 = arith.constant 7 : index
      %c0_87 = arith.constant 0 : index
      %c0_88 = arith.constant 0 : index
      %196 = vector.load %arg11[%c7_86, %c0_87, %c0_88] : memref<8x2x128xf32, #tpu.memory_space<vmem>>, vector<1x2x128xf32>
      %197 = vector.shape_cast %196 : vector<1x2x128xf32> to vector<2x128xf32>
      %198 = vector.shape_cast %195 : vector<2x128xf32> to vector<1x2x128xf32>
      tpu.vector_store %arg11[%c7_86, %c0_87, %c0_88], %198 {strides = array<i32>} : memref<8x2x128xf32, #tpu.memory_space<vmem>>, vector<1x2x128xf32>,
      %199 = arith.mulf %195, %195 : vector<2x128xf32>
      %200 = vector.shape_cast %199 : vector<2x128xf32> to vector<1x2x128xf32>
      %cst_89 = arith.constant dense<0.000000e+00> : vector<1xf32>
      %201 = vector.multi_reduction <add>, %200, %cst_89 [1, 2] : vector<1x2x128xf32> to vector<1xf32>
      %202 = vector.shape_cast %201 : vector<1xf32> to vector<1x1x1xf32>
      %203 = vector.extract %202[0, 0, 0] : f32 from vector<1x1x1xf32>
      %c8_i32 = arith.constant 8 : i32
      %204 = vector.broadcast %c8_i32 : i32 to vector<2x128xi32>
      %205 = arith.cmpi eq, %7, %204 : vector<2x128xi32>
      %cst_90 = arith.constant 0.000000e+00 : f32
      %206 = vector.broadcast %cst_90 : f32 to vector<2x128xf32>
      %207 = arith.select %205, %199, %206 : vector<2x128xi1>, vector<2x128xf32>
      %208 = vector.shape_cast %207 : vector<2x128xf32> to vector<1x2x128xf32>
      %cst_91 = arith.constant dense<0.000000e+00> : vector<1xf32>
      %209 = vector.multi_reduction <add>, %208, %cst_91 [1, 2] : vector<1x2x128xf32> to vector<1xf32>
      %210 = vector.shape_cast %209 : vector<1xf32> to vector<1x1x1xf32>
      %211 = vector.extract %210[0, 0, 0] : f32 from vector<1x1x1xf32>
      %212 = arith.subf %203, %211 : f32
      %213 = arith.addf %188, %212 : f32
      %c0_92 = arith.constant 0 : index
      %214 = memref.load %arg14[%c0_92] : memref<8xf32, #tpu.memory_space<smem>>
      %cst_93 = arith.constant 1.631600e+00 : f32
      %215 = arith.mulf %cst_93, %213 : f32
      %216 = arith.addf %214, %215 : f32
      %c0_94 = arith.constant 0 : index
      %217 = memref.load %arg14[%c0_94] : memref<8xf32, #tpu.memory_space<smem>>
      memref.store %216, %arg14[%c0_94] : memref<8xf32, #tpu.memory_space<smem>>
      %c0_95 = arith.constant 0 : index
      %c0_96 = arith.constant 0 : index
      %c0_97 = arith.constant 0 : index
      %c0_98 = arith.constant 0 : index
      %218 = vector.load %arg3[%c0_95, %c0_96, %c0_97, %c0_98] : memref<1x11x2x128xf32, #tpu.memory_space<vmem>>, vector<1x1x2x128xf32>
      %219 = vector.shape_cast %218 : vector<1x1x2x128xf32> to vector<2x128xf32>
      %220 = math.tanh %219 : vector<2x128xf32>
      %221 = arith.addf %220, %1 : vector<2x128xf32>
      %c0_99 = arith.constant 0 : index
      %c1_100 = arith.constant 1 : index
      %c0_101 = arith.constant 0 : index
      %c0_102 = arith.constant 0 : index
      %222 = vector.load %arg3[%c0_99, %c1_100, %c0_101, %c0_102] : memref<1x11x2x128xf32, #tpu.memory_space<vmem>>, vector<1x1x2x128xf32>
      %223 = vector.shape_cast %222 : vector<1x1x2x128xf32> to vector<2x128xf32>
      %224 = math.tanh %223 : vector<2x128xf32>
      %225 = arith.addf %224, %3 : vector<2x128xf32>
      %c0_103 = arith.constant 0 : index
      %c0_104 = arith.constant 0 : index
      %226 = memref.load %arg12[%c0_103, %c0_104] : memref<3x8xf32, #tpu.memory_space<smem>>
      %cst_105 = arith.constant 0.000000e+00 : f32
      %227 = arith.cmpf ogt, %226, %cst_105 : f32
      %228 = arith.extui %227 : i1 to i32
      %c0_i32_106 = arith.constant 0 : i32
      %229 = arith.cmpi ne, %228, %c0_i32_106 : i32
      scf.if %229 {
        %cst_123 = arith.constant 1.000000e+00 : f32
        %250 = arith.divf %cst_123, %226 : f32
        %c0_124 = arith.constant 0 : index
        %c1_125 = arith.constant 1 : index
        %251 = memref.load %arg12[%c0_124, %c1_125] : memref<3x8xf32, #tpu.memory_space<smem>>
        %252 = arith.mulf %251, %250 : f32
        %c0_126 = arith.constant 0 : index
        %c2_127 = arith.constant 2 : index
        %253 = memref.load %arg12[%c0_126, %c2_127] : memref<3x8xf32, #tpu.memory_space<smem>>
        %254 = arith.mulf %253, %250 : f32
        %c0_128 = arith.constant 0 : index
        %c3_129 = arith.constant 3 : index
        %255 = memref.load %arg12[%c0_128, %c3_129] : memref<3x8xf32, #tpu.memory_space<smem>>
        %256 = arith.mulf %255, %250 : f32
        %cst_130 = arith.constant 1.000000e+01 : f32
        %257 = arith.mulf %256, %cst_130 : f32
        %258 = math.exp %257 : f32
        %259 = vector.broadcast %252 : f32 to vector<2x128xf32>
        %260 = arith.subf %221, %259 : vector<2x128xf32>
        %261 = arith.mulf %260, %260 : vector<2x128xf32>
        %262 = vector.broadcast %254 : f32 to vector<2x128xf32>
        %263 = arith.subf %225, %262 : vector<2x128xf32>
        %264 = arith.mulf %263, %263 : vector<2x128xf32>
        %265 = arith.addf %261, %264 : vector<2x128xf32>
        %cst_131 = arith.constant 0.000000e+00 : f32
        %266 = vector.broadcast %cst_131 : f32 to vector<2x128xf32>
        %267 = arith.subf %266, %265 : vector<2x128xf32>
        %268 = vector.broadcast %258 : f32 to vector<2x128xf32>
        %269 = arith.mulf %267, %268 : vector<2x128xf32>
        %270 = math.exp %269 : vector<2x128xf32>
        %c0_132 = arith.constant 0 : index
        %c0_133 = arith.constant 0 : index
        %c0_134 = arith.constant 0 : index
        %c0_135 = arith.constant 0 : index
        %271 = vector.load %arg9[%c0_132, %c0_133, %c0_134, %c0_135] : memref<1x3x2x128xf32, #tpu.memory_space<vmem>>, vector<1x1x2x128xf32>
        %272 = vector.shape_cast %271 : vector<1x1x2x128xf32> to vector<2x128xf32>
        %273 = vector.shape_cast %270 : vector<2x128xf32> to vector<1x1x2x128xf32>
        tpu.vector_store %arg9[%c0_132, %c0_133, %c0_134, %c0_135], %273 {strides = array<i32>} : memref<1x3x2x128xf32, #tpu.memory_space<vmem>>, vector<1x1x2x128xf32>,
        %c0_136 = arith.constant 0 : index
        %274 = memref.load %arg13[%c0_136] : memref<3xi32, #tpu.memory_space<smem>>
        %c1_i32_137 = arith.constant 1 : i32
        %275 = arith.subi %274, %c1_i32_137 : i32
        %c0_i32_138 = arith.constant 0 : i32
        %c7_i32_139 = arith.constant 7 : i32
        %276 = arith.maxsi %c0_i32_138, %275 : i32
        %277 = arith.minsi %c7_i32_139, %276 : i32
        %278 = arith.index_cast %277 : i32 to index
        %c0_140 = arith.constant 0 : index
        %c0_141 = arith.constant 0 : index
        %279 = vector.load %arg11[%278, %c0_140, %c0_141] : memref<8x2x128xf32, #tpu.memory_space<vmem>>, vector<1x2x128xf32>
        %280 = vector.shape_cast %279 : vector<1x2x128xf32> to vector<2x128xf32>
        %281 = arith.index_cast %277 : i32 to index
        %282 = memref.load %arg8[%281] : memref<8xf32, #tpu.memory_space<smem>>
        %c1_i32_142 = arith.constant 1 : i32
        %283 = vector.broadcast %c1_i32_142 : i32 to vector<2x128xi32>
        %284 = arith.cmpi eq, %5, %283 : vector<2x128xi32>
        %c1_143 = arith.constant 1 : index
        %285 = memref.load %arg14[%c1_143] : memref<8xf32, #tpu.memory_space<smem>>
        %286 = arith.subf %280, %270 : vector<2x128xf32>
        %287 = arith.mulf %286, %286 : vector<2x128xf32>
        %cst_144 = arith.constant 0.000000e+00 : f32
        %288 = vector.broadcast %cst_144 : f32 to vector<2x128xf32>
        %289 = arith.select %284, %287, %288 : vector<2x128xi1>, vector<2x128xf32>
        %290 = vector.shape_cast %289 : vector<2x128xf32> to vector<1x2x128xf32>
        %cst_145 = arith.constant dense<0.000000e+00> : vector<1xf32>
        %291 = vector.multi_reduction <add>, %290, %cst_145 [1, 2] : vector<1x2x128xf32> to vector<1xf32>
        %292 = vector.shape_cast %291 : vector<1xf32> to vector<1x1x1xf32>
        %293 = vector.extract %292[0, 0, 0] : f32 from vector<1x1x1xf32>
        %294 = arith.mulf %282, %293 : f32
        %295 = arith.addf %285, %294 : f32
        %c1_146 = arith.constant 1 : index
        %296 = memref.load %arg14[%c1_146] : memref<8xf32, #tpu.memory_space<smem>>
        memref.store %295, %arg14[%c1_146] : memref<8xf32, #tpu.memory_space<smem>>
      } else {
      }
      %cst_107 = arith.constant 0.000000e+00 : f32
      %230 = arith.cmpf oeq, %226, %cst_107 : f32
      %231 = arith.extui %230 : i1 to i32
      %c0_i32_108 = arith.constant 0 : i32
      %232 = arith.cmpi ne, %231, %c0_i32_108 : i32
      scf.if %232 {
        %cst_123 = arith.constant 0.000000e+00 : f32
        %250 = vector.broadcast %cst_123 : f32 to vector<2x128xf32>
        %c0_124 = arith.constant 0 : index
        %c0_125 = arith.constant 0 : index
        %c0_126 = arith.constant 0 : index
        %c0_127 = arith.constant 0 : index
        %251 = vector.load %arg9[%c0_124, %c0_125, %c0_126, %c0_127] : memref<1x3x2x128xf32, #tpu.memory_space<vmem>>, vector<1x1x2x128xf32>
        %252 = vector.shape_cast %251 : vector<1x1x2x128xf32> to vector<2x128xf32>
        %253 = vector.shape_cast %250 : vector<2x128xf32> to vector<1x1x2x128xf32>
        tpu.vector_store %arg9[%c0_124, %c0_125, %c0_126, %c0_127], %253 {strides = array<i32>} : memref<1x3x2x128xf32, #tpu.memory_space<vmem>>, vector<1x1x2x128xf32>,
      } else {
      }
      %c1_109 = arith.constant 1 : index
      %c0_110 = arith.constant 0 : index
      %233 = memref.load %arg12[%c1_109, %c0_110] : memref<3x8xf32, #tpu.memory_space<smem>>
      %cst_111 = arith.constant 0.000000e+00 : f32
      %234 = arith.cmpf ogt, %233, %cst_111 : f32
      %235 = arith.extui %234 : i1 to i32
      %c0_i32_112 = arith.constant 0 : i32
      %236 = arith.cmpi ne, %235, %c0_i32_112 : i32
      scf.if %236 {
        %cst_123 = arith.constant 1.000000e+00 : f32
        %250 = arith.divf %cst_123, %233 : f32
        %c1_124 = arith.constant 1 : index
        %c1_125 = arith.constant 1 : index
        %251 = memref.load %arg12[%c1_124, %c1_125] : memref<3x8xf32, #tpu.memory_space<smem>>
        %252 = arith.mulf %251, %250 : f32
        %c1_126 = arith.constant 1 : index
        %c2_127 = arith.constant 2 : index
        %253 = memref.load %arg12[%c1_126, %c2_127] : memref<3x8xf32, #tpu.memory_space<smem>>
        %254 = arith.mulf %253, %250 : f32
        %c1_128 = arith.constant 1 : index
        %c3_129 = arith.constant 3 : index
        %255 = memref.load %arg12[%c1_128, %c3_129] : memref<3x8xf32, #tpu.memory_space<smem>>
        %256 = arith.mulf %255, %250 : f32
        %cst_130 = arith.constant 1.000000e+01 : f32
        %257 = arith.mulf %256, %cst_130 : f32
        %258 = math.exp %257 : f32
        %259 = vector.broadcast %252 : f32 to vector<2x128xf32>
        %260 = arith.subf %221, %259 : vector<2x128xf32>
        %261 = arith.mulf %260, %260 : vector<2x128xf32>
        %262 = vector.broadcast %254 : f32 to vector<2x128xf32>
        %263 = arith.subf %225, %262 : vector<2x128xf32>
        %264 = arith.mulf %263, %263 : vector<2x128xf32>
        %265 = arith.addf %261, %264 : vector<2x128xf32>
        %cst_131 = arith.constant 0.000000e+00 : f32
        %266 = vector.broadcast %cst_131 : f32 to vector<2x128xf32>
        %267 = arith.subf %266, %265 : vector<2x128xf32>
        %268 = vector.broadcast %258 : f32 to vector<2x128xf32>
        %269 = arith.mulf %267, %268 : vector<2x128xf32>
        %270 = math.exp %269 : vector<2x128xf32>
        %c0_132 = arith.constant 0 : index
        %c1_133 = arith.constant 1 : index
        %c0_134 = arith.constant 0 : index
        %c0_135 = arith.constant 0 : index
        %271 = vector.load %arg9[%c0_132, %c1_133, %c0_134, %c0_135] : memref<1x3x2x128xf32, #tpu.memory_space<vmem>>, vector<1x1x2x128xf32>
        %272 = vector.shape_cast %271 : vector<1x1x2x128xf32> to vector<2x128xf32>
        %273 = vector.shape_cast %270 : vector<2x128xf32> to vector<1x1x2x128xf32>
        tpu.vector_store %arg9[%c0_132, %c1_133, %c0_134, %c0_135], %273 {strides = array<i32>} : memref<1x3x2x128xf32, #tpu.memory_space<vmem>>, vector<1x1x2x128xf32>,
        %c1_136 = arith.constant 1 : index
        %274 = memref.load %arg13[%c1_136] : memref<3xi32, #tpu.memory_space<smem>>
        %c1_i32_137 = arith.constant 1 : i32
        %275 = arith.subi %274, %c1_i32_137 : i32
        %c0_i32_138 = arith.constant 0 : i32
        %c7_i32_139 = arith.constant 7 : i32
        %276 = arith.maxsi %c0_i32_138, %275 : i32
        %277 = arith.minsi %c7_i32_139, %276 : i32
        %278 = arith.index_cast %277 : i32 to index
        %c0_140 = arith.constant 0 : index
        %c0_141 = arith.constant 0 : index
        %279 = vector.load %arg11[%278, %c0_140, %c0_141] : memref<8x2x128xf32, #tpu.memory_space<vmem>>, vector<1x2x128xf32>
        %280 = vector.shape_cast %279 : vector<1x2x128xf32> to vector<2x128xf32>
        %281 = arith.index_cast %277 : i32 to index
        %282 = memref.load %arg8[%281] : memref<8xf32, #tpu.memory_space<smem>>
        %c2_i32_142 = arith.constant 2 : i32
        %283 = vector.broadcast %c2_i32_142 : i32 to vector<2x128xi32>
        %284 = arith.cmpi eq, %5, %283 : vector<2x128xi32>
        %c1_143 = arith.constant 1 : index
        %285 = memref.load %arg14[%c1_143] : memref<8xf32, #tpu.memory_space<smem>>
        %286 = arith.subf %280, %270 : vector<2x128xf32>
        %287 = arith.mulf %286, %286 : vector<2x128xf32>
        %cst_144 = arith.constant 0.000000e+00 : f32
        %288 = vector.broadcast %cst_144 : f32 to vector<2x128xf32>
        %289 = arith.select %284, %287, %288 : vector<2x128xi1>, vector<2x128xf32>
        %290 = vector.shape_cast %289 : vector<2x128xf32> to vector<1x2x128xf32>
        %cst_145 = arith.constant dense<0.000000e+00> : vector<1xf32>
        %291 = vector.multi_reduction <add>, %290, %cst_145 [1, 2] : vector<1x2x128xf32> to vector<1xf32>
        %292 = vector.shape_cast %291 : vector<1xf32> to vector<1x1x1xf32>
        %293 = vector.extract %292[0, 0, 0] : f32 from vector<1x1x1xf32>
        %294 = arith.mulf %282, %293 : f32
        %295 = arith.addf %285, %294 : f32
        %c1_146 = arith.constant 1 : index
        %296 = memref.load %arg14[%c1_146] : memref<8xf32, #tpu.memory_space<smem>>
        memref.store %295, %arg14[%c1_146] : memref<8xf32, #tpu.memory_space<smem>>
      } else {
      }
      %cst_113 = arith.constant 0.000000e+00 : f32
      %237 = arith.cmpf oeq, %233, %cst_113 : f32
      %238 = arith.extui %237 : i1 to i32
      %c0_i32_114 = arith.constant 0 : i32
      %239 = arith.cmpi ne, %238, %c0_i32_114 : i32
      scf.if %239 {
        %cst_123 = arith.constant 0.000000e+00 : f32
        %250 = vector.broadcast %cst_123 : f32 to vector<2x128xf32>
        %c0_124 = arith.constant 0 : index
        %c1_125 = arith.constant 1 : index
        %c0_126 = arith.constant 0 : index
        %c0_127 = arith.constant 0 : index
        %251 = vector.load %arg9[%c0_124, %c1_125, %c0_126, %c0_127] : memref<1x3x2x128xf32, #tpu.memory_space<vmem>>, vector<1x1x2x128xf32>
        %252 = vector.shape_cast %251 : vector<1x1x2x128xf32> to vector<2x128xf32>
        %253 = vector.shape_cast %250 : vector<2x128xf32> to vector<1x1x2x128xf32>
        tpu.vector_store %arg9[%c0_124, %c1_125, %c0_126, %c0_127], %253 {strides = array<i32>} : memref<1x3x2x128xf32, #tpu.memory_space<vmem>>, vector<1x1x2x128xf32>,
      } else {
      }
      %c2_115 = arith.constant 2 : index
      %c0_116 = arith.constant 0 : index
      %240 = memref.load %arg12[%c2_115, %c0_116] : memref<3x8xf32, #tpu.memory_space<smem>>
      %cst_117 = arith.constant 0.000000e+00 : f32
      %241 = arith.cmpf ogt, %240, %cst_117 : f32
      %242 = arith.extui %241 : i1 to i32
      %c0_i32_118 = arith.constant 0 : i32
      %243 = arith.cmpi ne, %242, %c0_i32_118 : i32
      scf.if %243 {
        %cst_123 = arith.constant 1.000000e+00 : f32
        %250 = arith.divf %cst_123, %240 : f32
        %c2_124 = arith.constant 2 : index
        %c1_125 = arith.constant 1 : index
        %251 = memref.load %arg12[%c2_124, %c1_125] : memref<3x8xf32, #tpu.memory_space<smem>>
        %252 = arith.mulf %251, %250 : f32
        %c2_126 = arith.constant 2 : index
        %c2_127 = arith.constant 2 : index
        %253 = memref.load %arg12[%c2_126, %c2_127] : memref<3x8xf32, #tpu.memory_space<smem>>
        %254 = arith.mulf %253, %250 : f32
        %c2_128 = arith.constant 2 : index
        %c3_129 = arith.constant 3 : index
        %255 = memref.load %arg12[%c2_128, %c3_129] : memref<3x8xf32, #tpu.memory_space<smem>>
        %256 = arith.mulf %255, %250 : f32
        %cst_130 = arith.constant 1.000000e+01 : f32
        %257 = arith.mulf %256, %cst_130 : f32
        %258 = math.exp %257 : f32
        %259 = vector.broadcast %252 : f32 to vector<2x128xf32>
        %260 = arith.subf %221, %259 : vector<2x128xf32>
        %261 = arith.mulf %260, %260 : vector<2x128xf32>
        %262 = vector.broadcast %254 : f32 to vector<2x128xf32>
        %263 = arith.subf %225, %262 : vector<2x128xf32>
        %264 = arith.mulf %263, %263 : vector<2x128xf32>
        %265 = arith.addf %261, %264 : vector<2x128xf32>
        %cst_131 = arith.constant 0.000000e+00 : f32
        %266 = vector.broadcast %cst_131 : f32 to vector<2x128xf32>
        %267 = arith.subf %266, %265 : vector<2x128xf32>
        %268 = vector.broadcast %258 : f32 to vector<2x128xf32>
        %269 = arith.mulf %267, %268 : vector<2x128xf32>
        %270 = math.exp %269 : vector<2x128xf32>
        %c0_132 = arith.constant 0 : index
        %c2_133 = arith.constant 2 : index
        %c0_134 = arith.constant 0 : index
        %c0_135 = arith.constant 0 : index
        %271 = vector.load %arg9[%c0_132, %c2_133, %c0_134, %c0_135] : memref<1x3x2x128xf32, #tpu.memory_space<vmem>>, vector<1x1x2x128xf32>
        %272 = vector.shape_cast %271 : vector<1x1x2x128xf32> to vector<2x128xf32>
        %273 = vector.shape_cast %270 : vector<2x128xf32> to vector<1x1x2x128xf32>
        tpu.vector_store %arg9[%c0_132, %c2_133, %c0_134, %c0_135], %273 {strides = array<i32>} : memref<1x3x2x128xf32, #tpu.memory_space<vmem>>, vector<1x1x2x128xf32>,
        %c2_136 = arith.constant 2 : index
        %274 = memref.load %arg13[%c2_136] : memref<3xi32, #tpu.memory_space<smem>>
        %c1_i32_137 = arith.constant 1 : i32
        %275 = arith.subi %274, %c1_i32_137 : i32
        %c0_i32_138 = arith.constant 0 : i32
        %c7_i32_139 = arith.constant 7 : i32
        %276 = arith.maxsi %c0_i32_138, %275 : i32
        %277 = arith.minsi %c7_i32_139, %276 : i32
        %278 = arith.index_cast %277 : i32 to index
        %c0_140 = arith.constant 0 : index
        %c0_141 = arith.constant 0 : index
        %279 = vector.load %arg11[%278, %c0_140, %c0_141] : memref<8x2x128xf32, #tpu.memory_space<vmem>>, vector<1x2x128xf32>
        %280 = vector.shape_cast %279 : vector<1x2x128xf32> to vector<2x128xf32>
        %281 = arith.index_cast %277 : i32 to index
        %282 = memref.load %arg8[%281] : memref<8xf32, #tpu.memory_space<smem>>
        %c3_i32_142 = arith.constant 3 : i32
        %283 = vector.broadcast %c3_i32_142 : i32 to vector<2x128xi32>
        %284 = arith.cmpi eq, %5, %283 : vector<2x128xi32>
        %c1_143 = arith.constant 1 : index
        %285 = memref.load %arg14[%c1_143] : memref<8xf32, #tpu.memory_space<smem>>
        %286 = arith.subf %280, %270 : vector<2x128xf32>
        %287 = arith.mulf %286, %286 : vector<2x128xf32>
        %cst_144 = arith.constant 0.000000e+00 : f32
        %288 = vector.broadcast %cst_144 : f32 to vector<2x128xf32>
        %289 = arith.select %284, %287, %288 : vector<2x128xi1>, vector<2x128xf32>
        %290 = vector.shape_cast %289 : vector<2x128xf32> to vector<1x2x128xf32>
        %cst_145 = arith.constant dense<0.000000e+00> : vector<1xf32>
        %291 = vector.multi_reduction <add>, %290, %cst_145 [1, 2] : vector<1x2x128xf32> to vector<1xf32>
        %292 = vector.shape_cast %291 : vector<1xf32> to vector<1x1x1xf32>
        %293 = vector.extract %292[0, 0, 0] : f32 from vector<1x1x1xf32>
        %294 = arith.mulf %282, %293 : f32
        %295 = arith.addf %285, %294 : f32
        %c1_146 = arith.constant 1 : index
        %296 = memref.load %arg14[%c1_146] : memref<8xf32, #tpu.memory_space<smem>>
        memref.store %295, %arg14[%c1_146] : memref<8xf32, #tpu.memory_space<smem>>
      } else {
      }
      %cst_119 = arith.constant 0.000000e+00 : f32
      %244 = arith.cmpf oeq, %240, %cst_119 : f32
      %245 = arith.extui %244 : i1 to i32
      %c0_i32_120 = arith.constant 0 : i32
      %246 = arith.cmpi ne, %245, %c0_i32_120 : i32
      scf.if %246 {
        %cst_123 = arith.constant 0.000000e+00 : f32
        %250 = vector.broadcast %cst_123 : f32 to vector<2x128xf32>
        %c0_124 = arith.constant 0 : index
        %c2_125 = arith.constant 2 : index
        %c0_126 = arith.constant 0 : index
        %c0_127 = arith.constant 0 : index
        %251 = vector.load %arg9[%c0_124, %c2_125, %c0_126, %c0_127] : memref<1x3x2x128xf32, #tpu.memory_space<vmem>>, vector<1x1x2x128xf32>
        %252 = vector.shape_cast %251 : vector<1x1x2x128xf32> to vector<2x128xf32>
        %253 = vector.shape_cast %250 : vector<2x128xf32> to vector<1x1x2x128xf32>
        tpu.vector_store %arg9[%c0_124, %c2_125, %c0_126, %c0_127], %253 {strides = array<i32>} : memref<1x3x2x128xf32, #tpu.memory_space<vmem>>, vector<1x1x2x128xf32>,
      } else {
      }
      %c0_i32_121 = arith.constant 0 : i32
      %247 = arith.cmpi eq, %arg2, %c0_i32_121 : i32
      %248 = arith.extui %247 : i1 to i32
      %c0_i32_122 = arith.constant 0 : i32
      %249 = arith.cmpi ne, %248, %c0_i32_122 : i32
      scf.if %249 {
        %c0_123 = arith.constant 0 : index
        %c0_124 = arith.constant 0 : index
        %250 = memref.load %arg12[%c0_123, %c0_124] : memref<3x8xf32, #tpu.memory_space<smem>>
        %cst_125 = arith.constant 0.000000e+00 : f32
        %251 = arith.cmpf ogt, %250, %cst_125 : f32
        %252 = arith.extui %251 : i1 to i32
        %253 = arith.sitofp %252 : i32 to f32
        %cst_126 = arith.constant 1.000000e+00 : f32
        %254 = arith.maximumf %250, %cst_126 : f32
        %cst_127 = arith.constant 1.000000e+00 : f32
        %255 = arith.divf %cst_127, %254 : f32
        %c0_128 = arith.constant 0 : index
        %c3_129 = arith.constant 3 : index
        %256 = memref.load %arg12[%c0_128, %c3_129] : memref<3x8xf32, #tpu.memory_space<smem>>
        %257 = arith.mulf %256, %255 : f32
        %c0_130 = arith.constant 0 : index
        %c4_131 = arith.constant 4 : index
        %258 = memref.load %arg12[%c0_130, %c4_131] : memref<3x8xf32, #tpu.memory_space<smem>>
        %259 = arith.mulf %258, %255 : f32
        %260 = arith.mulf %257, %257 : f32
        %261 = arith.subf %259, %260 : f32
        %cst_132 = arith.constant 0.000000e+00 : f32
        %262 = arith.maximumf %261, %cst_132 : f32
        %cst_133 = arith.constant 0.000000e+00 : f32
        %263 = arith.addf %cst_133, %253 : f32
        %264 = arith.mulf %253, %262 : f32
        %cst_134 = arith.constant 0.000000e+00 : f32
        %265 = arith.addf %cst_134, %264 : f32
        %c1_135 = arith.constant 1 : index
        %c0_136 = arith.constant 0 : index
        %266 = memref.load %arg12[%c1_135, %c0_136] : memref<3x8xf32, #tpu.memory_space<smem>>
        %cst_137 = arith.constant 0.000000e+00 : f32
        %267 = arith.cmpf ogt, %266, %cst_137 : f32
        %268 = arith.extui %267 : i1 to i32
        %269 = arith.sitofp %268 : i32 to f32
        %cst_138 = arith.constant 1.000000e+00 : f32
        %270 = arith.maximumf %266, %cst_138 : f32
        %cst_139 = arith.constant 1.000000e+00 : f32
        %271 = arith.divf %cst_139, %270 : f32
        %c1_140 = arith.constant 1 : index
        %c3_141 = arith.constant 3 : index
        %272 = memref.load %arg12[%c1_140, %c3_141] : memref<3x8xf32, #tpu.memory_space<smem>>
        %273 = arith.mulf %272, %271 : f32
        %c1_142 = arith.constant 1 : index
        %c4_143 = arith.constant 4 : index
        %274 = memref.load %arg12[%c1_142, %c4_143] : memref<3x8xf32, #tpu.memory_space<smem>>
        %275 = arith.mulf %274, %271 : f32
        %276 = arith.mulf %273, %273 : f32
        %277 = arith.subf %275, %276 : f32
        %cst_144 = arith.constant 0.000000e+00 : f32
        %278 = arith.maximumf %277, %cst_144 : f32
        %279 = arith.addf %263, %269 : f32
        %280 = arith.mulf %269, %278 : f32
        %281 = arith.addf %265, %280 : f32
        %c2_145 = arith.constant 2 : index
        %c0_146 = arith.constant 0 : index
        %282 = memref.load %arg12[%c2_145, %c0_146] : memref<3x8xf32, #tpu.memory_space<smem>>
        %cst_147 = arith.constant 0.000000e+00 : f32
        %283 = arith.cmpf ogt, %282, %cst_147 : f32
        %284 = arith.extui %283 : i1 to i32
        %285 = arith.sitofp %284 : i32 to f32
        %cst_148 = arith.constant 1.000000e+00 : f32
        %286 = arith.maximumf %282, %cst_148 : f32
        %cst_149 = arith.constant 1.000000e+00 : f32
        %287 = arith.divf %cst_149, %286 : f32
        %c2_150 = arith.constant 2 : index
        %c3_151 = arith.constant 3 : index
        %288 = memref.load %arg12[%c2_150, %c3_151] : memref<3x8xf32, #tpu.memory_space<smem>>
        %289 = arith.mulf %288, %287 : f32
        %c2_152 = arith.constant 2 : index
        %c4_153 = arith.constant 4 : index
        %290 = memref.load %arg12[%c2_152, %c4_153] : memref<3x8xf32, #tpu.memory_space<smem>>
        %291 = arith.mulf %290, %287 : f32
        %292 = arith.mulf %289, %289 : f32
        %293 = arith.subf %291, %292 : f32
        %cst_154 = arith.constant 0.000000e+00 : f32
        %294 = arith.maximumf %293, %cst_154 : f32
        %295 = arith.addf %279, %285 : f32
        %296 = arith.mulf %285, %294 : f32
        %297 = arith.addf %281, %296 : f32
        %298 = tpu.iota {dimensions = array<i32: 1>} : vector<1x128xi32>
        %c0_i32_155 = arith.constant 0 : i32
        %299 = vector.broadcast %c0_i32_155 : i32 to vector<1x128xi32>
        %300 = arith.cmpi eq, %298, %299 : vector<1x128xi32>
        %cst_156 = arith.constant 0.000000e+00 : f32
        %301 = vector.broadcast %295 : f32 to vector<1x128xf32>
        %302 = vector.broadcast %cst_156 : f32 to vector<1x128xf32>
        %303 = arith.select %300, %301, %302 : vector<1x128xi1>, vector<1x128xf32>
        %c1_i32_157 = arith.constant 1 : i32
        %304 = vector.broadcast %c1_i32_157 : i32 to vector<1x128xi32>
        %305 = arith.cmpi eq, %298, %304 : vector<1x128xi32>
        %cst_158 = arith.constant 0.000000e+00 : f32
        %306 = vector.broadcast %297 : f32 to vector<1x128xf32>
        %307 = vector.broadcast %cst_158 : f32 to vector<1x128xf32>
        %308 = arith.select %305, %306, %307 : vector<1x128xi1>, vector<1x128xf32>
        %309 = arith.addf %303, %308 : vector<1x128xf32>
        %c2_i32_159 = arith.constant 2 : i32
        %310 = vector.broadcast %c2_i32_159 : i32 to vector<1x128xi32>
        %311 = arith.cmpi eq, %298, %310 : vector<1x128xi32>
        %c1_160 = arith.constant 1 : index
        %312 = memref.load %arg14[%c1_160] : memref<8xf32, #tpu.memory_space<smem>>
        %cst_161 = arith.constant 0.000000e+00 : f32
        %313 = vector.broadcast %312 : f32 to vector<1x128xf32>
        %314 = vector.broadcast %cst_161 : f32 to vector<1x128xf32>
        %315 = arith.select %311, %313, %314 : vector<1x128xi1>, vector<1x128xf32>
        %316 = arith.addf %309, %315 : vector<1x128xf32>
        %c3_i32_162 = arith.constant 3 : i32
        %317 = vector.broadcast %c3_i32_162 : i32 to vector<1x128xi32>
        %318 = arith.cmpi eq, %298, %317 : vector<1x128xi32>
        %c0_163 = arith.constant 0 : index
        %319 = memref.load %arg14[%c0_163] : memref<8xf32, #tpu.memory_space<smem>>
        %cst_164 = arith.constant 0.000000e+00 : f32
        %320 = vector.broadcast %319 : f32 to vector<1x128xf32>
        %321 = vector.broadcast %cst_164 : f32 to vector<1x128xf32>
        %322 = arith.select %318, %320, %321 : vector<1x128xi1>, vector<1x128xf32>
        %323 = arith.addf %316, %322 : vector<1x128xf32>
        %c0_165 = arith.constant 0 : index
        %c0_166 = arith.constant 0 : index
        %c0_167 = arith.constant 0 : index
        %324 = vector.load %arg10[%c0_165, %c0_166, %c0_167] : memref<1x1x128xf32, #tpu.memory_space<vmem>>, vector<1x1x128xf32>
        %325 = vector.shape_cast %324 : vector<1x1x128xf32> to vector<1x128xf32>
        %326 = vector.shape_cast %323 : vector<1x128xf32> to vector<1x1x128xf32>
        tpu.vector_store %arg10[%c0_165, %c0_166, %c0_167], %326 {strides = array<i32>} : memref<1x1x128xf32, #tpu.memory_space<vmem>>, vector<1x1x128xf32>,
      } else {
      }
    } else {
    }
    return
  }
  func.func @transform_0(%arg0: i32, %arg1: i32, %arg2: i32) -> (i32, i32, i32, i32) {
    %0 = arith.muli %arg2, %arg1 : i32
    %c0_i32 = arith.constant 0 : i32
    %c0_i32_0 = arith.constant 0 : i32
    %c0_i32_1 = arith.constant 0 : i32
    return %arg0, %c0_i32, %0, %c0_i32_0 : i32, i32, i32, i32
  }
  func.func @transform_1(%arg0: i32, %arg1: i32, %arg2: i32) -> (i32, i32, i32, i32) {
    %c1_i32 = arith.constant 1 : i32
    %0 = arith.subi %c1_i32, %arg1 : i32
    %1 = arith.muli %arg2, %0 : i32
    %c2_i32 = arith.constant 2 : i32
    %c0_i32 = arith.constant 0 : i32
    %c0_i32_0 = arith.constant 0 : i32
    return %arg0, %c2_i32, %1, %c0_i32 : i32, i32, i32, i32
  }
  func.func @transform_2(%arg0: i32, %arg1: i32, %arg2: i32) -> (i32, i32, i32) {
    %c0_i32 = arith.constant 0 : i32
    %c0_i32_0 = arith.constant 0 : i32
    %c0_i32_1 = arith.constant 0 : i32
    return %c0_i32, %arg2, %c0_i32_0 : i32, i32, i32
  }
  func.func @transform_3(%arg0: i32, %arg1: i32, %arg2: i32) -> (i32, i32, i32) {
    %c0_i32 = arith.constant 0 : i32
    %c0_i32_0 = arith.constant 0 : i32
    return %arg0, %arg2, %c0_i32 : i32, i32, i32
  }
  func.func @transform_4(%arg0: i32, %arg1: i32, %arg2: i32) -> (i32, i32, i32) {
    %c0_i32 = arith.constant 0 : i32
    %c0_i32_0 = arith.constant 0 : i32
    return %arg0, %arg2, %c0_i32 : i32, i32, i32
  }
  func.func @transform_5(%arg0: i32, %arg1: i32, %arg2: i32) -> i32 {
    %c0_i32 = arith.constant 0 : i32
    %c0_i32_0 = arith.constant 0 : i32
    return %c0_i32 : i32
  }
  func.func @transform_6(%arg0: i32, %arg1: i32, %arg2: i32) -> (i32, i32, i32, i32) {
    %0 = arith.muli %arg2, %arg1 : i32
    %c0_i32 = arith.constant 0 : i32
    %c0_i32_0 = arith.constant 0 : i32
    %c0_i32_1 = arith.constant 0 : i32
    return %arg0, %c0_i32, %0, %c0_i32_0 : i32, i32, i32, i32
  }
  func.func @transform_7(%arg0: i32, %arg1: i32, %arg2: i32) -> (i32, i32, i32) {
    %c0_i32 = arith.constant 0 : i32
    %c0_i32_0 = arith.constant 0 : i32
    %c0_i32_1 = arith.constant 0 : i32
    return %arg0, %c0_i32, %c0_i32_0 : i32, i32, i32
  }
}

</mosaic_0001>

<llo_original>
// kernel: tpu_custom_call.1
$region0: #{tpu_custom_call.1}
  #allocation0 [shape = 'u32[]', space=smem, size = 0x4, offset = 0x4, fixed_abs, tag = 'smem constant byte address 0x4 - core index']
  #allocation1 [shape = 'u32[144,128]{1,0:T(1,128)}', space=vmem, size = 0x12000, scoped, tag = 'internal scratch']
  #allocation2 [shape = 'f32[8,2,128]{2,1,0:T(2,128)}', space=vmem, size = 0x2000, scoped, tag = 'scratch operand']
  #allocation3 [shape = 'f32[3,8]{1,0:T(4,128)}', space=smem, size = 0x800, scoped, tag = 'scratch operand']
  #allocation4 [shape = 's32[3]{0:T(128)}', space=smem, size = 0x200, scoped, tag = 'scratch operand']
  #allocation5 [shape = 'f32[8]{0:T(128)}', space=smem, size = 0x200, scoped, tag = 'scratch operand']
  %s0 = inlined_call_operand.hbm [shape: f32[2,11,2,128], index: 0, kind: input, shape index: {}]
  %s1 = inlined_call_operand.hbm [shape: f32[2,11,2,128], index: 1, kind: input, shape index: {}]
  %s2 = inlined_call_operand.vmem [shape: f32[2,2,128], index: 2, kind: input, shape index: {}]
  %s3 = inlined_call_operand.vmem [shape: s32[2,2,128], index: 3, kind: input, shape index: {}]
  %s4 = inlined_call_operand.vmem [shape: s32[2,2,128], index: 4, kind: input, shape index: {}]
  %s5 = inlined_call_operand.vmem [shape: f32[8], index: 5, kind: input, shape index: {}]
  %s6 = inlined_call_operand.hbm [shape: f32[2,3,2,128], index: 6, kind: output, shape index: {0}]
  %s7 = inlined_call_operand.hbm [shape: f32[2,1,128], index: 7, kind: output, shape index: {1}]
  %8 = xla_tuple %s6, %s7
  %s9 = sld [smem:[#allocation0]]
  $region117: #{tpu_custom_call.1} parent=0
    _
  %s11 = ssub.s32 1, %s9
  %s12 = scalar_select 0, %s11, %s9
  $region1: #{tpu_custom_call.1} parent=0
    #allocation6 [shape = 'u8[22528]{0}', space=vmem, size = 0x5800, scoped, tag = 'input window, operand 0']
    #allocation7 [shape = 's32[2]{0}', space=sflag, size = 0x8, scoped, tag = 'scoped memory for tpu_custom_call.1']
    #allocation8 [shape = 's32[2]{0}', space=sflag, size = 0x8, scoped, tag = 'scoped memory for tpu_custom_call.1']
    #allocation9 [shape = 's32[2]{0}', space=sflag, size = 0x8, scoped, tag = 'scoped memory for tpu_custom_call.1']
    #allocation10 [shape = 'u8[2048]{0}', space=vmem, size = 0x800, scoped, tag = 'input window, operand 1']
    #allocation11 [shape = 's32[2]{0}', space=sflag, size = 0x8, scoped, tag = 'scoped memory for tpu_custom_call.1']
    #allocation12 [shape = 'u8[512]{0}', space=smem, size = 0x200, scoped, tag = 'input window, operand 5, single buffered']
    #allocation13 [shape = 'u8[6144]{0}', space=vmem, size = 0x1800, scoped, tag = 'output window, operand 0']
    #allocation14 [shape = 'u8[1024]{0}', space=vmem, size = 0x400, scoped, tag = 'output window, operand 1']
    #allocation15 [shape = 's32[2]{0}', space=sflag, size = 0x8, scoped, tag = 'scoped memory for tpu_custom_call.1']
    %13 = vsyncpa [#allocation7], 0
    %s14 = scalar_lea.sflag [#allocation7], 1
    %15 = vsyncpa %s14, 0
    %16 = vsyncpa [#allocation11], 0
    %s17 = scalar_lea.sflag [#allocation11], 1
    %18 = vsyncpa %s17, 0
    %19 = vsyncpa [#allocation9], 0
    %20 = vsyncpa [#allocation8], 0
    %s21 = scalar_lea.sflag [#allocation8], 1
    %22 = vsyncpa %s21, 0
    %23 = vsyncpa [#allocation15], 0
    %s24 = scalar_lea.sflag [#allocation15], 1
    %25 = vsyncpa %s24, 0
    loop: start=0, step=1, limit=6
    $region2: #{tpu_custom_call.1} parent=1 // loop_pre_header
      _
    $region3: #{tpu_custom_call.1} parent=1 // loop_header
      %s27 = sphi 0, %s31
      %p28 = scmp.ge.s32.totalorder %s27, 6
      %s34 = sphi 0, %s53
      %s35 = sphi 0, %s49
      %s36 = sphi 0, %s45
      %s37 = sphi 0, %s34
      %s38 = sphi 0, %s35
      %s39 = sphi 0, %s36
      %s40 = sphi 0, %s37
      %s41 = sphi 0, %s38
      %s42 = sphi 0, %s39
      %s60 = sphi 0, %s62
      %s63 = sphi 0, %s60
      %s64 = sphi 0, %s63
      %s80 = sphi 0, %s64
      %s92 = sphi 0, %s94
      %s95 = sphi 0, %s92
      %s96 = sphi 0, %s95
      %s112 = sphi 0, %s96
      %s118 = sphi 0, %s120
      %s121 = sphi 0, %s118
      %s122 = sphi 0, %s121
      %s138 = sphi 0, %s122
      %s146 = sphi 0, %s148
      %s149 = sphi 0, %s146
      %s150 = sphi 0, %s149
      %s166 = sphi 0, %s150
      %s174 = sphi 0, %s176
      %s177 = sphi 0, %s174
      %s178 = sphi 0, %s177
      %s194 = sphi 0, %s178
      %s198 = sphi 0, %s198
      %s200 = sphi 0, %s198
      %s201 = sphi 0, %s200
      %s215 = sphi 0, %s201
      %s225 = sphi 0, %s227
      %s228 = sphi 0, %s225
      %s229 = sphi 0, %s228
      %s245 = sphi 0, %s229
      %s251 = sphi 0, %s253
      %s254 = sphi 0, %s251
      %s255 = sphi 0, %s254
      %s271 = sphi 0, %s255
    $region4: #{tpu_custom_call.1} parent=1 // loop_header_branch
      %30 = sbr.rel (%p28) target = $region8
    $region5: #{tpu_custom_call.1} parent=1 // loop_body
      %s32 = ssub.s32 %s27, 1
      %s33 = ssub.s32 %s27, 2
      %s43 = sadd.s32 1, %s36
      %p44 = scmp.ge.s32.totalorder %s43, 1
      %s45 = scalar_select %p44, 0, %s43
      %s46 = sadd.s32 1, %s35
      %s47 = scalar_select %p44, %s46, %s35
      %p48 = scmp.ge.s32.totalorder %s47, 2
      %s49 = scalar_select %p48, 0, %s47
      %s50 = sadd.s32 1, %s34
      %s51 = scalar_select %p48, %s50, %s34
      %p52 = scmp.ge.s32.totalorder %s51, 2
      %s53 = scalar_select %p52, 0, %s51
      %s54 = smul.u32 %s36, %s35
      %s55 = smul.u32 %s45, %s49
      %s56 = ssub.s32 %s34, %s53
      %s57 = ssub.s32 %s54, %s55
      %s58 = sor.u32 %s56, %s57
      %p59 = scmp.eq.s32.totalorder %s58, 0
      %s61 = sadd.s32 %s60, 1
      %s62 = scalar_select %p59, %s60, %s61
      %p65 = pneg %p59
      %p66 = scmp.eq.s32.totalorder %s27, 3
      %p67 = por %p65, %p66
      %p68 = scmp.ne.s32.totalorder %s60, %s63
      %p69 = scmp.eq.s32.totalorder %s27, 0
      %p70 = por %p68, %p69
      %p71 = scmp.ne.s32.totalorder %s60, %s63
      %p72 = scmp.eq.s32.totalorder %s32, 3
      %p73 = por %p71, %p72
      %p74 = scmp.ne.s32.totalorder %s63, %s64
      %p75 = scmp.eq.s32.totalorder %s32, 0
      %p76 = por %p74, %p75
      %p77 = scmp.ne.s32.totalorder %s63, %s64
      %p78 = scmp.eq.s32.totalorder %s33, 3
      %p79 = por %p77, %p78
      %p81 = scmp.ne.s32.totalorder %s64, %s80
      %p82 = scmp.eq.s32.totalorder %s33, 0
      %p83 = por %p81, %p82
      %s84 = ssub.s32 1, %s35
      %s85 = smul.u32 %s36, %s84
      %s86 = ssub.s32 1, %s49
      %s87 = smul.u32 %s45, %s86
      %s88 = ssub.s32 %s34, %s53
      %s89 = ssub.s32 %s85, %s87
      %s90 = sor.u32 %s88, %s89
      %p91 = scmp.eq.s32.totalorder %s90, 0
      %s93 = sadd.s32 %s92, 1
      %s94 = scalar_select %p91, %s92, %s93
      %p97 = pneg %p91
      %p98 = scmp.eq.s32.totalorder %s27, 3
      %p99 = por %p97, %p98
      %p100 = scmp.ne.s32.totalorder %s92, %s95
      %p101 = scmp.eq.s32.totalorder %s27, 0
      %p102 = por %p100, %p101
      %p103 = scmp.ne.s32.totalorder %s92, %s95
      %p104 = scmp.eq.s32.totalorder %s32, 3
      %p105 = por %p103, %p104
      %p106 = scmp.ne.s32.totalorder %s95, %s96
      %p107 = scmp.eq.s32.totalorder %s32, 0
      %p108 = por %p106, %p107
      %p109 = scmp.ne.s32.totalorder %s95, %s96
      %p110 = scmp.eq.s32.totalorder %s33, 3
      %p111 = por %p109, %p110
      %p113 = scmp.ne.s32.totalorder %s96, %s112
      %p114 = scmp.eq.s32.totalorder %s33, 0
      %p115 = por %p113, %p114
      %s116 = ssub.s32 %s36, %s45
      %p117 = scmp.eq.s32.totalorder %s116, 0
      %s119 = sadd.s32 %s118, 1
      %s120 = scalar_select %p117, %s118, %s119
      %p123 = pneg %p117
      %p124 = scmp.eq.s32.totalorder %s27, 3
      %p125 = por %p123, %p124
      %p126 = scmp.ne.s32.totalorder %s118, %s121
      %p127 = scmp.eq.s32.totalorder %s27, 0
      %p128 = por %p126, %p127
      %p129 = scmp.ne.s32.totalorder %s118, %s121
      %p130 = scmp.eq.s32.totalorder %s32, 3
      %p131 = por %p129, %p130
      %p132 = scmp.ne.s32.totalorder %s121, %s122
      %p133 = scmp.eq.s32.totalorder %s32, 0
      %p134 = por %p132, %p133
      %p135 = scmp.ne.s32.totalorder %s121, %s122
      %p136 = scmp.eq.s32.totalorder %s33, 3
      %p137 = por %p135, %p136
      %p139 = scmp.ne.s32.totalorder %s122, %s138
      %p140 = scmp.eq.s32.totalorder %s33, 0
      %p141 = por %p139, %p140
      %s142 = ssub.s32 %s34, %s53
      %s143 = ssub.s32 %s36, %s45
      %s144 = sor.u32 %s142, %s143
      %p145 = scmp.eq.s32.totalorder %s144, 0
      %s147 = sadd.s32 %s146, 1
      %s148 = scalar_select %p145, %s146, %s147
      %p151 = pneg %p145
      %p152 = scmp.eq.s32.totalorder %s27, 3
      %p153 = por %p151, %p152
      %p154 = scmp.ne.s32.totalorder %s146, %s149
      %p155 = scmp.eq.s32.totalorder %s27, 0
      %p156 = por %p154, %p155
      %p157 = scmp.ne.s32.totalorder %s146, %s149
      %p158 = scmp.eq.s32.totalorder %s32, 3
      %p159 = por %p157, %p158
      %p160 = scmp.ne.s32.totalorder %s149, %s150
      %p161 = scmp.eq.s32.totalorder %s32, 0
      %p162 = por %p160, %p161
      %p163 = scmp.ne.s32.totalorder %s149, %s150
      %p164 = scmp.eq.s32.totalorder %s33, 3
      %p165 = por %p163, %p164
      %p167 = scmp.ne.s32.totalorder %s150, %s166
      %p168 = scmp.eq.s32.totalorder %s33, 0
      %p169 = por %p167, %p168
      %s170 = ssub.s32 %s34, %s53
      %s171 = ssub.s32 %s36, %s45
      %s172 = sor.u32 %s170, %s171
      %p173 = scmp.eq.s32.totalorder %s172, 0
      %s175 = sadd.s32 %s174, 1
      %s176 = scalar_select %p173, %s174, %s175
      %p179 = pneg %p173
      %p180 = scmp.eq.s32.totalorder %s27, 3
      %p181 = por %p179, %p180
      %p182 = scmp.ne.s32.totalorder %s174, %s177
      %p183 = scmp.eq.s32.totalorder %s27, 0
      %p184 = por %p182, %p183
      %p185 = scmp.ne.s32.totalorder %s174, %s177
      %p186 = scmp.eq.s32.totalorder %s32, 3
      %p187 = por %p185, %p186
      %p188 = scmp.ne.s32.totalorder %s177, %s178
      %p189 = scmp.eq.s32.totalorder %s32, 0
      %p190 = por %p188, %p189
      %p191 = scmp.ne.s32.totalorder %s177, %s178
      %p192 = scmp.eq.s32.totalorder %s33, 3
      %p193 = por %p191, %p192
      %p195 = scmp.ne.s32.totalorder %s178, %s194
      %p196 = scmp.eq.s32.totalorder %s33, 0
      %p197 = por %p195, %p196
      %s199 = sadd.s32 %s198, 1
      %p202 = scmp.eq.s32.totalorder %s27, 3
      %p203 = scmp.ne.s32.totalorder %s198, %s200
      %p204 = scmp.eq.s32.totalorder %s27, 0
      %p205 = por %p203, %p204
      %p206 = scmp.ne.s32.totalorder %s198, %s200
      %p207 = scmp.eq.s32.totalorder %s32, 3
      %p208 = por %p206, %p207
      %p209 = scmp.ne.s32.totalorder %s200, %s201
      %p210 = scmp.eq.s32.totalorder %s32, 0
      %p211 = por %p209, %p210
      %p212 = scmp.ne.s32.totalorder %s200, %s201
      %p213 = scmp.eq.s32.totalorder %s33, 3
      %p214 = por %p212, %p213
      %p216 = scmp.ne.s32.totalorder %s201, %s215
      %p217 = scmp.eq.s32.totalorder %s33, 0
      %p218 = por %p216, %p217
      %s219 = smul.u32 %s36, %s35
      %s220 = smul.u32 %s45, %s49
      %s221 = ssub.s32 %s34, %s53
      %s222 = ssub.s32 %s219, %s220
      %s223 = sor.u32 %s221, %s222
      %p224 = scmp.eq.s32.totalorder %s223, 0
      %s226 = sadd.s32 %s225, 1
      %s227 = scalar_select %p224, %s225, %s226
      %p230 = pneg %p224
      %p231 = scmp.eq.s32.totalorder %s27, 3
      %p232 = por %p230, %p231
      %p233 = scmp.ne.s32.totalorder %s225, %s228
      %p234 = scmp.eq.s32.totalorder %s27, 0
      %p235 = por %p233, %p234
      %p236 = scmp.ne.s32.totalorder %s225, %s228
      %p237 = scmp.eq.s32.totalorder %s32, 3
      %p238 = por %p236, %p237
      %p239 = scmp.ne.s32.totalorder %s228, %s229
      %p240 = scmp.eq.s32.totalorder %s32, 0
      %p241 = por %p239, %p240
      %p242 = scmp.ne.s32.totalorder %s228, %s229
      %p243 = scmp.eq.s32.totalorder %s33, 3
      %p244 = por %p242, %p243
      %p246 = scmp.ne.s32.totalorder %s229, %s245
      %p247 = scmp.eq.s32.totalorder %s33, 0
      %p248 = por %p246, %p247
      %s249 = ssub.s32 %s34, %s53
      %p250 = scmp.eq.s32.totalorder %s249, 0
      %s252 = sadd.s32 %s251, 1
      %s253 = scalar_select %p250, %s251, %s252
      %p256 = pneg %p250
      %p257 = scmp.eq.s32.totalorder %s27, 3
      %p258 = por %p256, %p257
      %p259 = scmp.ne.s32.totalorder %s251, %s254
      %p260 = scmp.eq.s32.totalorder %s27, 0
      %p261 = por %p259, %p260
      %p262 = scmp.ne.s32.totalorder %s251, %s254
      %p263 = scmp.eq.s32.totalorder %s32, 3
      %p264 = por %p262, %p263
      %p265 = scmp.ne.s32.totalorder %s254, %s255
      %p266 = scmp.eq.s32.totalorder %s32, 0
      %p267 = por %p265, %p266
      %p268 = scmp.ne.s32.totalorder %s254, %s255
      %p269 = scmp.eq.s32.totalorder %s33, 3
      %p270 = por %p268, %p269
      %p272 = scmp.ne.s32.totalorder %s255, %s271
      %p273 = scmp.eq.s32.totalorder %s33, 0
      %p274 = por %p272, %p273
      %p275 = scmp.le.s32.totalorder 1, %s27
      %p276 = scmp.lt.s32.totalorder %s27, 5
      %p277 = pnand %p275, %p276
      %p278 = pneg %p277
      // Predicated region
      $region9: #{tpu_custom_call.1} parent=5 // pred_check
        _
      $region10: #{tpu_custom_call.1} parent=5 // pred_check_branch
        %280 = sbr.rel (%p277) target = $region12
      $region11: #{tpu_custom_call.1} parent=5 // pred_region
        %s281 = ssub.s32 %s27, 1
        // Predicated region
        $region13: #{tpu_custom_call.1} parent=11 // pred_check
          %p282 = pneg %p134
        $region14: #{tpu_custom_call.1} parent=11 // pred_check_branch
          %284 = sbr.rel (%p282) target = $region16
        $region15: #{tpu_custom_call.1} parent=11 // pred_region
          %p285 = scmp.lt.s32.totalorder %s39, 0
          %s286 = scalar_select %p285, %s39, 0
          %s287 = smul.addr %s286, 2
          %s288 = scalar_lea.vmem %s2, %s287
        $region16: #{tpu_custom_call.1} parent=11 // pred_fallthru
          _
        // Predicated region
        $region17: #{tpu_custom_call.1} parent=11 // pred_check
          %p289 = pneg %p211
        $region18: #{tpu_custom_call.1} parent=11 // pred_check_branch
          %291 = sbr.rel (%p289) target = $region20
        $region19: #{tpu_custom_call.1} parent=11 // pred_region
          %s293 = ssub.s32 16, 16
          %294 = vsyncadd [#allocation9], %s293
          %s296 = sshll.u32 %s5, 4
          %s297 = int_to_ptr.vmem [resolvable:$true] %s296
          %299 = dma.vmem_to_smem %s297, 16, [#allocation12], [#allocation9]
        $region20: #{tpu_custom_call.1} parent=11 // pred_fallthru
          _
      $region12: #{tpu_custom_call.1} parent=5 // pred_fallthru
        _
      %p300 = scmp.lt.s32.totalorder %s27, 4
      // Predicated region
      $region21: #{tpu_custom_call.1} parent=5 // pred_check
        %p301 = pneg %p300
      $region22: #{tpu_custom_call.1} parent=5 // pred_check_branch
        %303 = sbr.rel (%p301) target = $region24
      $region23: #{tpu_custom_call.1} parent=5 // pred_region
        // Predicated region
        $region25: #{tpu_custom_call.1} parent=23 // pred_check
          %p304 = pneg %p70
        $region26: #{tpu_custom_call.1} parent=23 // pred_check_branch
          %306 = sbr.rel (%p304) target = $region28
        $region27: #{tpu_custom_call.1} parent=23 // pred_region
          %s307 = sand.u32 %s60, 1
          %s308 = scalar_lea.sflag [#allocation7], %s307
          %s309 = sand.u32 %s60, 1
          %s310 = smul.addr %s309, 22
          %s311 = scalar_lea.vmem [#allocation6], %s310
          %s312 = smul.u32 %s36, %s35
          %s314 = ssub.s32 352, 352
          %315 = vsyncadd %s308, %s314
          %s316 = smul.addr %s34, 11
          %s317 = sadd.s32 %s312, %s316
          %s318 = smul.addr %s317, 32
          %s319 = scalar_lea.hbm %s0, %s318
          %s320 = sshll.u32 %s311, 4
          %s321 = int_to_ptr.vmem [resolvable:$true] %s320
          %326 = dma.hbm_to_vmem [thread:$0]  %s319, 352, %s321, %s308, 32, 32, 2
        $region28: #{tpu_custom_call.1} parent=23 // pred_fallthru
          _
        // Predicated region
        $region29: #{tpu_custom_call.1} parent=23 // pred_check
          %p327 = pneg %p102
        $region30: #{tpu_custom_call.1} parent=23 // pred_check_branch
          %329 = sbr.rel (%p327) target = $region32
        $region31: #{tpu_custom_call.1} parent=23 // pred_region
          %s330 = sand.u32 %s92, 1
          %s331 = scalar_lea.sflag [#allocation11], %s330
          %s332 = sand.u32 %s92, 1
          %s333 = smul.addr %s332, 2
          %s334 = scalar_lea.vmem [#allocation10], %s333
          %s335 = ssub.s32 1, %s35
          %s336 = smul.u32 %s36, %s335
          %s338 = ssub.s32 32, 32
          %339 = vsyncadd %s331, %s338
          %s340 = sadd.s32 %s336, 2
          %s341 = smul.addr %s34, 11
          %s342 = sadd.s32 %s340, %s341
          %s343 = smul.addr %s342, 32
          %s344 = scalar_lea.hbm %s1, %s343
          %s346 = sshll.u32 %s334, 4
          %s347 = int_to_ptr.vmem [resolvable:$true] %s346
          %349 = dma.hbm_to_vmem [thread:$0]  %s344, 32, %s347, %s331
        $region32: #{tpu_custom_call.1} parent=23 // pred_fallthru
          _
        // Predicated region
        $region33: #{tpu_custom_call.1} parent=23 // pred_check
          %p350 = pneg %p156
        $region34: #{tpu_custom_call.1} parent=23 // pred_check_branch
          %352 = sbr.rel (%p350) target = $region36
        $region35: #{tpu_custom_call.1} parent=23 // pred_region
          %p353 = scmp.lt.s32.totalorder %s34, 1
          %s354 = scalar_select %p353, %s34, 1
          %p355 = scmp.lt.s32.totalorder %s36, 0
          %s356 = scalar_select %p355, %s36, 0
          %s357 = sadd.s32 %s356, %s354
          %s358 = smul.addr %s357, 2
          %s359 = scalar_lea.vmem %s3, %s358
        $region36: #{tpu_custom_call.1} parent=23 // pred_fallthru
          _
        // Predicated region
        $region37: #{tpu_custom_call.1} parent=23 // pred_check
          %p360 = pneg %p184
        $region38: #{tpu_custom_call.1} parent=23 // pred_check_branch
          %362 = sbr.rel (%p360) target = $region40
        $region39: #{tpu_custom_call.1} parent=23 // pred_region
          %p363 = scmp.lt.s32.totalorder %s34, 1
          %s364 = scalar_select %p363, %s34, 1
          %p365 = scmp.lt.s32.totalorder %s36, 0
          %s366 = scalar_select %p365, %s36, 0
          %s367 = sadd.s32 %s366, %s364
          %s368 = smul.addr %s367, 2
          %s369 = scalar_lea.vmem %s4, %s368
        $region40: #{tpu_custom_call.1} parent=23 // pred_fallthru
          _
      $region24: #{tpu_custom_call.1} parent=5 // pred_fallthru
        _
      %p370 = scmp.le.s32.totalorder 1, %s27
      %p371 = scmp.lt.s32.totalorder %s27, 5
      %p372 = pnand %p370, %p371
      %p373 = pneg %p372
      // Predicated region
      $region41: #{tpu_custom_call.1} parent=5 // pred_check
        _
      $region42: #{tpu_custom_call.1} parent=5 // pred_check_branch
        %375 = sbr.rel (%p372) target = $region44
      $region43: #{tpu_custom_call.1} parent=5 // pred_region
        %s376 = ssub.s32 %s27, 1
        %s377 = sand.u32 %s63, 1
        %s378 = scalar_lea.sflag [#allocation7], %s377
        %s379 = sand.u32 %s63, 1
        %s380 = smul.addr %s379, 22
        %s381 = scalar_lea.vmem [#allocation6], %s380
        // Predicated region
        $region45: #{tpu_custom_call.1} parent=43 // pred_check
          %p382 = pneg %p76
        $region46: #{tpu_custom_call.1} parent=43 // pred_check_branch
          %384 = sbr.rel (%p382) target = $region48
        $region47: #{tpu_custom_call.1} parent=43 // pred_region
          %385 = dma.done %s378, 352
        $region48: #{tpu_custom_call.1} parent=43 // pred_fallthru
          _
        %s386 = sand.u32 %s95, 1
        %s387 = scalar_lea.sflag [#allocation11], %s386
        %s388 = sand.u32 %s95, 1
        %s389 = smul.addr %s388, 2
        %s390 = scalar_lea.vmem [#allocation10], %s389
        // Predicated region
        $region49: #{tpu_custom_call.1} parent=43 // pred_check
          %p391 = pneg %p108
        $region50: #{tpu_custom_call.1} parent=43 // pred_check_branch
          %393 = sbr.rel (%p391) target = $region52
        $region51: #{tpu_custom_call.1} parent=43 // pred_region
          %394 = dma.done %s387, 32
        $region52: #{tpu_custom_call.1} parent=43 // pred_fallthru
          _
        // Predicated region
        $region53: #{tpu_custom_call.1} parent=43 // pred_check
          %p395 = pneg %p211
        $region54: #{tpu_custom_call.1} parent=43 // pred_check_branch
          %397 = sbr.rel (%p395) target = $region56
        $region55: #{tpu_custom_call.1} parent=43 // pred_region
          %398 = dma.done [#allocation9], 16
        $region56: #{tpu_custom_call.1} parent=43 // pred_fallthru
          _
        %399 = sfence
        %s400 = sand.u32 %s63, 1
        %s401 = scalar_lea.sflag [#allocation7], %s400
        %s402 = sand.u32 %s63, 1
        %s403 = smul.addr %s402, 22
        %s404 = scalar_lea.vmem [#allocation6], %s403
        %p405 = pneg %p76
        %p406 = pneg %p73
        %s407 = sand.u32 %s95, 1
        %s408 = scalar_lea.sflag [#allocation11], %s407
        %s409 = sand.u32 %s95, 1
        %s410 = smul.addr %s409, 2
        %s411 = scalar_lea.vmem [#allocation10], %s410
        %p412 = pneg %p108
        %p413 = pneg %p105
        %p414 = scmp.lt.s32.totalorder %s39, 0
        %s415 = scalar_select %p414, %s39, 0
        %s416 = smul.addr %s415, 2
        %s417 = scalar_lea.vmem %s2, %s416
        %p418 = pneg %p134
        %p419 = pneg %p131
        %p420 = scmp.lt.s32.totalorder %s37, 1
        %s421 = scalar_select %p420, %s37, 1
        %p422 = scmp.lt.s32.totalorder %s39, 0
        %s423 = scalar_select %p422, %s39, 0
        %s424 = sadd.s32 %s423, %s421
        %s425 = smul.addr %s424, 2
        %s426 = scalar_lea.vmem %s3, %s425
        %p427 = pneg %p162
        %p428 = pneg %p159
        %p429 = scmp.lt.s32.totalorder %s37, 1
        %s430 = scalar_select %p429, %s37, 1
        %p431 = scmp.lt.s32.totalorder %s39, 0
        %s432 = scalar_select %p431, %s39, 0
        %s433 = sadd.s32 %s432, %s430
        %s434 = smul.addr %s433, 2
        %s435 = scalar_lea.vmem %s4, %s434
        %p436 = pneg %p190
        %p437 = pneg %p187
        %p438 = pneg %p211
        %p439 = pneg %p208
        %p440 = pneg %p241
        %p441 = pneg %p238
        %s442 = sand.u32 %s228, 1
        %s443 = scalar_lea.sflag [#allocation8], %s442
        %s444 = sand.u32 %s228, 1
        %s445 = smul.addr %s444, 6
        %s446 = scalar_lea.vmem [#allocation13], %s445
        %p447 = pneg %p267
        %p448 = pneg %p264
        %s449 = sand.u32 %s254, 1
        %s450 = scalar_lea.sflag [#allocation15], %s449
        %s451 = sand.u32 %s254, 1
        %s452 = scalar_lea.vmem [#allocation14], %s451
        %s453 = smul.u32 %s39, %s38
        %s454 = ssub.s32 1, %s38
        %s455 = smul.u32 %s39, %s454
        %p456 = scmp.lt.s32.totalorder %s39, 0
        %s457 = scalar_select %p456, %s39, 0
        %s458 = smul.addr %s457, 2
        %s459 = scalar_lea.vmem %s2, %s458
        %p460 = scmp.lt.s32.totalorder %s37, 1
        %s461 = scalar_select %p460, %s37, 1
        %p462 = scmp.lt.s32.totalorder %s39, 0
        %s463 = scalar_select %p462, %s39, 0
        %s464 = sadd.s32 %s463, %s461
        %s465 = smul.addr %s464, 2
        %s466 = scalar_lea.vmem %s3, %s465
        %p467 = scmp.lt.s32.totalorder %s37, 1
        %s468 = scalar_select %p467, %s37, 1
        %p469 = scmp.lt.s32.totalorder %s39, 0
        %s470 = scalar_select %p469, %s39, 0
        %s471 = sadd.s32 %s470, %s468
        %s472 = smul.addr %s471, 2
        %s473 = scalar_lea.vmem %s4, %s472
        %s474 = smul.u32 %s39, %s38
        %v475 = vld [vmem:[%s459] sm:$0x3]
        %s476 = scalar_lea.vmem %s459, 2
        %v477 = vld [vmem:[%s476] sm:$0x3]
        %v478 = vld [vmem:[%s466] sm:$0x3]
        %v479 = vld [vmem:[%s473] sm:$0x3]
        %p480 = scmp.eq.s32.totalorder %s38, 0
        // Predicated region
        $region57: #{tpu_custom_call.1} parent=43 // pred_check
          %p481 = pneg %p480
        $region58: #{tpu_custom_call.1} parent=43 // pred_check_branch
          %483 = sbr.rel (%p481) target = $region60
        $region59: #{tpu_custom_call.1} parent=43 // pred_region
          %p484 = scmp.eq.s32.totalorder %s39, 0
          // Predicated region
          $region61: #{tpu_custom_call.1} parent=59 // pred_check
            %p485 = pneg %p484
          $region62: #{tpu_custom_call.1} parent=59 // pred_check_branch
            %487 = sbr.rel (%p485) target = $region64
          $region63: #{tpu_custom_call.1} parent=59 // pred_region
            %s488 = scalar_lea.smem [#allocation3], 0
            %489 = sst [smem:[%s488]] 0.0
            %s490 = scalar_lea.smem [#allocation3], 1
            %491 = sst [smem:[%s490]] 0.0
            %s492 = scalar_lea.smem [#allocation3], 2
            %493 = sst [smem:[%s492]] 0.0
            %s494 = scalar_lea.smem [#allocation3], 3
            %495 = sst [smem:[%s494]] 0.0
            %s496 = scalar_lea.smem [#allocation3], 4
            %497 = sst [smem:[%s496]] 0.0
            %s498 = scalar_lea.smem [#allocation4], 0
            %499 = sst [smem:[%s498]] 0
            %s500 = scalar_lea.smem [#allocation3], 128
            %501 = sst [smem:[%s500]] 0.0
            %s502 = scalar_lea.smem [#allocation3], 129
            %503 = sst [smem:[%s502]] 0.0
            %s504 = scalar_lea.smem [#allocation3], 130
            %505 = sst [smem:[%s504]] 0.0
            %s506 = scalar_lea.smem [#allocation3], 131
            %507 = sst [smem:[%s506]] 0.0
            %s508 = scalar_lea.smem [#allocation3], 132
            %509 = sst [smem:[%s508]] 0.0
            %s510 = scalar_lea.smem [#allocation4], 1
            %511 = sst [smem:[%s510]] 0
            %s512 = scalar_lea.smem [#allocation3], 256
            %513 = sst [smem:[%s512]] 0.0
            %s514 = scalar_lea.smem [#allocation3], 257
            %515 = sst [smem:[%s514]] 0.0
            %s516 = scalar_lea.smem [#allocation3], 258
            %517 = sst [smem:[%s516]] 0.0
            %s518 = scalar_lea.smem [#allocation3], 259
            %519 = sst [smem:[%s518]] 0.0
            %s520 = scalar_lea.smem [#allocation3], 260
            %521 = sst [smem:[%s520]] 0.0
            %s522 = scalar_lea.smem [#allocation4], 2
            %523 = sst [smem:[%s522]] 0
            %s524 = scalar_lea.smem [#allocation5], 0
            %525 = sst [smem:[%s524]] 0.0
            %s526 = scalar_lea.smem [#allocation5], 1
            %527 = sst [smem:[%s526]] 0.0
          $region64: #{tpu_custom_call.1} parent=59 // pred_fallthru
            _
          %v528 = vld [vmem:[%s390] sm:$0x3]
          %vm529 = vcmp.eq.s32.totalorder %v478, 1
          %v530 = vsel %vm529, 1, 0
          %v531 = vcvt.s32.f32 %v530
          %s532 = sld [smem:[#allocation3]]
          %vm533 = vcmask 1041408
          %v534 = vsel %vm533, %v531, 0.0
          %535 = vadd.xlane.f32.xlu0 %v534
          %v536 = vpop.xlane.xlu0 %535
          %v537 = vrot.slane %v536, 4
          %v538 = vadd.f32 %v536, %v537
          %v539 = vrot.slane %v538, 2
          %v540 = vadd.f32 %v538, %v539
          %v541 = vrot.slane %v540, 1
          %v542 = vadd.f32 %v540, %v541
          %s543 = vtos %v542
          %s544 = sadd.f32 %s532, %s543
          %s545 = scalar_lea.smem [#allocation3], 0
          %546 = sst [smem:[%s545]] %s544
          %s547 = sld [smem:[#allocation3 + $0x1]]
          %v548 = vmul.f32 %v475, %v531
          %v549 = vsel %vm533, %v548, 0.0
          %550 = vadd.xlane.f32.xlu0 %v549
          %v551 = vpop.xlane.xlu0 %550
          %v552 = vrot.slane %v551, 4
          %v553 = vadd.f32 %v551, %v552
          %v554 = vrot.slane %v553, 2
          %v555 = vadd.f32 %v553, %v554
          %v556 = vrot.slane %v555, 1
          %v557 = vadd.f32 %v555, %v556
          %s558 = vtos %v557
          %s559 = sadd.f32 %s547, %s558
          %s560 = scalar_lea.smem [#allocation3], 1
          %561 = sst [smem:[%s560]] %s559
          %s562 = sld [smem:[#allocation3 + $0x2]]
          %v563 = vmul.f32 %v477, %v531
          %v564 = vsel %vm533, %v563, 0.0
          %565 = vadd.xlane.f32.xlu0 %v564
          %v566 = vpop.xlane.xlu0 %565
          %v567 = vrot.slane %v566, 4
          %v568 = vadd.f32 %v566, %v567
          %v569 = vrot.slane %v568, 2
          %v570 = vadd.f32 %v568, %v569
          %v571 = vrot.slane %v570, 1
          %v572 = vadd.f32 %v570, %v571
          %s573 = vtos %v572
          %s574 = sadd.f32 %s562, %s573
          %s575 = scalar_lea.smem [#allocation3], 2
          %576 = sst [smem:[%s575]] %s574
          %s577 = sld [smem:[#allocation3 + $0x3]]
          %v578 = vmul.f32 %v528, %v531
          %v579 = vsel %vm533, %v578, 0.0
          %580 = vadd.xlane.f32.xlu0 %v579
          %v581 = vpop.xlane.xlu0 %580
          %v582 = vrot.slane %v581, 4
          %v583 = vadd.f32 %v581, %v582
          %v584 = vrot.slane %v583, 2
          %v585 = vadd.f32 %v583, %v584
          %v586 = vrot.slane %v585, 1
          %v587 = vadd.f32 %v585, %v586
          %s588 = vtos %v587
          %s589 = sadd.f32 %s577, %s588
          %s590 = scalar_lea.smem [#allocation3], 3
          %591 = sst [smem:[%s590]] %s589
          %s592 = sld [smem:[#allocation3 + $0x4]]
          %v593 = vmul.f32 %v528, %v528
          %v594 = vmul.f32 %v593, %v531
          %v595 = vsel %vm533, %v594, 0.0
          %596 = vadd.xlane.f32.xlu0 %v595
          %v597 = vpop.xlane.xlu0 %596
          %v598 = vrot.slane %v597, 4
          %v599 = vadd.f32 %v597, %v598
          %v600 = vrot.slane %v599, 2
          %v601 = vadd.f32 %v599, %v600
          %v602 = vrot.slane %v601, 1
          %v603 = vadd.f32 %v601, %v602
          %s604 = vtos %v603
          %s605 = sadd.f32 %s592, %s604
          %s606 = scalar_lea.smem [#allocation3], 4
          %607 = sst [smem:[%s606]] %s605
          %s608 = sld [smem:[#allocation4]]
          %v609 = vsel %vm529, %v479, 0
          %v610 = vsel %vm533, %v609, 2147483648
          %v611 = vand.u32 %v610, 65535
          %v612 = vshra.s32 %v610, 16
          %v613 = vcvt.s32.f32 %v611
          %v614 = vcvt.s32.f32 %v612
          %615 = vmax.xlane.f32.xlu0 %v614
          %v616 = vpop.xlane.xlu0 %615
          %vm617 = vcmp.eq.f32.partialorder %v614, %v616
          %v618 = vsel %vm617, %v613, -inf
          %619 = vmax.xlane.f32.xlu0 %v618
          %v620 = vpop.xlane.xlu0 %619
          %v621 = vcvt.f32.s32 %v620
          %v622 = vcvt.f32.s32 %v616
          %v623 = vshll.u32 %v622, 16
          %v624 = vadd.s32 %v623, %v621
          %v625 = vrot.slane %v624, 4
          %vm626 = vcmp.gt.s32.totalorder %v624, %v625
          %v627 = vsel %vm626, %v624, %v625
          %v628 = vrot.slane %v627, 2
          %vm629 = vcmp.gt.s32.totalorder %v627, %v628
          %v630 = vsel %vm629, %v627, %v628
          %v631 = vrot.slane %v630, 1
          %vm632 = vcmp.gt.s32.totalorder %v630, %v631
          %v633 = vsel %vm632, %v630, %v631
          %s634 = vtos %v633
          %p635 = scmp.gt.s32.totalorder %s608, %s634
          %s636 = scalar_select %p635, %s608, %s634
          %s637 = scalar_lea.smem [#allocation4], 0
          %638 = sst [smem:[%s637]] %s636
          %vm639 = vcmp.eq.s32.totalorder %v478, 2
          %v640 = vsel %vm639, 1, 0
          %v641 = vcvt.s32.f32 %v640
          %s642 = sld [smem:[#allocation3 + $0x80]]
          %v643 = vsel %vm533, %v641, 0.0
          %644 = vadd.xlane.f32.xlu0 %v643
          %v645 = vpop.xlane.xlu0 %644
          %v646 = vrot.slane %v645, 4
          %v647 = vadd.f32 %v645, %v646
          %v648 = vrot.slane %v647, 2
          %v649 = vadd.f32 %v647, %v648
          %v650 = vrot.slane %v649, 1
          %v651 = vadd.f32 %v649, %v650
          %s652 = vtos %v651
          %s653 = sadd.f32 %s642, %s652
          %s654 = scalar_lea.smem [#allocation3], 128
          %655 = sst [smem:[%s654]] %s653
          %s656 = sld [smem:[#allocation3 + $0x81]]
          %v657 = vmul.f32 %v475, %v641
          %v658 = vsel %vm533, %v657, 0.0
          %659 = vadd.xlane.f32.xlu0 %v658
          %v660 = vpop.xlane.xlu0 %659
          %v661 = vrot.slane %v660, 4
          %v662 = vadd.f32 %v660, %v661
          %v663 = vrot.slane %v662, 2
          %v664 = vadd.f32 %v662, %v663
          %v665 = vrot.slane %v664, 1
          %v666 = vadd.f32 %v664, %v665
          %s667 = vtos %v666
          %s668 = sadd.f32 %s656, %s667
          %s669 = scalar_lea.smem [#allocation3], 129
          %670 = sst [smem:[%s669]] %s668
          %s671 = sld [smem:[#allocation3 + $0x82]]
          %v672 = vmul.f32 %v477, %v641
          %v673 = vsel %vm533, %v672, 0.0
          %674 = vadd.xlane.f32.xlu0 %v673
          %v675 = vpop.xlane.xlu0 %674
          %v676 = vrot.slane %v675, 4
          %v677 = vadd.f32 %v675, %v676
          %v678 = vrot.slane %v677, 2
          %v679 = vadd.f32 %v677, %v678
          %v680 = vrot.slane %v679, 1
          %v681 = vadd.f32 %v679, %v680
          %s682 = vtos %v681
          %s683 = sadd.f32 %s671, %s682
          %s684 = scalar_lea.smem [#allocation3], 130
          %685 = sst [smem:[%s684]] %s683
          %s686 = sld [smem:[#allocation3 + $0x83]]
          %v687 = vmul.f32 %v528, %v641
          %v688 = vsel %vm533, %v687, 0.0
          %689 = vadd.xlane.f32.xlu0 %v688
          %v690 = vpop.xlane.xlu0 %689
          %v691 = vrot.slane %v690, 4
          %v692 = vadd.f32 %v690, %v691
          %v693 = vrot.slane %v692, 2
          %v694 = vadd.f32 %v692, %v693
          %v695 = vrot.slane %v694, 1
          %v696 = vadd.f32 %v694, %v695
          %s697 = vtos %v696
          %s698 = sadd.f32 %s686, %s697
          %s699 = scalar_lea.smem [#allocation3], 131
          %700 = sst [smem:[%s699]] %s698
          %s701 = sld [smem:[#allocation3 + $0x84]]
          %v702 = vmul.f32 %v593, %v641
          %v703 = vsel %vm533, %v702, 0.0
          %704 = vadd.xlane.f32.xlu0 %v703
          %v705 = vpop.xlane.xlu0 %704
          %v706 = vrot.slane %v705, 4
          %v707 = vadd.f32 %v705, %v706
          %v708 = vrot.slane %v707, 2
          %v709 = vadd.f32 %v707, %v708
          %v710 = vrot.slane %v709, 1
          %v711 = vadd.f32 %v709, %v710
          %s712 = vtos %v711
          %s713 = sadd.f32 %s701, %s712
          %s714 = scalar_lea.smem [#allocation3], 132
          %715 = sst [smem:[%s714]] %s713
          %s716 = sld [smem:[#allocation4 + $0x1]]
          %v717 = vsel %vm639, %v479, 0
          %v718 = vsel %vm533, %v717, 2147483648
          %v719 = vand.u32 %v718, 65535
          %v720 = vshra.s32 %v718, 16
          %v721 = vcvt.s32.f32 %v719
          %v722 = vcvt.s32.f32 %v720
          %723 = vmax.xlane.f32.xlu0 %v722
          %v724 = vpop.xlane.xlu0 %723
          %vm725 = vcmp.eq.f32.partialorder %v722, %v724
          %v726 = vsel %vm725, %v721, -inf
          %727 = vmax.xlane.f32.xlu0 %v726
          %v728 = vpop.xlane.xlu0 %727
          %v729 = vcvt.f32.s32 %v728
          %v730 = vcvt.f32.s32 %v724
          %v731 = vshll.u32 %v730, 16
          %v732 = vadd.s32 %v731, %v729
          %v733 = vrot.slane %v732, 4
          %vm734 = vcmp.gt.s32.totalorder %v732, %v733
          %v735 = vsel %vm734, %v732, %v733
          %v736 = vrot.slane %v735, 2
          %vm737 = vcmp.gt.s32.totalorder %v735, %v736
          %v738 = vsel %vm737, %v735, %v736
          %v739 = vrot.slane %v738, 1
          %vm740 = vcmp.gt.s32.totalorder %v738, %v739
          %v741 = vsel %vm740, %v738, %v739
          %s742 = vtos %v741
          %p743 = scmp.gt.s32.totalorder %s716, %s742
          %s744 = scalar_select %p743, %s716, %s742
          %s745 = scalar_lea.smem [#allocation4], 1
          %746 = sst [smem:[%s745]] %s744
          %vm747 = vcmp.eq.s32.totalorder %v478, 3
          %v748 = vsel %vm747, 1, 0
          %v749 = vcvt.s32.f32 %v748
          %s750 = sld [smem:[#allocation3 + $0x100]]
          %v751 = vsel %vm533, %v749, 0.0
          %752 = vadd.xlane.f32.xlu0 %v751
          %v753 = vpop.xlane.xlu0 %752
          %v754 = vrot.slane %v753, 4
          %v755 = vadd.f32 %v753, %v754
          %v756 = vrot.slane %v755, 2
          %v757 = vadd.f32 %v755, %v756
          %v758 = vrot.slane %v757, 1
          %v759 = vadd.f32 %v757, %v758
          %s760 = vtos %v759
          %s761 = sadd.f32 %s750, %s760
          %s762 = scalar_lea.smem [#allocation3], 256
          %763 = sst [smem:[%s762]] %s761
          %s764 = sld [smem:[#allocation3 + $0x101]]
          %v765 = vmul.f32 %v475, %v749
          %v766 = vsel %vm533, %v765, 0.0
          %767 = vadd.xlane.f32.xlu0 %v766
          %v768 = vpop.xlane.xlu0 %767
          %v769 = vrot.slane %v768, 4
          %v770 = vadd.f32 %v768, %v769
          %v771 = vrot.slane %v770, 2
          %v772 = vadd.f32 %v770, %v771
          %v773 = vrot.slane %v772, 1
          %v774 = vadd.f32 %v772, %v773
          %s775 = vtos %v774
          %s776 = sadd.f32 %s764, %s775
          %s777 = scalar_lea.smem [#allocation3], 257
          %778 = sst [smem:[%s777]] %s776
          %s779 = sld [smem:[#allocation3 + $0x102]]
          %v780 = vmul.f32 %v477, %v749
          %v781 = vsel %vm533, %v780, 0.0
          %782 = vadd.xlane.f32.xlu0 %v781
          %v783 = vpop.xlane.xlu0 %782
          %v784 = vrot.slane %v783, 4
          %v785 = vadd.f32 %v783, %v784
          %v786 = vrot.slane %v785, 2
          %v787 = vadd.f32 %v785, %v786
          %v788 = vrot.slane %v787, 1
          %v789 = vadd.f32 %v787, %v788
          %s790 = vtos %v789
          %s791 = sadd.f32 %s779, %s790
          %s792 = scalar_lea.smem [#allocation3], 258
          %793 = sst [smem:[%s792]] %s791
          %s794 = sld [smem:[#allocation3 + $0x103]]
          %v795 = vmul.f32 %v528, %v749
          %v796 = vsel %vm533, %v795, 0.0
          %797 = vadd.xlane.f32.xlu0 %v796
          %v798 = vpop.xlane.xlu0 %797
          %v799 = vrot.slane %v798, 4
          %v800 = vadd.f32 %v798, %v799
          %v801 = vrot.slane %v800, 2
          %v802 = vadd.f32 %v800, %v801
          %v803 = vrot.slane %v802, 1
          %v804 = vadd.f32 %v802, %v803
          %s805 = vtos %v804
          %s806 = sadd.f32 %s794, %s805
          %s807 = scalar_lea.smem [#allocation3], 259
          %808 = sst [smem:[%s807]] %s806
          %s809 = sld [smem:[#allocation3 + $0x104]]
          %v810 = vmul.f32 %v593, %v749
          %v811 = vsel %vm533, %v810, 0.0
          %812 = vadd.xlane.f32.xlu0 %v811
          %v813 = vpop.xlane.xlu0 %812
          %v814 = vrot.slane %v813, 4
          %v815 = vadd.f32 %v813, %v814
          %v816 = vrot.slane %v815, 2
          %v817 = vadd.f32 %v815, %v816
          %v818 = vrot.slane %v817, 1
          %v819 = vadd.f32 %v817, %v818
          %s820 = vtos %v819
          %s821 = sadd.f32 %s809, %s820
          %s822 = scalar_lea.smem [#allocation3], 260
          %823 = sst [smem:[%s822]] %s821
          %s824 = sld [smem:[#allocation4 + $0x2]]
          %v825 = vsel %vm747, %v479, 0
          %v826 = vsel %vm533, %v825, 2147483648
          %v827 = vand.u32 %v826, 65535
          %v828 = vshra.s32 %v826, 16
          %v829 = vcvt.s32.f32 %v827
          %v830 = vcvt.s32.f32 %v828
          %831 = vmax.xlane.f32.xlu0 %v830
          %v832 = vpop.xlane.xlu0 %831
          %vm833 = vcmp.eq.f32.partialorder %v830, %v832
          %v834 = vsel %vm833, %v829, -inf
          %835 = vmax.xlane.f32.xlu0 %v834
          %v836 = vpop.xlane.xlu0 %835
          %v837 = vcvt.f32.s32 %v836
          %v838 = vcvt.f32.s32 %v832
          %v839 = vshll.u32 %v838, 16
          %v840 = vadd.s32 %v839, %v837
          %v841 = vrot.slane %v840, 4
          %vm842 = vcmp.gt.s32.totalorder %v840, %v841
          %v843 = vsel %vm842, %v840, %v841
          %v844 = vrot.slane %v843, 2
          %vm845 = vcmp.gt.s32.totalorder %v843, %v844
          %v846 = vsel %vm845, %v843, %v844
          %v847 = vrot.slane %v846, 1
          %vm848 = vcmp.gt.s32.totalorder %v846, %v847
          %v849 = vsel %vm848, %v846, %v847
          %s850 = vtos %v849
          %p851 = scmp.gt.s32.totalorder %s824, %s850
          %s852 = scalar_select %p851, %s824, %s850
          %s853 = scalar_lea.smem [#allocation4], 2
          %854 = sst [smem:[%s853]] %s852
        $region60: #{tpu_custom_call.1} parent=43 // pred_fallthru
          _
        %p855 = scmp.eq.s32.totalorder %s38, 1
        // Predicated region
        $region65: #{tpu_custom_call.1} parent=43 // pred_check
          %p856 = pneg %p855
        $region66: #{tpu_custom_call.1} parent=43 // pred_check_branch
          %858 = sbr.rel (%p856) target = $region68
        $region67: #{tpu_custom_call.1} parent=43 // pred_region
          %s859 = scalar_lea.vmem %s381, 6 [#allocation6]
          %v860 = vld [vmem:[%s859] sm:$0x3]
          %v861 = vxor.u32 %v860, 2147483648
          %v862 = vmul.f32 %v861, 1.442695
          %v863 = vpow.pop %v862
          %v864 = vadd.f32 %v863, 1.0
          %v865 = vrcp.pop %v864
          %v866 = vmul.f32 1.0, %v865
          %867 = vst [vmem:[#allocation2] sm:$0x3] %v866
          %v868 = vmul.f32 %v866, %v866
          %vm869 = vcmask 1041408
          %v870 = vsel %vm869, %v868, 0.0
          %871 = vadd.xlane.f32.xlu0 %v870
          %v872 = vpop.xlane.xlu0 %871
          %v873 = vrot.slane %v872, 4
          %v874 = vadd.f32 %v872, %v873
          %v875 = vrot.slane %v874, 2
          %v876 = vadd.f32 %v874, %v875
          %v877 = vrot.slane %v876, 1
          %v878 = vadd.f32 %v876, %v877
          %s879 = vtos %v878
          %vm880 = vcmp.eq.s32.totalorder %v479, 1
          %v881 = vsel %vm880, %v868, 0.0
          %v882 = vsel %vm869, %v881, 0.0
          %883 = vadd.xlane.f32.xlu0 %v882
          %v884 = vpop.xlane.xlu0 %883
          %v885 = vrot.slane %v884, 4
          %v886 = vadd.f32 %v884, %v885
          %v887 = vrot.slane %v886, 2
          %v888 = vadd.f32 %v886, %v887
          %v889 = vrot.slane %v888, 1
          %v890 = vadd.f32 %v888, %v889
          %s891 = vtos %v890
          %s892 = ssub.f32 %s879, %s891
          %s893 = sadd.f32 %s892, 0.0
          %s894 = scalar_lea.vmem %s381, 8 [#allocation6]
          %v895 = vld [vmem:[%s894] sm:$0x3]
          %v896 = vxor.u32 %v895, 2147483648
          %v897 = vmul.f32 %v896, 1.442695
          %v898 = vpow.pop %v897
          %v899 = vadd.f32 %v898, 1.0
          %v900 = vrcp.pop %v899
          %v901 = vmul.f32 1.0, %v900
          %s902 = scalar_lea.vmem [#allocation2], 2
          %903 = vst [vmem:[%s902] sm:$0x3] %v901
          %v904 = vmul.f32 %v901, %v901
          %v905 = vsel %vm869, %v904, 0.0
          %906 = vadd.xlane.f32.xlu0 %v905
          %v907 = vpop.xlane.xlu0 %906
          %v908 = vrot.slane %v907, 4
          %v909 = vadd.f32 %v907, %v908
          %v910 = vrot.slane %v909, 2
          %v911 = vadd.f32 %v909, %v910
          %v912 = vrot.slane %v911, 1
          %v913 = vadd.f32 %v911, %v912
          %s914 = vtos %v913
          %vm915 = vcmp.eq.s32.totalorder %v479, 2
          %v916 = vsel %vm915, %v904, 0.0
          %v917 = vsel %vm869, %v916, 0.0
          %918 = vadd.xlane.f32.xlu0 %v917
          %v919 = vpop.xlane.xlu0 %918
          %v920 = vrot.slane %v919, 4
          %v921 = vadd.f32 %v919, %v920
          %v922 = vrot.slane %v921, 2
          %v923 = vadd.f32 %v921, %v922
          %v924 = vrot.slane %v923, 1
          %v925 = vadd.f32 %v923, %v924
          %s926 = vtos %v925
          %s927 = ssub.f32 %s914, %s926
          %s928 = sadd.f32 %s893, %s927
          %s929 = scalar_lea.vmem %s381, 10 [#allocation6]
          %v930 = vld [vmem:[%s929] sm:$0x3]
          %v931 = vxor.u32 %v930, 2147483648
          %v932 = vmul.f32 %v931, 1.442695
          %v933 = vpow.pop %v932
          %v934 = vadd.f32 %v933, 1.0
          %v935 = vrcp.pop %v934
          %v936 = vmul.f32 1.0, %v935
          %s937 = scalar_lea.vmem [#allocation2], 4
          %938 = vst [vmem:[%s937] sm:$0x3] %v936
          %v939 = vmul.f32 %v936, %v936
          %v940 = vsel %vm869, %v939, 0.0
          %941 = vadd.xlane.f32.xlu0 %v940
          %v942 = vpop.xlane.xlu0 %941
          %v943 = vrot.slane %v942, 4
          %v944 = vadd.f32 %v942, %v943
          %v945 = vrot.slane %v944, 2
          %v946 = vadd.f32 %v944, %v945
          %v947 = vrot.slane %v946, 1
          %v948 = vadd.f32 %v946, %v947
          %s949 = vtos %v948
          %vm950 = vcmp.eq.s32.totalorder %v479, 3
          %v951 = vsel %vm950, %v939, 0.0
          %v952 = vsel %vm869, %v951, 0.0
          %953 = vadd.xlane.f32.xlu0 %v952
          %v954 = vpop.xlane.xlu0 %953
          %v955 = vrot.slane %v954, 4
          %v956 = vadd.f32 %v954, %v955
          %v957 = vrot.slane %v956, 2
          %v958 = vadd.f32 %v956, %v957
          %v959 = vrot.slane %v958, 1
          %v960 = vadd.f32 %v958, %v959
          %s961 = vtos %v960
          %s962 = ssub.f32 %s949, %s961
          %s963 = sadd.f32 %s928, %s962
          %s964 = scalar_lea.vmem %s381, 12 [#allocation6]
          %v965 = vld [vmem:[%s964] sm:$0x3]
          %v966 = vxor.u32 %v965, 2147483648
          %v967 = vmul.f32 %v966, 1.442695
          %v968 = vpow.pop %v967
          %v969 = vadd.f32 %v968, 1.0
          %v970 = vrcp.pop %v969
          %v971 = vmul.f32 1.0, %v970
          %s972 = scalar_lea.vmem [#allocation2], 6
          %973 = vst [vmem:[%s972] sm:$0x3] %v971
          %v974 = vmul.f32 %v971, %v971
          %v975 = vsel %vm869, %v974, 0.0
          %976 = vadd.xlane.f32.xlu0 %v975
          %v977 = vpop.xlane.xlu0 %976
          %v978 = vrot.slane %v977, 4
          %v979 = vadd.f32 %v977, %v978
          %v980 = vrot.slane %v979, 2
          %v981 = vadd.f32 %v979, %v980
          %v982 = vrot.slane %v981, 1
          %v983 = vadd.f32 %v981, %v982
          %s984 = vtos %v983
          %vm985 = vcmp.eq.s32.totalorder %v479, 4
          %v986 = vsel %vm985, %v974, 0.0
          %v987 = vsel %vm869, %v986, 0.0
          %988 = vadd.xlane.f32.xlu0 %v987
          %v989 = vpop.xlane.xlu0 %988
          %v990 = vrot.slane %v989, 4
          %v991 = vadd.f32 %v989, %v990
          %v992 = vrot.slane %v991, 2
          %v993 = vadd.f32 %v991, %v992
          %v994 = vrot.slane %v993, 1
          %v995 = vadd.f32 %v993, %v994
          %s996 = vtos %v995
          %s997 = ssub.f32 %s984, %s996
          %s998 = sadd.f32 %s963, %s997
          %s999 = scalar_lea.vmem %s381, 14 [#allocation6]
          %v1000 = vld [vmem:[%s999] sm:$0x3]
          %v1001 = vxor.u32 %v1000, 2147483648
          %v1002 = vmul.f32 %v1001, 1.442695
          %v1003 = vpow.pop %v1002
          %v1004 = vadd.f32 %v1003, 1.0
          %v1005 = vrcp.pop %v1004
          %v1006 = vmul.f32 1.0, %v1005
          %s1007 = scalar_lea.vmem [#allocation2], 8
          %1008 = vst [vmem:[%s1007] sm:$0x3] %v1006
          %v1009 = vmul.f32 %v1006, %v1006
          %v1010 = vsel %vm869, %v1009, 0.0
          %1011 = vadd.xlane.f32.xlu0 %v1010
          %v1012 = vpop.xlane.xlu0 %1011
          %v1013 = vrot.slane %v1012, 4
          %v1014 = vadd.f32 %v1012, %v1013
          %v1015 = vrot.slane %v1014, 2
          %v1016 = vadd.f32 %v1014, %v1015
          %v1017 = vrot.slane %v1016, 1
          %v1018 = vadd.f32 %v1016, %v1017
          %s1019 = vtos %v1018
          %vm1020 = vcmp.eq.s32.totalorder %v479, 5
          %v1021 = vsel %vm1020, %v1009, 0.0
          %v1022 = vsel %vm869, %v1021, 0.0
          %1023 = vadd.xlane.f32.xlu0 %v1022
          %v1024 = vpop.xlane.xlu0 %1023
          %v1025 = vrot.slane %v1024, 4
          %v1026 = vadd.f32 %v1024, %v1025
          %v1027 = vrot.slane %v1026, 2
          %v1028 = vadd.f32 %v1026, %v1027
          %v1029 = vrot.slane %v1028, 1
          %v1030 = vadd.f32 %v1028, %v1029
          %s1031 = vtos %v1030
          %s1032 = ssub.f32 %s1019, %s1031
          %s1033 = sadd.f32 %s998, %s1032
          %s1034 = scalar_lea.vmem %s381, 16 [#allocation6]
          %v1035 = vld [vmem:[%s1034] sm:$0x3]
          %v1036 = vxor.u32 %v1035, 2147483648
          %v1037 = vmul.f32 %v1036, 1.442695
          %v1038 = vpow.pop %v1037
          %v1039 = vadd.f32 %v1038, 1.0
          %v1040 = vrcp.pop %v1039
          %v1041 = vmul.f32 1.0, %v1040
          %s1042 = scalar_lea.vmem [#allocation2], 10
          %1043 = vst [vmem:[%s1042] sm:$0x3] %v1041
          %v1044 = vmul.f32 %v1041, %v1041
          %v1045 = vsel %vm869, %v1044, 0.0
          %1046 = vadd.xlane.f32.xlu0 %v1045
          %v1047 = vpop.xlane.xlu0 %1046
          %v1048 = vrot.slane %v1047, 4
          %v1049 = vadd.f32 %v1047, %v1048
          %v1050 = vrot.slane %v1049, 2
          %v1051 = vadd.f32 %v1049, %v1050
          %v1052 = vrot.slane %v1051, 1
          %v1053 = vadd.f32 %v1051, %v1052
          %s1054 = vtos %v1053
          %vm1055 = vcmp.eq.s32.totalorder %v479, 6
          %v1056 = vsel %vm1055, %v1044, 0.0
          %v1057 = vsel %vm869, %v1056, 0.0
          %1058 = vadd.xlane.f32.xlu0 %v1057
          %v1059 = vpop.xlane.xlu0 %1058
          %v1060 = vrot.slane %v1059, 4
          %v1061 = vadd.f32 %v1059, %v1060
          %v1062 = vrot.slane %v1061, 2
          %v1063 = vadd.f32 %v1061, %v1062
          %v1064 = vrot.slane %v1063, 1
          %v1065 = vadd.f32 %v1063, %v1064
          %s1066 = vtos %v1065
          %s1067 = ssub.f32 %s1054, %s1066
          %s1068 = sadd.f32 %s1033, %s1067
          %s1069 = scalar_lea.vmem %s381, 18 [#allocation6]
          %v1070 = vld [vmem:[%s1069] sm:$0x3]
          %v1071 = vxor.u32 %v1070, 2147483648
          %v1072 = vmul.f32 %v1071, 1.442695
          %v1073 = vpow.pop %v1072
          %v1074 = vadd.f32 %v1073, 1.0
          %v1075 = vrcp.pop %v1074
          %v1076 = vmul.f32 1.0, %v1075
          %s1077 = scalar_lea.vmem [#allocation2], 12
          %1078 = vst [vmem:[%s1077] sm:$0x3] %v1076
          %v1079 = vmul.f32 %v1076, %v1076
          %v1080 = vsel %vm869, %v1079, 0.0
          %1081 = vadd.xlane.f32.xlu0 %v1080
          %v1082 = vpop.xlane.xlu0 %1081
          %v1083 = vrot.slane %v1082, 4
          %v1084 = vadd.f32 %v1082, %v1083
          %v1085 = vrot.slane %v1084, 2
          %v1086 = vadd.f32 %v1084, %v1085
          %v1087 = vrot.slane %v1086, 1
          %v1088 = vadd.f32 %v1086, %v1087
          %s1089 = vtos %v1088
          %vm1090 = vcmp.eq.s32.totalorder %v479, 7
          %v1091 = vsel %vm1090, %v1079, 0.0
          %v1092 = vsel %vm869, %v1091, 0.0
          %1093 = vadd.xlane.f32.xlu0 %v1092
          %v1094 = vpop.xlane.xlu0 %1093
          %v1095 = vrot.slane %v1094, 4
          %v1096 = vadd.f32 %v1094, %v1095
          %v1097 = vrot.slane %v1096, 2
          %v1098 = vadd.f32 %v1096, %v1097
          %v1099 = vrot.slane %v1098, 1
          %v1100 = vadd.f32 %v1098, %v1099
          %s1101 = vtos %v1100
          %s1102 = ssub.f32 %s1089, %s1101
          %s1103 = sadd.f32 %s1068, %s1102
          %s1104 = scalar_lea.vmem %s381, 20 [#allocation6]
          %v1105 = vld [vmem:[%s1104] sm:$0x3]
          %v1106 = vxor.u32 %v1105, 2147483648
          %v1107 = vmul.f32 %v1106, 1.442695
          %v1108 = vpow.pop %v1107
          %v1109 = vadd.f32 %v1108, 1.0
          %v1110 = vrcp.pop %v1109
          %v1111 = vmul.f32 1.0, %v1110
          %s1112 = scalar_lea.vmem [#allocation2], 14
          %1113 = vst [vmem:[%s1112] sm:$0x3] %v1111
          %v1114 = vmul.f32 %v1111, %v1111
          %v1115 = vsel %vm869, %v1114, 0.0
          %1116 = vadd.xlane.f32.xlu0 %v1115
          %v1117 = vpop.xlane.xlu0 %1116
          %v1118 = vrot.slane %v1117, 4
          %v1119 = vadd.f32 %v1117, %v1118
          %v1120 = vrot.slane %v1119, 2
          %v1121 = vadd.f32 %v1119, %v1120
          %v1122 = vrot.slane %v1121, 1
          %v1123 = vadd.f32 %v1121, %v1122
          %s1124 = vtos %v1123
          %vm1125 = vcmp.eq.s32.totalorder %v479, 8
          %v1126 = vsel %vm1125, %v1114, 0.0
          %v1127 = vsel %vm869, %v1126, 0.0
          %1128 = vadd.xlane.f32.xlu0 %v1127
          %v1129 = vpop.xlane.xlu0 %1128
          %v1130 = vrot.slane %v1129, 4
          %v1131 = vadd.f32 %v1129, %v1130
          %v1132 = vrot.slane %v1131, 2
          %v1133 = vadd.f32 %v1131, %v1132
          %v1134 = vrot.slane %v1133, 1
          %v1135 = vadd.f32 %v1133, %v1134
          %s1136 = vtos %v1135
          %s1137 = ssub.f32 %s1124, %s1136
          %s1138 = sadd.f32 %s1103, %s1137
          %s1139 = sld [smem:[#allocation5]]
          %s1140 = smul.f32 %s1138, 1.6316
          %s1141 = sadd.f32 %s1139, %s1140
          %s1142 = scalar_lea.smem [#allocation5], 0
          %1143 = sst [smem:[%s1142]] %s1141
          %v1144 = vld [vmem:[%s381] sm:$0x3]
          %v1145 = vtanh.pop %v1144
          %v1146 = vadd.f32 %v1145, %v475
          %s1147 = scalar_lea.vmem %s381, 2 [#allocation6]
          %v1148 = vld [vmem:[%s1147] sm:$0x3]
          %v1149 = vtanh.pop %v1148
          %v1150 = vadd.f32 %v1149, %v477
          %s1151 = sld [smem:[#allocation3]]
          %p1152 = scmp.gt.f32.partialorder %s1151, 0.0
          // Predicated region
          $region69: #{tpu_custom_call.1} parent=67 // pred_check
            %p1153 = pneg %p1152
          $region70: #{tpu_custom_call.1} parent=67 // pred_check_branch
            %1155 = sbr.rel (%p1153) target = $region72
          $region71: #{tpu_custom_call.1} parent=67 // pred_region
            %v1156 = vstv %s1151
            %v1157 = vrcp.pop %v1156
            %s1158 = vtos %v1157
            %s1159 = sld [smem:[#allocation3 + $0x1]]
            %s1160 = smul.f32 %s1159, %s1158
            %s1161 = sld [smem:[#allocation3 + $0x2]]
            %s1162 = smul.f32 %s1161, %s1158
            %s1163 = sld [smem:[#allocation3 + $0x3]]
            %s1164 = smul.f32 %s1163, %s1158
            %s1165 = smul.f32 %s1164, 10.0
            %v1166 = vstv %s1165
            %v1167 = vmul.f32 %v1166, 1.442695
            %v1168 = vpow.pop %v1167
            %s1169 = vtos %v1168
            %v1170 = vstv %s1160
            %v1171 = vsub.f32 %v1146, %v1170
            %v1172 = vmul.f32 %v1171, %v1171
            %v1173 = vstv %s1162
            %v1174 = vsub.f32 %v1150, %v1173
            %v1175 = vmul.f32 %v1174, %v1174
            %v1176 = vadd.f32 %v1172, %v1175
            %v1177 = vsub.f32 0.0, %v1176
            %v1178 = vstv %s1169
            %v1179 = vmul.f32 %v1177, %v1178
            %v1180 = vmul.f32 %v1179, 1.442695
            %v1181 = vpow.pop %v1180
            %1182 = vst [vmem:[%s446] sm:$0x3] %v1181
            %s1183 = sld [smem:[#allocation4]]
            %s1184 = ssub.s32 %s1183, 1
            %p1185 = scmp.gt.s32.totalorder %s1184, 0
            %s1186 = scalar_select %p1185, %s1184, 0
            %p1187 = scmp.lt.s32.totalorder %s1186, 7
            %s1188 = scalar_select %p1187, %s1186, 7
            %s1189 = smul.u32 %s1188, 2
            %s1190 = scalar_lea.vmem [#allocation2], %s1189
            %v1191 = vld [vmem:[%s1190] sm:$0x3]
            %s1192 = sld [smem:[#allocation12 + %s1188]]
            %vm1193 = vcmp.eq.s32.totalorder %v478, 1
            %s1194 = sld [smem:[#allocation5 + $0x1]]
            %v1195 = vsub.f32 %v1191, %v1181
            %v1196 = vmul.f32 %v1195, %v1195
            %v1197 = vsel %vm1193, %v1196, 0.0
            %v1198 = vsel %vm869, %v1197, 0.0
            %1199 = vadd.xlane.f32.xlu0 %v1198
            %v1200 = vpop.xlane.xlu0 %1199
            %v1201 = vrot.slane %v1200, 4
            %v1202 = vadd.f32 %v1200, %v1201
            %v1203 = vrot.slane %v1202, 2
            %v1204 = vadd.f32 %v1202, %v1203
            %v1205 = vrot.slane %v1204, 1
            %v1206 = vadd.f32 %v1204, %v1205
            %s1207 = vtos %v1206
            %s1208 = smul.f32 %s1192, %s1207
            %s1209 = sadd.f32 %s1194, %s1208
            %s1210 = scalar_lea.smem [#allocation5], 1
            %1211 = sst [smem:[%s1210]] %s1209
          $region72: #{tpu_custom_call.1} parent=67 // pred_fallthru
            _
          %p1212 = scmp.eq.f32.partialorder %s1151, 0.0
          // Predicated region
          $region73: #{tpu_custom_call.1} parent=67 // pred_check
            %p1213 = pneg %p1212
          $region74: #{tpu_custom_call.1} parent=67 // pred_check_branch
            %1215 = sbr.rel (%p1213) target = $region76
          $region75: #{tpu_custom_call.1} parent=67 // pred_region
            %1216 = vst [vmem:[%s446] sm:$0x3] 0.0
          $region76: #{tpu_custom_call.1} parent=67 // pred_fallthru
            _
          %s1217 = sld [smem:[#allocation3 + $0x80]]
          %p1218 = scmp.gt.f32.partialorder %s1217, 0.0
          // Predicated region
          $region77: #{tpu_custom_call.1} parent=67 // pred_check
            %p1219 = pneg %p1218
          $region78: #{tpu_custom_call.1} parent=67 // pred_check_branch
            %1221 = sbr.rel (%p1219) target = $region80
          $region79: #{tpu_custom_call.1} parent=67 // pred_region
            %v1222 = vstv %s1217
            %v1223 = vrcp.pop %v1222
            %s1224 = vtos %v1223
            %s1225 = sld [smem:[#allocation3 + $0x81]]
            %s1226 = smul.f32 %s1225, %s1224
            %s1227 = sld [smem:[#allocation3 + $0x82]]
            %s1228 = smul.f32 %s1227, %s1224
            %s1229 = sld [smem:[#allocation3 + $0x83]]
            %s1230 = smul.f32 %s1229, %s1224
            %s1231 = smul.f32 %s1230, 10.0
            %v1232 = vstv %s1231
            %v1233 = vmul.f32 %v1232, 1.442695
            %v1234 = vpow.pop %v1233
            %s1235 = vtos %v1234
            %v1236 = vstv %s1226
            %v1237 = vsub.f32 %v1146, %v1236
            %v1238 = vmul.f32 %v1237, %v1237
            %v1239 = vstv %s1228
            %v1240 = vsub.f32 %v1150, %v1239
            %v1241 = vmul.f32 %v1240, %v1240
            %v1242 = vadd.f32 %v1238, %v1241
            %v1243 = vsub.f32 0.0, %v1242
            %v1244 = vstv %s1235
            %v1245 = vmul.f32 %v1243, %v1244
            %v1246 = vmul.f32 %v1245, 1.442695
            %v1247 = vpow.pop %v1246
            %s1248 = scalar_lea.vmem %s446, 2 [#allocation13]
            %1249 = vst [vmem:[%s1248] sm:$0x3] %v1247
            %s1250 = sld [smem:[#allocation4 + $0x1]]
            %s1251 = ssub.s32 %s1250, 1
            %p1252 = scmp.gt.s32.totalorder %s1251, 0
            %s1253 = scalar_select %p1252, %s1251, 0
            %p1254 = scmp.lt.s32.totalorder %s1253, 7
            %s1255 = scalar_select %p1254, %s1253, 7
            %s1256 = smul.u32 %s1255, 2
            %s1257 = scalar_lea.vmem [#allocation2], %s1256
            %v1258 = vld [vmem:[%s1257] sm:$0x3]
            %s1259 = sld [smem:[#allocation12 + %s1255]]
            %vm1260 = vcmp.eq.s32.totalorder %v478, 2
            %s1261 = sld [smem:[#allocation5 + $0x1]]
            %v1262 = vsub.f32 %v1258, %v1247
            %v1263 = vmul.f32 %v1262, %v1262
            %v1264 = vsel %vm1260, %v1263, 0.0
            %v1265 = vsel %vm869, %v1264, 0.0
            %1266 = vadd.xlane.f32.xlu0 %v1265
            %v1267 = vpop.xlane.xlu0 %1266
            %v1268 = vrot.slane %v1267, 4
            %v1269 = vadd.f32 %v1267, %v1268
            %v1270 = vrot.slane %v1269, 2
            %v1271 = vadd.f32 %v1269, %v1270
            %v1272 = vrot.slane %v1271, 1
            %v1273 = vadd.f32 %v1271, %v1272
            %s1274 = vtos %v1273
            %s1275 = smul.f32 %s1259, %s1274
            %s1276 = sadd.f32 %s1261, %s1275
            %s1277 = scalar_lea.smem [#allocation5], 1
            %1278 = sst [smem:[%s1277]] %s1276
          $region80: #{tpu_custom_call.1} parent=67 // pred_fallthru
            _
          %p1279 = scmp.eq.f32.partialorder %s1217, 0.0
          // Predicated region
          $region81: #{tpu_custom_call.1} parent=67 // pred_check
            %p1280 = pneg %p1279
          $region82: #{tpu_custom_call.1} parent=67 // pred_check_branch
            %1282 = sbr.rel (%p1280) target = $region84
          $region83: #{tpu_custom_call.1} parent=67 // pred_region
            %s1283 = scalar_lea.vmem %s446, 2 [#allocation13]
            %1284 = vst [vmem:[%s1283] sm:$0x3] 0.0
          $region84: #{tpu_custom_call.1} parent=67 // pred_fallthru
            _
          %s1285 = sld [smem:[#allocation3 + $0x100]]
          %p1286 = scmp.gt.f32.partialorder %s1285, 0.0
          // Predicated region
          $region85: #{tpu_custom_call.1} parent=67 // pred_check
            %p1287 = pneg %p1286
          $region86: #{tpu_custom_call.1} parent=67 // pred_check_branch
            %1289 = sbr.rel (%p1287) target = $region88
          $region87: #{tpu_custom_call.1} parent=67 // pred_region
            %v1290 = vstv %s1285
            %v1291 = vrcp.pop %v1290
            %s1292 = vtos %v1291
            %s1293 = sld [smem:[#allocation3 + $0x101]]
            %s1294 = smul.f32 %s1293, %s1292
            %s1295 = sld [smem:[#allocation3 + $0x102]]
            %s1296 = smul.f32 %s1295, %s1292
            %s1297 = sld [smem:[#allocation3 + $0x103]]
            %s1298 = smul.f32 %s1297, %s1292
            %s1299 = smul.f32 %s1298, 10.0
            %v1300 = vstv %s1299
            %v1301 = vmul.f32 %v1300, 1.442695
            %v1302 = vpow.pop %v1301
            %s1303 = vtos %v1302
            %v1304 = vstv %s1294
            %v1305 = vsub.f32 %v1146, %v1304
            %v1306 = vmul.f32 %v1305, %v1305
            %v1307 = vstv %s1296
            %v1308 = vsub.f32 %v1150, %v1307
            %v1309 = vmul.f32 %v1308, %v1308
            %v1310 = vadd.f32 %v1306, %v1309
            %v1311 = vsub.f32 0.0, %v1310
            %v1312 = vstv %s1303
            %v1313 = vmul.f32 %v1311, %v1312
            %v1314 = vmul.f32 %v1313, 1.442695
            %v1315 = vpow.pop %v1314
            %s1316 = scalar_lea.vmem %s446, 4 [#allocation13]
            %1317 = vst [vmem:[%s1316] sm:$0x3] %v1315
            %s1318 = sld [smem:[#allocation4 + $0x2]]
            %s1319 = ssub.s32 %s1318, 1
            %p1320 = scmp.gt.s32.totalorder %s1319, 0
            %s1321 = scalar_select %p1320, %s1319, 0
            %p1322 = scmp.lt.s32.totalorder %s1321, 7
            %s1323 = scalar_select %p1322, %s1321, 7
            %s1324 = smul.u32 %s1323, 2
            %s1325 = scalar_lea.vmem [#allocation2], %s1324
            %v1326 = vld [vmem:[%s1325] sm:$0x3]
            %s1327 = sld [smem:[#allocation12 + %s1323]]
            %vm1328 = vcmp.eq.s32.totalorder %v478, 3
            %s1329 = sld [smem:[#allocation5 + $0x1]]
            %v1330 = vsub.f32 %v1326, %v1315
            %v1331 = vmul.f32 %v1330, %v1330
            %v1332 = vsel %vm1328, %v1331, 0.0
            %v1333 = vsel %vm869, %v1332, 0.0
            %1334 = vadd.xlane.f32.xlu0 %v1333
            %v1335 = vpop.xlane.xlu0 %1334
            %v1336 = vrot.slane %v1335, 4
            %v1337 = vadd.f32 %v1335, %v1336
            %v1338 = vrot.slane %v1337, 2
            %v1339 = vadd.f32 %v1337, %v1338
            %v1340 = vrot.slane %v1339, 1
            %v1341 = vadd.f32 %v1339, %v1340
            %s1342 = vtos %v1341
            %s1343 = smul.f32 %s1327, %s1342
            %s1344 = sadd.f32 %s1329, %s1343
            %s1345 = scalar_lea.smem [#allocation5], 1
            %1346 = sst [smem:[%s1345]] %s1344
          $region88: #{tpu_custom_call.1} parent=67 // pred_fallthru
            _
          %p1347 = scmp.eq.f32.partialorder %s1285, 0.0
          // Predicated region
          $region89: #{tpu_custom_call.1} parent=67 // pred_check
            %p1348 = pneg %p1347
          $region90: #{tpu_custom_call.1} parent=67 // pred_check_branch
            %1350 = sbr.rel (%p1348) target = $region92
          $region91: #{tpu_custom_call.1} parent=67 // pred_region
            %s1351 = scalar_lea.vmem %s446, 4 [#allocation13]
            %1352 = vst [vmem:[%s1351] sm:$0x3] 0.0
          $region92: #{tpu_custom_call.1} parent=67 // pred_fallthru
            _
          %p1353 = scmp.eq.s32.totalorder %s39, 0
          // Predicated region
          $region93: #{tpu_custom_call.1} parent=67 // pred_check
            %p1354 = pneg %p1353
          $region94: #{tpu_custom_call.1} parent=67 // pred_check_branch
            %1356 = sbr.rel (%p1354) target = $region96
          $region95: #{tpu_custom_call.1} parent=67 // pred_region
            %s1357 = sld [smem:[#allocation3]]
            %p1358 = scmp.gt.f32.partialorder %s1357, 0.0
            %s1359 = scalar_select %p1358, 1, 0
            %s1360 = scvt.s32.f32 %s1359
            %s1361 = smax.f32 %s1357, 1.0
            %v1362 = vstv %s1361
            %v1363 = vrcp.pop %v1362
            %s1364 = vtos %v1363
            %s1365 = sld [smem:[#allocation3 + $0x3]]
            %s1366 = smul.f32 %s1365, %s1364
            %s1367 = sld [smem:[#allocation3 + $0x4]]
            %s1368 = smul.f32 %s1367, %s1364
            %s1369 = smul.f32 %s1366, %s1366
            %s1370 = ssub.f32 %s1368, %s1369
            %s1371 = smax.f32 %s1370, 0.0
            %s1372 = sadd.f32 %s1360, 0.0
            %s1373 = smul.f32 %s1360, %s1371
            %s1374 = sadd.f32 %s1373, 0.0
            %s1375 = sld [smem:[#allocation3 + $0x80]]
            %p1376 = scmp.gt.f32.partialorder %s1375, 0.0
            %s1377 = scalar_select %p1376, 1, 0
            %s1378 = scvt.s32.f32 %s1377
            %s1379 = smax.f32 %s1375, 1.0
            %v1380 = vstv %s1379
            %v1381 = vrcp.pop %v1380
            %s1382 = vtos %v1381
            %s1383 = sld [smem:[#allocation3 + $0x83]]
            %s1384 = smul.f32 %s1383, %s1382
            %s1385 = sld [smem:[#allocation3 + $0x84]]
            %s1386 = smul.f32 %s1385, %s1382
            %s1387 = smul.f32 %s1384, %s1384
            %s1388 = ssub.f32 %s1386, %s1387
            %s1389 = smax.f32 %s1388, 0.0
            %s1390 = sadd.f32 %s1372, %s1378
            %s1391 = smul.f32 %s1378, %s1389
            %s1392 = sadd.f32 %s1374, %s1391
            %s1393 = sld [smem:[#allocation3 + $0x100]]
            %p1394 = scmp.gt.f32.partialorder %s1393, 0.0
            %s1395 = scalar_select %p1394, 1, 0
            %s1396 = scvt.s32.f32 %s1395
            %s1397 = smax.f32 %s1393, 1.0
            %v1398 = vstv %s1397
            %v1399 = vrcp.pop %v1398
            %s1400 = vtos %v1399
            %s1401 = sld [smem:[#allocation3 + $0x103]]
            %s1402 = smul.f32 %s1401, %s1400
            %s1403 = sld [smem:[#allocation3 + $0x104]]
            %s1404 = smul.f32 %s1403, %s1400
            %s1405 = smul.f32 %s1402, %s1402
            %s1406 = ssub.f32 %s1404, %s1405
            %s1407 = smax.f32 %s1406, 0.0
            %s1408 = sadd.f32 %s1390, %s1396
            %s1409 = smul.f32 %s1396, %s1407
            %s1410 = sadd.f32 %s1392, %s1409
            %v1411 = vlaneseq
            %v1412 = vand.u32 %v1411, 127
            %vm1413 = vcmp.eq.s32.totalorder %v1412, 0
            %v1414 = vstv %s1408
            %v1415 = vsel %vm1413, %v1414, 0.0
            %vm1416 = vcmp.eq.s32.totalorder %v1412, 1
            %v1417 = vstv %s1410
            %v1418 = vsel %vm1416, %v1417, 0.0
            %v1419 = vadd.f32 %v1415, %v1418
            %vm1420 = vcmp.eq.s32.totalorder %v1412, 2
            %s1421 = sld [smem:[#allocation5 + $0x1]]
            %v1422 = vstv %s1421
            %v1423 = vsel %vm1420, %v1422, 0.0
            %v1424 = vadd.f32 %v1419, %v1423
            %vm1425 = vcmp.eq.s32.totalorder %v1412, 3
            %s1426 = sld [smem:[#allocation5]]
            %v1427 = vstv %s1426
            %v1428 = vsel %vm1425, %v1427, 0.0
            %v1429 = vadd.f32 %v1424, %v1428
            %1430 = vst [vmem:[%s452] sm:$0x1] %v1429
          $region96: #{tpu_custom_call.1} parent=67 // pred_fallthru
            _
        $region68: #{tpu_custom_call.1} parent=43 // pred_fallthru
          _
        %s1431 = sand.u32 %s228, 1
        %s1432 = scalar_lea.sflag [#allocation8], %s1431
        %s1433 = sand.u32 %s228, 1
        %s1434 = smul.addr %s1433, 6
        %s1435 = scalar_lea.vmem [#allocation13], %s1434
        %s1436 = sand.u32 %s254, 1
        %s1437 = scalar_lea.sflag [#allocation15], %s1436
        %s1438 = sand.u32 %s254, 1
        %s1439 = scalar_lea.vmem [#allocation14], %s1438
        // Predicated region
        $region97: #{tpu_custom_call.1} parent=43 // pred_check
          %p1440 = pneg %p238
        $region98: #{tpu_custom_call.1} parent=43 // pred_check_branch
          %1442 = sbr.rel (%p1440) target = $region100
        $region99: #{tpu_custom_call.1} parent=43 // pred_region
          %s1443 = smul.u32 %s39, %s38
          %s1445 = ssub.s32 96, 96
          %1446 = vsyncadd %s1432, %s1445
          %s1447 = smul.addr %s37, 3
          %s1448 = sadd.s32 %s1443, %s1447
          %s1449 = smul.addr %s1448, 32
          %s1450 = scalar_lea.hbm %s6, %s1449
          %s1451 = sshll.u32 %s1435, 4
          %s1452 = int_to_ptr.vmem [resolvable:$true] %s1451
          %1457 = dma.vmem_to_hbm [thread:$0]  %s1452, 96, %s1450, %s1432, 32, 32, 2
        $region100: #{tpu_custom_call.1} parent=43 // pred_fallthru
          _
        // Predicated region
        $region101: #{tpu_custom_call.1} parent=43 // pred_check
          %p1458 = pneg %p264
        $region102: #{tpu_custom_call.1} parent=43 // pred_check_branch
          %1460 = sbr.rel (%p1458) target = $region104
        $region103: #{tpu_custom_call.1} parent=43 // pred_region
          %s1462 = ssub.s32 16, 16
          %1463 = vsyncadd %s1437, %s1462
          %s1464 = smul.addr %s37, 16
          %s1465 = scalar_lea.hbm %s7, %s1464
          %s1467 = sshll.u32 %s1439, 4
          %s1468 = int_to_ptr.vmem [resolvable:$true] %s1467
          %1470 = dma.vmem_to_hbm [thread:$0]  %s1468, 16, %s1465, %s1437
        $region104: #{tpu_custom_call.1} parent=43 // pred_fallthru
          _
      $region44: #{tpu_custom_call.1} parent=5 // pred_fallthru
        _
      %p1471 = scmp.le.s32.totalorder 2, %s27
      // Predicated region
      $region105: #{tpu_custom_call.1} parent=5 // pred_check
        %p1472 = pneg %p1471
      $region106: #{tpu_custom_call.1} parent=5 // pred_check_branch
        %1474 = sbr.rel (%p1472) target = $region108
      $region107: #{tpu_custom_call.1} parent=5 // pred_region
        %s1475 = ssub.s32 %s27, 2
        // Predicated region
        $region109: #{tpu_custom_call.1} parent=107 // pred_check
          %p1476 = pneg %p244
        $region110: #{tpu_custom_call.1} parent=107 // pred_check_branch
          %1478 = sbr.rel (%p1476) target = $region112
        $region111: #{tpu_custom_call.1} parent=107 // pred_region
          %s1479 = sand.u32 %s229, 1
          %s1480 = scalar_lea.sflag [#allocation8], %s1479
          %s1481 = sand.u32 %s229, 1
          %s1482 = smul.addr %s1481, 6
          %s1483 = scalar_lea.vmem [#allocation13], %s1482
          %1484 = dma.done %s1480, 96
        $region112: #{tpu_custom_call.1} parent=107 // pred_fallthru
          _
        // Predicated region
        $region113: #{tpu_custom_call.1} parent=107 // pred_check
          %p1485 = pneg %p270
        $region114: #{tpu_custom_call.1} parent=107 // pred_check_branch
          %1487 = sbr.rel (%p1485) target = $region116
        $region115: #{tpu_custom_call.1} parent=107 // pred_region
          %s1488 = sand.u32 %s255, 1
          %s1489 = scalar_lea.sflag [#allocation15], %s1488
          %s1490 = sand.u32 %s255, 1
          %s1491 = scalar_lea.vmem [#allocation14], %s1490
          %1492 = dma.done %s1489, 16
        $region116: #{tpu_custom_call.1} parent=107 // pred_fallthru
          _
      $region108: #{tpu_custom_call.1} parent=5 // pred_fallthru
        _
    $region6: #{tpu_custom_call.1} parent=1 // loop_footer
      %s31 = sadd.s32 1, %s27
    $region7: #{tpu_custom_call.1} parent=1 // loop_footer_branch
      %26 = sbr.rel target = $region3
    $region8: #{tpu_custom_call.1} parent=1 // loop_exit
      _
    %1493 = vsyncpa [#allocation7], 1
    %s1494 = scalar_lea.sflag [#allocation7], 1
    %1495 = vsyncpa %s1494, 1
    %1496 = vsyncpa [#allocation11], 1
    %s1497 = scalar_lea.sflag [#allocation11], 1
    %1498 = vsyncpa %s1497, 1
    %1499 = vsyncpa [#allocation8], 1
    %s1500 = scalar_lea.sflag [#allocation8], 1
    %1501 = vsyncpa %s1500, 1
    %1502 = vsyncpa [#allocation15], 1
    %s1503 = scalar_lea.sflag [#allocation15], 1
    %1504 = vsyncpa %s1503, 1
    %1505 = vsyncpa [#allocation9], 1
    %s1506 = scalar_lea.sflag [#allocation9], 1
    %1507 = vsyncpa %s1506, 1

</llo_original>
